<compile_context>
chip_gen: v7x
topology: tpu7x:2x2x1
jax: 0.10.0
libtpu: 0.0.40
codegen_flags: <defaults>
</compile_context>

<pallas_src>
import functools
import math

import jax
import jax.numpy as jnp
from jax.experimental import pallas as pl
from jax.experimental.pallas import tpu as pltpu


# ------------------------------- Pallas kernel -------------------------------

def _posenc_kernel(t_ref, o_ref, *, half_dim, neg_log_scale):
    """One tile: t_ref (bb, 1) f32 -> o_ref (bb, 2*half_dim) f32, all in VMEM."""
    out_dim = 2 * half_dim
    t = t_ref[...]                                               # (bb, 1)
    # Lane index j over the full output width; k = j mod half_dim.
    j = jax.lax.broadcasted_iota(jnp.int32, (1, out_dim), 1)
    is_sin = j < half_dim
    k = jnp.where(is_sin, j, j - half_dim).astype(jnp.float32)
    freqs = jnp.exp(k * neg_log_scale)                           # (1, out_dim)
    arg = t * freqs                                              # (bb, out_dim)
    # Single full-width (lane-dense) store: sin in the first half of the
    # lanes, cos in the second half.
    o_ref[...] = jnp.where(is_sin, jnp.sin(arg), jnp.cos(arg))


# --------------------------------- wrapper -----------------------------------

def positional_encoding(time, dim, *, block_b=128):
    """Sinusoidal time embedding matching PyTorch `PositionalEncoding(dim)`.

    time: (B,) float or int timesteps.
    returns: (B, 2*(dim//2)) float32.
    """
    half_dim = dim // 2
    assert half_dim >= 2, "dim must be >= 4 (reference divides by half_dim - 1)"
    out_dim = 2 * half_dim
    neg_log_scale = -math.log(10000.0) / (half_dim - 1)

    t = jnp.asarray(time, jnp.float32).reshape(-1, 1)            # (B, 1)
    B = t.shape[0]

    # Batch tiling: blocks are multiples of 8 sublanes; pad B so the grid
    # divides evenly (padded rows are dropped after the call).
    bb = min(block_b, ((B + 7) // 8) * 8)
    bb = max(8, (bb // 8) * 8)
    Bp = ((B + bb - 1) // bb) * bb
    if Bp != B:
        t = jnp.pad(t, ((0, Bp - B), (0, 0)))

    out = pl.pallas_call(
        functools.partial(_posenc_kernel, half_dim=half_dim,
                          neg_log_scale=neg_log_scale),
        grid=(Bp // bb,),
        in_specs=[pl.BlockSpec((bb, 1), lambda i: (i, 0))],
        out_specs=pl.BlockSpec((bb, out_dim), lambda i: (i, 0)),
        out_shape=jax.ShapeDtypeStruct((Bp, out_dim), jnp.float32),
        compiler_params=pltpu.CompilerParams(
            dimension_semantics=("parallel",)),
    )(t)
    return out[:B]


# ------------------------------ pure-JAX reference ---------------------------

def _reference(time, dim):
    half_dim = dim // 2
    scale = math.log(10000.0) / (half_dim - 1)
    freqs = jnp.exp(jnp.arange(half_dim, dtype=jnp.float32) * -scale)
    arg = jnp.asarray(time, jnp.float32)[:, None] * freqs[None, :]
    return jnp.concatenate([jnp.sin(arg), jnp.cos(arg)], axis=-1)


# ----------------------------------- main -------------------------------------

if __name__ == "__main__":
    key = jax.random.PRNGKey(0)

    # Small, module-consistent shapes: 256 timesteps, embedding dim 128
    # (lane-dense output width, 2 parallel grid steps of 128 rows).
    B, DIM = 256, 128
    time = jax.random.randint(key, (B,), 0, 1000).astype(jnp.float32)

    out = positional_encoding(time, DIM)
    out = jax.block_until_ready(out)
    assert out.shape == (B, DIM), out.shape

    ref = _reference(time, DIM)
    max_err = float(jnp.max(jnp.abs(out - ref)))
    assert max_err < 2e-3, max_err
    print("KERNEL_OK")
</pallas_src>

<mosaic_0001>
module attributes {stable_mosaic.version = 11 : i64} {
  func.func @_posenc_kernel(%arg0: i32, %arg1: memref<128x1xf32, #tpu.memory_space<vmem>>, %arg2: memref<128x128xf32, #tpu.memory_space<vmem>>) attributes {dimension_semantics = [#tpu.dimension_semantics<parallel>], iteration_bounds = array<i64: 2>, scalar_prefetch = 0 : i64, scratch_operands = 0 : i64, tpu.core_type = #tpu.core_type<tc>, window_params = [{transform_indices = @transform_0, window_bounds = array<i64: 128, 1>}, {transform_indices = @transform_1, window_bounds = array<i64: 128, 128>}]} {
    %c0 = arith.constant 0 : index
    %c0_0 = arith.constant 0 : index
    %0 = vector.load %arg1[%c0, %c0_0] : memref<128x1xf32, #tpu.memory_space<vmem>>, vector<128x1xf32>
    %1 = tpu.iota {dimensions = array<i32: 1>} : vector<1x128xi32>
    %c64_i32 = arith.constant 64 : i32
    %2 = vector.broadcast %c64_i32 : i32 to vector<1x128xi32>
    %3 = arith.cmpi slt, %1, %2 : vector<1x128xi32>
    %c64_i32_1 = arith.constant 64 : i32
    %4 = vector.broadcast %c64_i32_1 : i32 to vector<1x128xi32>
    %5 = arith.subi %1, %4 : vector<1x128xi32>
    %6 = arith.select %3, %1, %5 : vector<1x128xi1>, vector<1x128xi32>
    %7 = arith.sitofp %6 : vector<1x128xi32> to vector<1x128xf32>
    %cst = arith.constant -0.146195874 : f32
    %8 = vector.broadcast %cst : f32 to vector<1x128xf32>
    %9 = arith.mulf %7, %8 : vector<1x128xf32>
    %10 = math.exp %9 : vector<1x128xf32>
    %11 = vector.broadcast %0 : vector<128x1xf32> to vector<128x128xf32>
    %12 = vector.broadcast %10 : vector<1x128xf32> to vector<128x128xf32>
    %13 = arith.mulf %11, %12 : vector<128x128xf32>
    %14 = math.sin %13 : vector<128x128xf32>
    %15 = math.cos %13 : vector<128x128xf32>
    %16 = vector.shape_cast %3 : vector<1x128xi1> to vector<1x128xi1>
    %17 = vector.broadcast %16 : vector<1x128xi1> to vector<128x128xi1>
    %18 = arith.select %17, %14, %15 : vector<128x128xi1>, vector<128x128xf32>
    %c0_2 = arith.constant 0 : index
    %c0_3 = arith.constant 0 : index
    %19 = vector.load %arg2[%c0_2, %c0_3] : memref<128x128xf32, #tpu.memory_space<vmem>>, vector<128x128xf32>
    tpu.vector_store %arg2[%c0_2, %c0_3], %18 {strides = array<i32>} : memref<128x128xf32, #tpu.memory_space<vmem>>, vector<128x128xf32>,
    return
  }
  func.func @transform_0(%arg0: i32) -> (i32, i32) {
    %c0_i32 = arith.constant 0 : i32
    %c0_i32_0 = arith.constant 0 : i32
    return %arg0, %c0_i32 : i32, i32
  }
  func.func @transform_1(%arg0: i32) -> (i32, i32) {
    %c0_i32 = arith.constant 0 : i32
    %c0_i32_0 = arith.constant 0 : i32
    return %arg0, %c0_i32 : i32, i32
  }
}

</mosaic_0001>

<llo_original>
// kernel: tpu_custom_call.1
$region0: #{tpu_custom_call.1}
  #allocation0 [shape = 'u32[]', space=smem, size = 0x4, offset = 0x4, fixed_abs, tag = 'smem constant byte address 0x4 - core index']
  #allocation1 [shape = 'u32[144,128]{1,0:T(1,128)}', space=vmem, size = 0x12000, scoped, tag = 'internal scratch']
  %s0 = inlined_call_operand.vmem [shape: f32[256,1], index: 0, kind: input, shape index: {}]
  %s1 = inlined_call_operand.hbm [shape: f32[256,128], index: 1, kind: output, shape index: {}]
  %s2 = sld [smem:[#allocation0]]
  $region37: #{tpu_custom_call.1} parent=0
    _
  %s4 = ssub.s32 1, %s2
  %s5 = scalar_select 0, %s4, %s2
  $region1: #{tpu_custom_call.1} parent=0
    #allocation2 [shape = 'u8[131072]{0}', space=vmem, size = 0x20000, scoped, tag = 'output window, operand 0']
    #allocation3 [shape = 's32[2]{0}', space=sflag, size = 0x8, scoped, tag = 'scoped memory for tpu_custom_call.1']
    %6 = vsyncpa [#allocation3], 0
    %s7 = scalar_lea.sflag [#allocation3], 1
    %8 = vsyncpa %s7, 0
    loop: start=0, step=1, limit=4
    $region2: #{tpu_custom_call.1} parent=1 // loop_pre_header
      _
    $region3: #{tpu_custom_call.1} parent=1 // loop_header
      %s10 = sphi 0, %s14
      %p11 = scmp.ge.s32.totalorder %s10, 4
      %s20 = sphi 0, %s22
      %s23 = sphi 0, %s20
      %s24 = sphi 0, %s23
      %s40 = sphi 0, %s24
      %s46 = sphi 0, %s48
      %s49 = sphi 0, %s46
      %s50 = sphi 0, %s49
      %s66 = sphi 0, %s50
    $region4: #{tpu_custom_call.1} parent=1 // loop_header_branch
      %13 = sbr.rel (%p11) target = $region8
    $region5: #{tpu_custom_call.1} parent=1 // loop_body
      %s15 = ssub.s32 %s10, 1
      %s16 = ssub.s32 %s10, 2
      %s17 = sadd.s32 %s10, 1
      %s18 = ssub.s32 %s10, %s17
      %p19 = scmp.eq.s32.totalorder %s18, 0
      %s21 = sadd.s32 %s20, 1
      %s22 = scalar_select %p19, %s20, %s21
      %p25 = pneg %p19
      %p26 = scmp.eq.s32.totalorder %s10, 1
      %p27 = por %p25, %p26
      %p28 = scmp.ne.s32.totalorder %s20, %s23
      %p29 = scmp.eq.s32.totalorder %s10, 0
      %p30 = por %p28, %p29
      %p31 = scmp.ne.s32.totalorder %s20, %s23
      %p32 = scmp.eq.s32.totalorder %s15, 1
      %p33 = por %p31, %p32
      %p34 = scmp.ne.s32.totalorder %s23, %s24
      %p35 = scmp.eq.s32.totalorder %s15, 0
      %p36 = por %p34, %p35
      %p37 = scmp.ne.s32.totalorder %s23, %s24
      %p38 = scmp.eq.s32.totalorder %s16, 1
      %p39 = por %p37, %p38
      %p41 = scmp.ne.s32.totalorder %s24, %s40
      %p42 = scmp.eq.s32.totalorder %s16, 0
      %p43 = por %p41, %p42
      %s44 = ssub.s32 %s10, %s17
      %p45 = scmp.eq.s32.totalorder %s44, 0
      %s47 = sadd.s32 %s46, 1
      %s48 = scalar_select %p45, %s46, %s47
      %p51 = pneg %p45
      %p52 = scmp.eq.s32.totalorder %s10, 1
      %p53 = por %p51, %p52
      %p54 = scmp.ne.s32.totalorder %s46, %s49
      %p55 = scmp.eq.s32.totalorder %s10, 0
      %p56 = por %p54, %p55
      %p57 = scmp.ne.s32.totalorder %s46, %s49
      %p58 = scmp.eq.s32.totalorder %s15, 1
      %p59 = por %p57, %p58
      %p60 = scmp.ne.s32.totalorder %s49, %s50
      %p61 = scmp.eq.s32.totalorder %s15, 0
      %p62 = por %p60, %p61
      %p63 = scmp.ne.s32.totalorder %s49, %s50
      %p64 = scmp.eq.s32.totalorder %s16, 1
      %p65 = por %p63, %p64
      %p67 = scmp.ne.s32.totalorder %s50, %s66
      %p68 = scmp.eq.s32.totalorder %s16, 0
      %p69 = por %p67, %p68
      %p70 = scmp.le.s32.totalorder 1, %s10
      %p71 = scmp.lt.s32.totalorder %s10, 3
      %p72 = pnand %p70, %p71
      %p73 = pneg %p72
      // Predicated region
      $region9: #{tpu_custom_call.1} parent=5 // pred_check
        _
      $region10: #{tpu_custom_call.1} parent=5 // pred_check_branch
        %75 = sbr.rel (%p72) target = $region12
      $region11: #{tpu_custom_call.1} parent=5 // pred_region
        %s76 = ssub.s32 %s10, 1
      $region12: #{tpu_custom_call.1} parent=5 // pred_fallthru
        _
      %p77 = scmp.lt.s32.totalorder %s10, 2
      // Predicated region
      $region13: #{tpu_custom_call.1} parent=5 // pred_check
        %p78 = pneg %p77
      $region14: #{tpu_custom_call.1} parent=5 // pred_check_branch
        %80 = sbr.rel (%p78) target = $region16
      $region15: #{tpu_custom_call.1} parent=5 // pred_region
        // Predicated region
        $region17: #{tpu_custom_call.1} parent=15 // pred_check
          %p81 = pneg %p30
        $region18: #{tpu_custom_call.1} parent=15 // pred_check_branch
          %83 = sbr.rel (%p81) target = $region20
        $region19: #{tpu_custom_call.1} parent=15 // pred_region
          %s84 = smul.u32 16, %s10
          %p85 = scmp.lt.s32.totalorder %s84, 31
          %s86 = scalar_select %p85, %s84, 31
          %s87 = smul.addr %s86, 8
          %s88 = scalar_lea.vmem %s0, %s87
          %s89 = smul.u32 16, %s10
        $region20: #{tpu_custom_call.1} parent=15 // pred_fallthru
          _
      $region16: #{tpu_custom_call.1} parent=5 // pred_fallthru
        _
      %p90 = scmp.le.s32.totalorder 1, %s10
      %p91 = scmp.lt.s32.totalorder %s10, 3
      %p92 = pnand %p90, %p91
      %p93 = pneg %p92
      // Predicated region
      $region21: #{tpu_custom_call.1} parent=5 // pred_check
        _
      $region22: #{tpu_custom_call.1} parent=5 // pred_check_branch
        %95 = sbr.rel (%p92) target = $region24
      $region23: #{tpu_custom_call.1} parent=5 // pred_region
        %s96 = ssub.s32 %s10, 1
        %s97 = smul.u32 16, %s15
        %p98 = scmp.lt.s32.totalorder %s97, 31
        %s99 = scalar_select %p98, %s97, 31
        %s100 = smul.addr %s99, 8
        %s101 = scalar_lea.vmem %s0, %s100
        %p102 = pneg %p36
        %p103 = pneg %p33
        %p104 = pneg %p62
        %p105 = pneg %p59
        %s106 = sand.u32 %s49, 1
        %s107 = scalar_lea.sflag [#allocation3], %s106
        %s108 = sand.u32 %s49, 1
        %s109 = smul.addr %s108, 128
        %s110 = scalar_lea.vmem [#allocation2], %s109
        %s111 = smul.u32 16, %s15
        %p112 = scmp.lt.s32.totalorder %s111, 31
        %s113 = scalar_select %p112, %s111, 31
        %s114 = smul.addr %s113, 8
        %s115 = scalar_lea.vmem %s0, %s114
        %s116 = smul.u32 16, %s15
        %s117 = smul.u32 16, %s15
        %v118 = vld [vmem:[%s115] sm:$0xff]
        %v119 = vld [vmem:[%s115 + $0x8] sm:$0xff]
        %v120 = vld [vmem:[%s115 + $0x10] sm:$0xff]
        %v121 = vld [vmem:[%s115 + $0x18] sm:$0xff]
        %v122 = vld [vmem:[%s115 + $0x20] sm:$0xff]
        %v123 = vld [vmem:[%s115 + $0x28] sm:$0xff]
        %v124 = vld [vmem:[%s115 + $0x30] sm:$0xff]
        %v125 = vld [vmem:[%s115 + $0x38] sm:$0xff]
        %v126 = vld [vmem:[%s115 + $0x40] sm:$0xff]
        %v127 = vld [vmem:[%s115 + $0x48] sm:$0xff]
        %v128 = vld [vmem:[%s115 + $0x50] sm:$0xff]
        %v129 = vld [vmem:[%s115 + $0x58] sm:$0xff]
        %v130 = vld [vmem:[%s115 + $0x60] sm:$0xff]
        %v131 = vld [vmem:[%s115 + $0x68] sm:$0xff]
        %v132 = vld [vmem:[%s115 + $0x70] sm:$0xff]
        %v133 = vld [vmem:[%s115 + $0x78] sm:$0xff]
        %v134 = vlaneseq
        %v135 = vand.u32 %v134, 127
        %vm136 = vcmp.lt.s32.totalorder %v135, 64
        %v137 = vsub.s32 %v135, 64
        %v138 = vsel %vm136, %v135, %v137
        %v139 = vcvt.s32.f32 %v138
        %v140 = vmul.f32 %v139, -0.14619587
        %v141 = vmul.f32 %v140, 1.442695
        %v142 = vpow.pop %v141
        %144 = vset.pattern.permute.xlu0 0
        %145 = vperm.xlu0 %144, %v118
        %v146 = vpop.permute.xlu0 %145
        %149 = vset.pattern.permute.xlu0 0
        %150 = vperm.xlu0 %149, %v119
        %v151 = vpop.permute.xlu0 %150
        %154 = vset.pattern.permute.xlu0 0
        %155 = vperm.xlu0 %154, %v120
        %v156 = vpop.permute.xlu0 %155
        %159 = vset.pattern.permute.xlu0 0
        %160 = vperm.xlu0 %159, %v121
        %v161 = vpop.permute.xlu0 %160
        %164 = vset.pattern.permute.xlu0 0
        %165 = vperm.xlu0 %164, %v122
        %v166 = vpop.permute.xlu0 %165
        %169 = vset.pattern.permute.xlu0 0
        %170 = vperm.xlu0 %169, %v123
        %v171 = vpop.permute.xlu0 %170
        %174 = vset.pattern.permute.xlu0 0
        %175 = vperm.xlu0 %174, %v124
        %v176 = vpop.permute.xlu0 %175
        %179 = vset.pattern.permute.xlu0 0
        %180 = vperm.xlu0 %179, %v125
        %v181 = vpop.permute.xlu0 %180
        %184 = vset.pattern.permute.xlu0 0
        %185 = vperm.xlu0 %184, %v126
        %v186 = vpop.permute.xlu0 %185
        %189 = vset.pattern.permute.xlu0 0
        %190 = vperm.xlu0 %189, %v127
        %v191 = vpop.permute.xlu0 %190
        %194 = vset.pattern.permute.xlu0 0
        %195 = vperm.xlu0 %194, %v128
        %v196 = vpop.permute.xlu0 %195
        %199 = vset.pattern.permute.xlu0 0
        %200 = vperm.xlu0 %199, %v129
        %v201 = vpop.permute.xlu0 %200
        %204 = vset.pattern.permute.xlu0 0
        %205 = vperm.xlu0 %204, %v130
        %v206 = vpop.permute.xlu0 %205
        %209 = vset.pattern.permute.xlu0 0
        %210 = vperm.xlu0 %209, %v131
        %v211 = vpop.permute.xlu0 %210
        %214 = vset.pattern.permute.xlu0 0
        %215 = vperm.xlu0 %214, %v132
        %v216 = vpop.permute.xlu0 %215
        %219 = vset.pattern.permute.xlu0 0
        %220 = vperm.xlu0 %219, %v133
        %v221 = vpop.permute.xlu0 %220
        %v223 = vmul.f32 %v146, %v142
        %v224 = vmul.f32 %v151, %v142
        %v225 = vmul.f32 %v156, %v142
        %v226 = vmul.f32 %v161, %v142
        %v227 = vmul.f32 %v166, %v142
        %v228 = vmul.f32 %v171, %v142
        %v229 = vmul.f32 %v176, %v142
        %v230 = vmul.f32 %v181, %v142
        %v231 = vmul.f32 %v186, %v142
        %v232 = vmul.f32 %v191, %v142
        %v233 = vmul.f32 %v196, %v142
        %v234 = vmul.f32 %v201, %v142
        %v235 = vmul.f32 %v206, %v142
        %v236 = vmul.f32 %v211, %v142
        %v237 = vmul.f32 %v216, %v142
        %v238 = vmul.f32 %v221, %v142
        %v239 = vand.u32 2147483647, %v223
        %vm240 = vcmp.le.f32.partialorder %v239, 0.7853982
        %vm241 = vcmp.lt.s32.totalorder %v223, 0
        %v242 = vand.u32 %v223, 2139095040
        %v243 = vshrl.u32 %v242, 23
        %v244 = vsub.s32 %v243, 127
        %v245 = vand.u32 2147483647, %v223
        %v246 = vand.u32 %v245, 8388607
        %v247 = vor.u32 %v246, 8388608
        %v248 = vsub.s32 0, %v247
        %v249 = vadd.s32 %v244, 1
        %vm250 = vcmp.gt.s32.totalorder %v249, 0
        %v251 = vsel %vm250, %v249, 0
        %v252 = vshrl.u32 %v251, 5
        %v253 = vand.u32 %v251, 31
        %v254 = vsub.s32 32, %v253
        %v255 = vshrl.u32 683565275, %v254
        %v256 = vshll.u32 683565275, %v253
        %v257 = vshrl.u32 2475754826, %v254
        %v258 = vor.u32 %v256, %v257
        %v259 = vshll.u32 2475754826, %v253
        %v260 = vshrl.u32 2131351028, %v254
        %v261 = vor.u32 %v259, %v260
        %v262 = vshll.u32 2131351028, %v253
        %v263 = vshrl.u32 2102212464, %v254
        %v264 = vor.u32 %v262, %v263
        %v265 = vshll.u32 2102212464, %v253
        %v266 = vshrl.u32 920167782, %v254
        %v267 = vor.u32 %v265, %v266
        %v268 = vshll.u32 920167782, %v253
        %v269 = vshrl.u32 1326507024, %v254
        %v270 = vor.u32 %v268, %v269
        %vm271 = vcmp.lt.s32.totalorder %v252, 1
        %vm272 = vcmp.lt.s32.totalorder %v252, 2
        %vm273 = vcmp.lt.s32.totalorder %v252, 3
        %vm274 = vcmp.lt.s32.totalorder %v252, 4
        %v275 = vsel %vm271, %v255, %v258
        %v276 = vsel %vm274, %v264, 2102212464
        %v277 = vsel %vm273, %v261, %v276
        %v278 = vsel %vm272, %v275, %v277
        %v279 = vsel %vm271, %v258, %v261
        %v280 = vsel %vm274, %v267, 920167782
        %v281 = vsel %vm273, %v264, %v280
        %v282 = vsel %vm272, %v279, %v281
        %v283 = vsel %vm271, %v261, %v264
        %v284 = vsel %vm274, %v270, 1326507024
        %v285 = vsel %vm273, %v267, %v284
        %v286 = vsel %vm272, %v283, %v285
        %v287 = vshll.u32 %v247, 8
        %v288 = vmul.u32.u64.compose %v287, %v286
        %v289 = vextract.low.u32 %v288
        %v290 = vextract.high.u32 %v288
        %v291 = vmul.u32.u64.compose %v287, %v282
        %v292 = vextract.low.u32 %v291
        %v293 = vextract.high.u32 %v291
        %v294 = vmul.u32 %v287, %v278
        %v295 = vadd.s32 %v290, %v292
        %vm296 = vc.u32 %v290, %v292
        %v297 = vadd.s32 %v293, 1
        %v298 = vsel %vm296, %v297, %v293
        %v299 = vadd.s32 %v294, %v298
        %v300 = vadd.s32 %v299, 536870912
        %v301 = vshrl.u32 %v300, 30
        %v302 = vshll.u32 %v301, 30
        %v303 = vsub.s32 %v299, %v302
        %vm304 = vcmp.lt.s32.totalorder %v303, 0
        %v305 = vsub.s32 0, %v303
        %v306 = vsel %vm304, %v305, %v303
        %v307 = vclz %v306
        %v308 = vsub.s32 %v307, 2
        %vm309 = vcmp.gt.s32.totalorder 0, %v308
        %v310 = vsel %vm309, 0, %v308
        %v311 = vsub.s32 32, %v310
        %v312 = vshll.u32 %v303, %v310
        %v313 = vshrl.u32 %v295, %v311
        %v314 = vor.u32 %v312, %v313
        %v315 = vsub.s32 4294967266, %v310
        %v316 = vadd.s32 %v315, 127
        %v317 = vshll.u32 %v316, 23
        %v318 = vor.u32 4788187, %v317
        %v319 = vand.u32 2147483647, %v318
        %v321 = vcvt.s32.f32 %v314
        %v322 = vmul.f32 %v321, %v319
        %v323 = vxor.u32 %v322, 2147483648
        %v324 = vsel %vm241, %v323, %v322
        %v325 = vsub.s32 4, %v301
        %v326 = vsel %vm241, %v325, %v301
        %v327 = vsel %vm240, %v223, %v324
        %v328 = vsel %vm240, 0, %v326
        %v329 = vcosq.f32.pop %v327
        %v330 = vsinq.f32.pop %v327
        %vm331 = vweird.f32 %v223
        %v332 = vadd.s32 %v328, 3
        %v333 = vand.u32 %v332, 3
        %vm334 = vcmp.lt.s32.totalorder %v333, 2
        %vm335 = vcmp.eq.s32.totalorder %v333, 0
        %v336 = vxor.u32 %v330, 2147483648
        %v337 = vsel %vm335, %v329, %v336
        %vm338 = vcmp.eq.s32.totalorder %v333, 2
        %v339 = vxor.u32 %v329, 2147483648
        %v340 = vsel %vm338, %v339, %v330
        %v341 = vsel %vm334, %v337, %v340
        %v342 = vsel %vm331, nan, %v341
        %v343 = vand.u32 2147483647, %v224
        %vm344 = vcmp.le.f32.partialorder %v343, 0.7853982
        %vm345 = vcmp.lt.s32.totalorder %v224, 0
        %v346 = vand.u32 %v224, 2139095040
        %v347 = vshrl.u32 %v346, 23
        %v348 = vsub.s32 %v347, 127
        %v349 = vand.u32 2147483647, %v224
        %v350 = vand.u32 %v349, 8388607
        %v351 = vor.u32 %v350, 8388608
        %v352 = vsub.s32 0, %v351
        %v353 = vadd.s32 %v348, 1
        %vm354 = vcmp.gt.s32.totalorder %v353, 0
        %v355 = vsel %vm354, %v353, 0
        %v356 = vshrl.u32 %v355, 5
        %v357 = vand.u32 %v355, 31
        %v358 = vsub.s32 32, %v357
        %v359 = vshrl.u32 683565275, %v358
        %v360 = vshll.u32 683565275, %v357
        %v361 = vshrl.u32 2475754826, %v358
        %v362 = vor.u32 %v360, %v361
        %v363 = vshll.u32 2475754826, %v357
        %v364 = vshrl.u32 2131351028, %v358
        %v365 = vor.u32 %v363, %v364
        %v366 = vshll.u32 2131351028, %v357
        %v367 = vshrl.u32 2102212464, %v358
        %v368 = vor.u32 %v366, %v367
        %v369 = vshll.u32 2102212464, %v357
        %v370 = vshrl.u32 920167782, %v358
        %v371 = vor.u32 %v369, %v370
        %v372 = vshll.u32 920167782, %v357
        %v373 = vshrl.u32 1326507024, %v358
        %v374 = vor.u32 %v372, %v373
        %vm375 = vcmp.lt.s32.totalorder %v356, 1
        %vm376 = vcmp.lt.s32.totalorder %v356, 2
        %vm377 = vcmp.lt.s32.totalorder %v356, 3
        %vm378 = vcmp.lt.s32.totalorder %v356, 4
        %v379 = vsel %vm375, %v359, %v362
        %v380 = vsel %vm378, %v368, 2102212464
        %v381 = vsel %vm377, %v365, %v380
        %v382 = vsel %vm376, %v379, %v381
        %v383 = vsel %vm375, %v362, %v365
        %v384 = vsel %vm378, %v371, 920167782
        %v385 = vsel %vm377, %v368, %v384
        %v386 = vsel %vm376, %v383, %v385
        %v387 = vsel %vm375, %v365, %v368
        %v388 = vsel %vm378, %v374, 1326507024
        %v389 = vsel %vm377, %v371, %v388
        %v390 = vsel %vm376, %v387, %v389
        %v391 = vshll.u32 %v351, 8
        %v392 = vmul.u32.u64.compose %v391, %v390
        %v393 = vextract.low.u32 %v392
        %v394 = vextract.high.u32 %v392
        %v395 = vmul.u32.u64.compose %v391, %v386
        %v396 = vextract.low.u32 %v395
        %v397 = vextract.high.u32 %v395
        %v398 = vmul.u32 %v391, %v382
        %v399 = vadd.s32 %v394, %v396
        %vm400 = vc.u32 %v394, %v396
        %v401 = vadd.s32 %v397, 1
        %v402 = vsel %vm400, %v401, %v397
        %v403 = vadd.s32 %v398, %v402
        %v404 = vadd.s32 %v403, 536870912
        %v405 = vshrl.u32 %v404, 30
        %v406 = vshll.u32 %v405, 30
        %v407 = vsub.s32 %v403, %v406
        %vm408 = vcmp.lt.s32.totalorder %v407, 0
        %v409 = vsub.s32 0, %v407
        %v410 = vsel %vm408, %v409, %v407
        %v411 = vclz %v410
        %v412 = vsub.s32 %v411, 2
        %vm413 = vcmp.gt.s32.totalorder 0, %v412
        %v414 = vsel %vm413, 0, %v412
        %v415 = vsub.s32 32, %v414
        %v416 = vshll.u32 %v407, %v414
        %v417 = vshrl.u32 %v399, %v415
        %v418 = vor.u32 %v416, %v417
        %v419 = vsub.s32 4294967266, %v414
        %v420 = vadd.s32 %v419, 127
        %v421 = vshll.u32 %v420, 23
        %v422 = vor.u32 4788187, %v421
        %v423 = vand.u32 2147483647, %v422
        %v425 = vcvt.s32.f32 %v418
        %v426 = vmul.f32 %v425, %v423
        %v427 = vxor.u32 %v426, 2147483648
        %v428 = vsel %vm345, %v427, %v426
        %v429 = vsub.s32 4, %v405
        %v430 = vsel %vm345, %v429, %v405
        %v431 = vsel %vm344, %v224, %v428
        %v432 = vsel %vm344, 0, %v430
        %v433 = vcosq.f32.pop %v431
        %v434 = vsinq.f32.pop %v431
        %vm435 = vweird.f32 %v224
        %v436 = vadd.s32 %v432, 3
        %v437 = vand.u32 %v436, 3
        %vm438 = vcmp.lt.s32.totalorder %v437, 2
        %vm439 = vcmp.eq.s32.totalorder %v437, 0
        %v440 = vxor.u32 %v434, 2147483648
        %v441 = vsel %vm439, %v433, %v440
        %vm442 = vcmp.eq.s32.totalorder %v437, 2
        %v443 = vxor.u32 %v433, 2147483648
        %v444 = vsel %vm442, %v443, %v434
        %v445 = vsel %vm438, %v441, %v444
        %v446 = vsel %vm435, nan, %v445
        %v447 = vand.u32 2147483647, %v225
        %vm448 = vcmp.le.f32.partialorder %v447, 0.7853982
        %vm449 = vcmp.lt.s32.totalorder %v225, 0
        %v450 = vand.u32 %v225, 2139095040
        %v451 = vshrl.u32 %v450, 23
        %v452 = vsub.s32 %v451, 127
        %v453 = vand.u32 2147483647, %v225
        %v454 = vand.u32 %v453, 8388607
        %v455 = vor.u32 %v454, 8388608
        %v456 = vsub.s32 0, %v455
        %v457 = vadd.s32 %v452, 1
        %vm458 = vcmp.gt.s32.totalorder %v457, 0
        %v459 = vsel %vm458, %v457, 0
        %v460 = vshrl.u32 %v459, 5
        %v461 = vand.u32 %v459, 31
        %v462 = vsub.s32 32, %v461
        %v463 = vshrl.u32 683565275, %v462
        %v464 = vshll.u32 683565275, %v461
        %v465 = vshrl.u32 2475754826, %v462
        %v466 = vor.u32 %v464, %v465
        %v467 = vshll.u32 2475754826, %v461
        %v468 = vshrl.u32 2131351028, %v462
        %v469 = vor.u32 %v467, %v468
        %v470 = vshll.u32 2131351028, %v461
        %v471 = vshrl.u32 2102212464, %v462
        %v472 = vor.u32 %v470, %v471
        %v473 = vshll.u32 2102212464, %v461
        %v474 = vshrl.u32 920167782, %v462
        %v475 = vor.u32 %v473, %v474
        %v476 = vshll.u32 920167782, %v461
        %v477 = vshrl.u32 1326507024, %v462
        %v478 = vor.u32 %v476, %v477
        %vm479 = vcmp.lt.s32.totalorder %v460, 1
        %vm480 = vcmp.lt.s32.totalorder %v460, 2
        %vm481 = vcmp.lt.s32.totalorder %v460, 3
        %vm482 = vcmp.lt.s32.totalorder %v460, 4
        %v483 = vsel %vm479, %v463, %v466
        %v484 = vsel %vm482, %v472, 2102212464
        %v485 = vsel %vm481, %v469, %v484
        %v486 = vsel %vm480, %v483, %v485
        %v487 = vsel %vm479, %v466, %v469
        %v488 = vsel %vm482, %v475, 920167782
        %v489 = vsel %vm481, %v472, %v488
        %v490 = vsel %vm480, %v487, %v489
        %v491 = vsel %vm479, %v469, %v472
        %v492 = vsel %vm482, %v478, 1326507024
        %v493 = vsel %vm481, %v475, %v492
        %v494 = vsel %vm480, %v491, %v493
        %v495 = vshll.u32 %v455, 8
        %v496 = vmul.u32.u64.compose %v495, %v494
        %v497 = vextract.low.u32 %v496
        %v498 = vextract.high.u32 %v496
        %v499 = vmul.u32.u64.compose %v495, %v490
        %v500 = vextract.low.u32 %v499
        %v501 = vextract.high.u32 %v499
        %v502 = vmul.u32 %v495, %v486
        %v503 = vadd.s32 %v498, %v500
        %vm504 = vc.u32 %v498, %v500
        %v505 = vadd.s32 %v501, 1
        %v506 = vsel %vm504, %v505, %v501
        %v507 = vadd.s32 %v502, %v506
        %v508 = vadd.s32 %v507, 536870912
        %v509 = vshrl.u32 %v508, 30
        %v510 = vshll.u32 %v509, 30
        %v511 = vsub.s32 %v507, %v510
        %vm512 = vcmp.lt.s32.totalorder %v511, 0
        %v513 = vsub.s32 0, %v511
        %v514 = vsel %vm512, %v513, %v511
        %v515 = vclz %v514
        %v516 = vsub.s32 %v515, 2
        %vm517 = vcmp.gt.s32.totalorder 0, %v516
        %v518 = vsel %vm517, 0, %v516
        %v519 = vsub.s32 32, %v518
        %v520 = vshll.u32 %v511, %v518
        %v521 = vshrl.u32 %v503, %v519
        %v522 = vor.u32 %v520, %v521
        %v523 = vsub.s32 4294967266, %v518
        %v524 = vadd.s32 %v523, 127
        %v525 = vshll.u32 %v524, 23
        %v526 = vor.u32 4788187, %v525
        %v527 = vand.u32 2147483647, %v526
        %v529 = vcvt.s32.f32 %v522
        %v530 = vmul.f32 %v529, %v527
        %v531 = vxor.u32 %v530, 2147483648
        %v532 = vsel %vm449, %v531, %v530
        %v533 = vsub.s32 4, %v509
        %v534 = vsel %vm449, %v533, %v509
        %v535 = vsel %vm448, %v225, %v532
        %v536 = vsel %vm448, 0, %v534
        %v537 = vcosq.f32.pop %v535
        %v538 = vsinq.f32.pop %v535
        %vm539 = vweird.f32 %v225
        %v540 = vadd.s32 %v536, 3
        %v541 = vand.u32 %v540, 3
        %vm542 = vcmp.lt.s32.totalorder %v541, 2
        %vm543 = vcmp.eq.s32.totalorder %v541, 0
        %v544 = vxor.u32 %v538, 2147483648
        %v545 = vsel %vm543, %v537, %v544
        %vm546 = vcmp.eq.s32.totalorder %v541, 2
        %v547 = vxor.u32 %v537, 2147483648
        %v548 = vsel %vm546, %v547, %v538
        %v549 = vsel %vm542, %v545, %v548
        %v550 = vsel %vm539, nan, %v549
        %v551 = vand.u32 2147483647, %v226
        %vm552 = vcmp.le.f32.partialorder %v551, 0.7853982
        %vm553 = vcmp.lt.s32.totalorder %v226, 0
        %v554 = vand.u32 %v226, 2139095040
        %v555 = vshrl.u32 %v554, 23
        %v556 = vsub.s32 %v555, 127
        %v557 = vand.u32 2147483647, %v226
        %v558 = vand.u32 %v557, 8388607
        %v559 = vor.u32 %v558, 8388608
        %v560 = vsub.s32 0, %v559
        %v561 = vadd.s32 %v556, 1
        %vm562 = vcmp.gt.s32.totalorder %v561, 0
        %v563 = vsel %vm562, %v561, 0
        %v564 = vshrl.u32 %v563, 5
        %v565 = vand.u32 %v563, 31
        %v566 = vsub.s32 32, %v565
        %v567 = vshrl.u32 683565275, %v566
        %v568 = vshll.u32 683565275, %v565
        %v569 = vshrl.u32 2475754826, %v566
        %v570 = vor.u32 %v568, %v569
        %v571 = vshll.u32 2475754826, %v565
        %v572 = vshrl.u32 2131351028, %v566
        %v573 = vor.u32 %v571, %v572
        %v574 = vshll.u32 2131351028, %v565
        %v575 = vshrl.u32 2102212464, %v566
        %v576 = vor.u32 %v574, %v575
        %v577 = vshll.u32 2102212464, %v565
        %v578 = vshrl.u32 920167782, %v566
        %v579 = vor.u32 %v577, %v578
        %v580 = vshll.u32 920167782, %v565
        %v581 = vshrl.u32 1326507024, %v566
        %v582 = vor.u32 %v580, %v581
        %vm583 = vcmp.lt.s32.totalorder %v564, 1
        %vm584 = vcmp.lt.s32.totalorder %v564, 2
        %vm585 = vcmp.lt.s32.totalorder %v564, 3
        %vm586 = vcmp.lt.s32.totalorder %v564, 4
        %v587 = vsel %vm583, %v567, %v570
        %v588 = vsel %vm586, %v576, 2102212464
        %v589 = vsel %vm585, %v573, %v588
        %v590 = vsel %vm584, %v587, %v589
        %v591 = vsel %vm583, %v570, %v573
        %v592 = vsel %vm586, %v579, 920167782
        %v593 = vsel %vm585, %v576, %v592
        %v594 = vsel %vm584, %v591, %v593
        %v595 = vsel %vm583, %v573, %v576
        %v596 = vsel %vm586, %v582, 1326507024
        %v597 = vsel %vm585, %v579, %v596
        %v598 = vsel %vm584, %v595, %v597
        %v599 = vshll.u32 %v559, 8
        %v600 = vmul.u32.u64.compose %v599, %v598
        %v601 = vextract.low.u32 %v600
        %v602 = vextract.high.u32 %v600
        %v603 = vmul.u32.u64.compose %v599, %v594
        %v604 = vextract.low.u32 %v603
        %v605 = vextract.high.u32 %v603
        %v606 = vmul.u32 %v599, %v590
        %v607 = vadd.s32 %v602, %v604
        %vm608 = vc.u32 %v602, %v604
        %v609 = vadd.s32 %v605, 1
        %v610 = vsel %vm608, %v609, %v605
        %v611 = vadd.s32 %v606, %v610
        %v612 = vadd.s32 %v611, 536870912
        %v613 = vshrl.u32 %v612, 30
        %v614 = vshll.u32 %v613, 30
        %v615 = vsub.s32 %v611, %v614
        %vm616 = vcmp.lt.s32.totalorder %v615, 0
        %v617 = vsub.s32 0, %v615
        %v618 = vsel %vm616, %v617, %v615
        %v619 = vclz %v618
        %v620 = vsub.s32 %v619, 2
        %vm621 = vcmp.gt.s32.totalorder 0, %v620
        %v622 = vsel %vm621, 0, %v620
        %v623 = vsub.s32 32, %v622
        %v624 = vshll.u32 %v615, %v622
        %v625 = vshrl.u32 %v607, %v623
        %v626 = vor.u32 %v624, %v625
        %v627 = vsub.s32 4294967266, %v622
        %v628 = vadd.s32 %v627, 127
        %v629 = vshll.u32 %v628, 23
        %v630 = vor.u32 4788187, %v629
        %v631 = vand.u32 2147483647, %v630
        %v633 = vcvt.s32.f32 %v626
        %v634 = vmul.f32 %v633, %v631
        %v635 = vxor.u32 %v634, 2147483648
        %v636 = vsel %vm553, %v635, %v634
        %v637 = vsub.s32 4, %v613
        %v638 = vsel %vm553, %v637, %v613
        %v639 = vsel %vm552, %v226, %v636
        %v640 = vsel %vm552, 0, %v638
        %v641 = vcosq.f32.pop %v639
        %v642 = vsinq.f32.pop %v639
        %vm643 = vweird.f32 %v226
        %v644 = vadd.s32 %v640, 3
        %v645 = vand.u32 %v644, 3
        %vm646 = vcmp.lt.s32.totalorder %v645, 2
        %vm647 = vcmp.eq.s32.totalorder %v645, 0
        %v648 = vxor.u32 %v642, 2147483648
        %v649 = vsel %vm647, %v641, %v648
        %vm650 = vcmp.eq.s32.totalorder %v645, 2
        %v651 = vxor.u32 %v641, 2147483648
        %v652 = vsel %vm650, %v651, %v642
        %v653 = vsel %vm646, %v649, %v652
        %v654 = vsel %vm643, nan, %v653
        %v655 = vand.u32 2147483647, %v227
        %vm656 = vcmp.le.f32.partialorder %v655, 0.7853982
        %vm657 = vcmp.lt.s32.totalorder %v227, 0
        %v658 = vand.u32 %v227, 2139095040
        %v659 = vshrl.u32 %v658, 23
        %v660 = vsub.s32 %v659, 127
        %v661 = vand.u32 2147483647, %v227
        %v662 = vand.u32 %v661, 8388607
        %v663 = vor.u32 %v662, 8388608
        %v664 = vsub.s32 0, %v663
        %v665 = vadd.s32 %v660, 1
        %vm666 = vcmp.gt.s32.totalorder %v665, 0
        %v667 = vsel %vm666, %v665, 0
        %v668 = vshrl.u32 %v667, 5
        %v669 = vand.u32 %v667, 31
        %v670 = vsub.s32 32, %v669
        %v671 = vshrl.u32 683565275, %v670
        %v672 = vshll.u32 683565275, %v669
        %v673 = vshrl.u32 2475754826, %v670
        %v674 = vor.u32 %v672, %v673
        %v675 = vshll.u32 2475754826, %v669
        %v676 = vshrl.u32 2131351028, %v670
        %v677 = vor.u32 %v675, %v676
        %v678 = vshll.u32 2131351028, %v669
        %v679 = vshrl.u32 2102212464, %v670
        %v680 = vor.u32 %v678, %v679
        %v681 = vshll.u32 2102212464, %v669
        %v682 = vshrl.u32 920167782, %v670
        %v683 = vor.u32 %v681, %v682
        %v684 = vshll.u32 920167782, %v669
        %v685 = vshrl.u32 1326507024, %v670
        %v686 = vor.u32 %v684, %v685
        %vm687 = vcmp.lt.s32.totalorder %v668, 1
        %vm688 = vcmp.lt.s32.totalorder %v668, 2
        %vm689 = vcmp.lt.s32.totalorder %v668, 3
        %vm690 = vcmp.lt.s32.totalorder %v668, 4
        %v691 = vsel %vm687, %v671, %v674
        %v692 = vsel %vm690, %v680, 2102212464
        %v693 = vsel %vm689, %v677, %v692
        %v694 = vsel %vm688, %v691, %v693
        %v695 = vsel %vm687, %v674, %v677
        %v696 = vsel %vm690, %v683, 920167782
        %v697 = vsel %vm689, %v680, %v696
        %v698 = vsel %vm688, %v695, %v697
        %v699 = vsel %vm687, %v677, %v680
        %v700 = vsel %vm690, %v686, 1326507024
        %v701 = vsel %vm689, %v683, %v700
        %v702 = vsel %vm688, %v699, %v701
        %v703 = vshll.u32 %v663, 8
        %v704 = vmul.u32.u64.compose %v703, %v702
        %v705 = vextract.low.u32 %v704
        %v706 = vextract.high.u32 %v704
        %v707 = vmul.u32.u64.compose %v703, %v698
        %v708 = vextract.low.u32 %v707
        %v709 = vextract.high.u32 %v707
        %v710 = vmul.u32 %v703, %v694
        %v711 = vadd.s32 %v706, %v708
        %vm712 = vc.u32 %v706, %v708
        %v713 = vadd.s32 %v709, 1
        %v714 = vsel %vm712, %v713, %v709
        %v715 = vadd.s32 %v710, %v714
        %v716 = vadd.s32 %v715, 536870912
        %v717 = vshrl.u32 %v716, 30
        %v718 = vshll.u32 %v717, 30
        %v719 = vsub.s32 %v715, %v718
        %vm720 = vcmp.lt.s32.totalorder %v719, 0
        %v721 = vsub.s32 0, %v719
        %v722 = vsel %vm720, %v721, %v719
        %v723 = vclz %v722
        %v724 = vsub.s32 %v723, 2
        %vm725 = vcmp.gt.s32.totalorder 0, %v724
        %v726 = vsel %vm725, 0, %v724
        %v727 = vsub.s32 32, %v726
        %v728 = vshll.u32 %v719, %v726
        %v729 = vshrl.u32 %v711, %v727
        %v730 = vor.u32 %v728, %v729
        %v731 = vsub.s32 4294967266, %v726
        %v732 = vadd.s32 %v731, 127
        %v733 = vshll.u32 %v732, 23
        %v734 = vor.u32 4788187, %v733
        %v735 = vand.u32 2147483647, %v734
        %v737 = vcvt.s32.f32 %v730
        %v738 = vmul.f32 %v737, %v735
        %v739 = vxor.u32 %v738, 2147483648
        %v740 = vsel %vm657, %v739, %v738
        %v741 = vsub.s32 4, %v717
        %v742 = vsel %vm657, %v741, %v717
        %v743 = vsel %vm656, %v227, %v740
        %v744 = vsel %vm656, 0, %v742
        %v745 = vcosq.f32.pop %v743
        %v746 = vsinq.f32.pop %v743
        %vm747 = vweird.f32 %v227
        %v748 = vadd.s32 %v744, 3
        %v749 = vand.u32 %v748, 3
        %vm750 = vcmp.lt.s32.totalorder %v749, 2
        %vm751 = vcmp.eq.s32.totalorder %v749, 0
        %v752 = vxor.u32 %v746, 2147483648
        %v753 = vsel %vm751, %v745, %v752
        %vm754 = vcmp.eq.s32.totalorder %v749, 2
        %v755 = vxor.u32 %v745, 2147483648
        %v756 = vsel %vm754, %v755, %v746
        %v757 = vsel %vm750, %v753, %v756
        %v758 = vsel %vm747, nan, %v757
        %v759 = vand.u32 2147483647, %v228
        %vm760 = vcmp.le.f32.partialorder %v759, 0.7853982
        %vm761 = vcmp.lt.s32.totalorder %v228, 0
        %v762 = vand.u32 %v228, 2139095040
        %v763 = vshrl.u32 %v762, 23
        %v764 = vsub.s32 %v763, 127
        %v765 = vand.u32 2147483647, %v228
        %v766 = vand.u32 %v765, 8388607
        %v767 = vor.u32 %v766, 8388608
        %v768 = vsub.s32 0, %v767
        %v769 = vadd.s32 %v764, 1
        %vm770 = vcmp.gt.s32.totalorder %v769, 0
        %v771 = vsel %vm770, %v769, 0
        %v772 = vshrl.u32 %v771, 5
        %v773 = vand.u32 %v771, 31
        %v774 = vsub.s32 32, %v773
        %v775 = vshrl.u32 683565275, %v774
        %v776 = vshll.u32 683565275, %v773
        %v777 = vshrl.u32 2475754826, %v774
        %v778 = vor.u32 %v776, %v777
        %v779 = vshll.u32 2475754826, %v773
        %v780 = vshrl.u32 2131351028, %v774
        %v781 = vor.u32 %v779, %v780
        %v782 = vshll.u32 2131351028, %v773
        %v783 = vshrl.u32 2102212464, %v774
        %v784 = vor.u32 %v782, %v783
        %v785 = vshll.u32 2102212464, %v773
        %v786 = vshrl.u32 920167782, %v774
        %v787 = vor.u32 %v785, %v786
        %v788 = vshll.u32 920167782, %v773
        %v789 = vshrl.u32 1326507024, %v774
        %v790 = vor.u32 %v788, %v789
        %vm791 = vcmp.lt.s32.totalorder %v772, 1
        %vm792 = vcmp.lt.s32.totalorder %v772, 2
        %vm793 = vcmp.lt.s32.totalorder %v772, 3
        %vm794 = vcmp.lt.s32.totalorder %v772, 4
        %v795 = vsel %vm791, %v775, %v778
        %v796 = vsel %vm794, %v784, 2102212464
        %v797 = vsel %vm793, %v781, %v796
        %v798 = vsel %vm792, %v795, %v797
        %v799 = vsel %vm791, %v778, %v781
        %v800 = vsel %vm794, %v787, 920167782
        %v801 = vsel %vm793, %v784, %v800
        %v802 = vsel %vm792, %v799, %v801
        %v803 = vsel %vm791, %v781, %v784
        %v804 = vsel %vm794, %v790, 1326507024
        %v805 = vsel %vm793, %v787, %v804
        %v806 = vsel %vm792, %v803, %v805
        %v807 = vshll.u32 %v767, 8
        %v808 = vmul.u32.u64.compose %v807, %v806
        %v809 = vextract.low.u32 %v808
        %v810 = vextract.high.u32 %v808
        %v811 = vmul.u32.u64.compose %v807, %v802
        %v812 = vextract.low.u32 %v811
        %v813 = vextract.high.u32 %v811
        %v814 = vmul.u32 %v807, %v798
        %v815 = vadd.s32 %v810, %v812
        %vm816 = vc.u32 %v810, %v812
        %v817 = vadd.s32 %v813, 1
        %v818 = vsel %vm816, %v817, %v813
        %v819 = vadd.s32 %v814, %v818
        %v820 = vadd.s32 %v819, 536870912
        %v821 = vshrl.u32 %v820, 30
        %v822 = vshll.u32 %v821, 30
        %v823 = vsub.s32 %v819, %v822
        %vm824 = vcmp.lt.s32.totalorder %v823, 0
        %v825 = vsub.s32 0, %v823
        %v826 = vsel %vm824, %v825, %v823
        %v827 = vclz %v826
        %v828 = vsub.s32 %v827, 2
        %vm829 = vcmp.gt.s32.totalorder 0, %v828
        %v830 = vsel %vm829, 0, %v828
        %v831 = vsub.s32 32, %v830
        %v832 = vshll.u32 %v823, %v830
        %v833 = vshrl.u32 %v815, %v831
        %v834 = vor.u32 %v832, %v833
        %v835 = vsub.s32 4294967266, %v830
        %v836 = vadd.s32 %v835, 127
        %v837 = vshll.u32 %v836, 23
        %v838 = vor.u32 4788187, %v837
        %v839 = vand.u32 2147483647, %v838
        %v841 = vcvt.s32.f32 %v834
        %v842 = vmul.f32 %v841, %v839
        %v843 = vxor.u32 %v842, 2147483648
        %v844 = vsel %vm761, %v843, %v842
        %v845 = vsub.s32 4, %v821
        %v846 = vsel %vm761, %v845, %v821
        %v847 = vsel %vm760, %v228, %v844
        %v848 = vsel %vm760, 0, %v846
        %v849 = vcosq.f32.pop %v847
        %v850 = vsinq.f32.pop %v847
        %vm851 = vweird.f32 %v228
        %v852 = vadd.s32 %v848, 3
        %v853 = vand.u32 %v852, 3
        %vm854 = vcmp.lt.s32.totalorder %v853, 2
        %vm855 = vcmp.eq.s32.totalorder %v853, 0
        %v856 = vxor.u32 %v850, 2147483648
        %v857 = vsel %vm855, %v849, %v856
        %vm858 = vcmp.eq.s32.totalorder %v853, 2
        %v859 = vxor.u32 %v849, 2147483648
        %v860 = vsel %vm858, %v859, %v850
        %v861 = vsel %vm854, %v857, %v860
        %v862 = vsel %vm851, nan, %v861
        %v863 = vand.u32 2147483647, %v229
        %vm864 = vcmp.le.f32.partialorder %v863, 0.7853982
        %vm865 = vcmp.lt.s32.totalorder %v229, 0
        %v866 = vand.u32 %v229, 2139095040
        %v867 = vshrl.u32 %v866, 23
        %v868 = vsub.s32 %v867, 127
        %v869 = vand.u32 2147483647, %v229
        %v870 = vand.u32 %v869, 8388607
        %v871 = vor.u32 %v870, 8388608
        %v872 = vsub.s32 0, %v871
        %v873 = vadd.s32 %v868, 1
        %vm874 = vcmp.gt.s32.totalorder %v873, 0
        %v875 = vsel %vm874, %v873, 0
        %v876 = vshrl.u32 %v875, 5
        %v877 = vand.u32 %v875, 31
        %v878 = vsub.s32 32, %v877
        %v879 = vshrl.u32 683565275, %v878
        %v880 = vshll.u32 683565275, %v877
        %v881 = vshrl.u32 2475754826, %v878
        %v882 = vor.u32 %v880, %v881
        %v883 = vshll.u32 2475754826, %v877
        %v884 = vshrl.u32 2131351028, %v878
        %v885 = vor.u32 %v883, %v884
        %v886 = vshll.u32 2131351028, %v877
        %v887 = vshrl.u32 2102212464, %v878
        %v888 = vor.u32 %v886, %v887
        %v889 = vshll.u32 2102212464, %v877
        %v890 = vshrl.u32 920167782, %v878
        %v891 = vor.u32 %v889, %v890
        %v892 = vshll.u32 920167782, %v877
        %v893 = vshrl.u32 1326507024, %v878
        %v894 = vor.u32 %v892, %v893
        %vm895 = vcmp.lt.s32.totalorder %v876, 1
        %vm896 = vcmp.lt.s32.totalorder %v876, 2
        %vm897 = vcmp.lt.s32.totalorder %v876, 3
        %vm898 = vcmp.lt.s32.totalorder %v876, 4
        %v899 = vsel %vm895, %v879, %v882
        %v900 = vsel %vm898, %v888, 2102212464
        %v901 = vsel %vm897, %v885, %v900
        %v902 = vsel %vm896, %v899, %v901
        %v903 = vsel %vm895, %v882, %v885
        %v904 = vsel %vm898, %v891, 920167782
        %v905 = vsel %vm897, %v888, %v904
        %v906 = vsel %vm896, %v903, %v905
        %v907 = vsel %vm895, %v885, %v888
        %v908 = vsel %vm898, %v894, 1326507024
        %v909 = vsel %vm897, %v891, %v908
        %v910 = vsel %vm896, %v907, %v909
        %v911 = vshll.u32 %v871, 8
        %v912 = vmul.u32.u64.compose %v911, %v910
        %v913 = vextract.low.u32 %v912
        %v914 = vextract.high.u32 %v912
        %v915 = vmul.u32.u64.compose %v911, %v906
        %v916 = vextract.low.u32 %v915
        %v917 = vextract.high.u32 %v915
        %v918 = vmul.u32 %v911, %v902
        %v919 = vadd.s32 %v914, %v916
        %vm920 = vc.u32 %v914, %v916
        %v921 = vadd.s32 %v917, 1
        %v922 = vsel %vm920, %v921, %v917
        %v923 = vadd.s32 %v918, %v922
        %v924 = vadd.s32 %v923, 536870912
        %v925 = vshrl.u32 %v924, 30
        %v926 = vshll.u32 %v925, 30
        %v927 = vsub.s32 %v923, %v926
        %vm928 = vcmp.lt.s32.totalorder %v927, 0
        %v929 = vsub.s32 0, %v927
        %v930 = vsel %vm928, %v929, %v927
        %v931 = vclz %v930
        %v932 = vsub.s32 %v931, 2
        %vm933 = vcmp.gt.s32.totalorder 0, %v932
        %v934 = vsel %vm933, 0, %v932
        %v935 = vsub.s32 32, %v934
        %v936 = vshll.u32 %v927, %v934
        %v937 = vshrl.u32 %v919, %v935
        %v938 = vor.u32 %v936, %v937
        %v939 = vsub.s32 4294967266, %v934
        %v940 = vadd.s32 %v939, 127
        %v941 = vshll.u32 %v940, 23
        %v942 = vor.u32 4788187, %v941
        %v943 = vand.u32 2147483647, %v942
        %v945 = vcvt.s32.f32 %v938
        %v946 = vmul.f32 %v945, %v943
        %v947 = vxor.u32 %v946, 2147483648
        %v948 = vsel %vm865, %v947, %v946
        %v949 = vsub.s32 4, %v925
        %v950 = vsel %vm865, %v949, %v925
        %v951 = vsel %vm864, %v229, %v948
        %v952 = vsel %vm864, 0, %v950
        %v953 = vcosq.f32.pop %v951
        %v954 = vsinq.f32.pop %v951
        %vm955 = vweird.f32 %v229
        %v956 = vadd.s32 %v952, 3
        %v957 = vand.u32 %v956, 3
        %vm958 = vcmp.lt.s32.totalorder %v957, 2
        %vm959 = vcmp.eq.s32.totalorder %v957, 0
        %v960 = vxor.u32 %v954, 2147483648
        %v961 = vsel %vm959, %v953, %v960
        %vm962 = vcmp.eq.s32.totalorder %v957, 2
        %v963 = vxor.u32 %v953, 2147483648
        %v964 = vsel %vm962, %v963, %v954
        %v965 = vsel %vm958, %v961, %v964
        %v966 = vsel %vm955, nan, %v965
        %v967 = vand.u32 2147483647, %v230
        %vm968 = vcmp.le.f32.partialorder %v967, 0.7853982
        %vm969 = vcmp.lt.s32.totalorder %v230, 0
        %v970 = vand.u32 %v230, 2139095040
        %v971 = vshrl.u32 %v970, 23
        %v972 = vsub.s32 %v971, 127
        %v973 = vand.u32 2147483647, %v230
        %v974 = vand.u32 %v973, 8388607
        %v975 = vor.u32 %v974, 8388608
        %v976 = vsub.s32 0, %v975
        %v977 = vadd.s32 %v972, 1
        %vm978 = vcmp.gt.s32.totalorder %v977, 0
        %v979 = vsel %vm978, %v977, 0
        %v980 = vshrl.u32 %v979, 5
        %v981 = vand.u32 %v979, 31
        %v982 = vsub.s32 32, %v981
        %v983 = vshrl.u32 683565275, %v982
        %v984 = vshll.u32 683565275, %v981
        %v985 = vshrl.u32 2475754826, %v982
        %v986 = vor.u32 %v984, %v985
        %v987 = vshll.u32 2475754826, %v981
        %v988 = vshrl.u32 2131351028, %v982
        %v989 = vor.u32 %v987, %v988
        %v990 = vshll.u32 2131351028, %v981
        %v991 = vshrl.u32 2102212464, %v982
        %v992 = vor.u32 %v990, %v991
        %v993 = vshll.u32 2102212464, %v981
        %v994 = vshrl.u32 920167782, %v982
        %v995 = vor.u32 %v993, %v994
        %v996 = vshll.u32 920167782, %v981
        %v997 = vshrl.u32 1326507024, %v982
        %v998 = vor.u32 %v996, %v997
        %vm999 = vcmp.lt.s32.totalorder %v980, 1
        %vm1000 = vcmp.lt.s32.totalorder %v980, 2
        %vm1001 = vcmp.lt.s32.totalorder %v980, 3
        %vm1002 = vcmp.lt.s32.totalorder %v980, 4
        %v1003 = vsel %vm999, %v983, %v986
        %v1004 = vsel %vm1002, %v992, 2102212464
        %v1005 = vsel %vm1001, %v989, %v1004
        %v1006 = vsel %vm1000, %v1003, %v1005
        %v1007 = vsel %vm999, %v986, %v989
        %v1008 = vsel %vm1002, %v995, 920167782
        %v1009 = vsel %vm1001, %v992, %v1008
        %v1010 = vsel %vm1000, %v1007, %v1009
        %v1011 = vsel %vm999, %v989, %v992
        %v1012 = vsel %vm1002, %v998, 1326507024
        %v1013 = vsel %vm1001, %v995, %v1012
        %v1014 = vsel %vm1000, %v1011, %v1013
        %v1015 = vshll.u32 %v975, 8
        %v1016 = vmul.u32.u64.compose %v1015, %v1014
        %v1017 = vextract.low.u32 %v1016
        %v1018 = vextract.high.u32 %v1016
        %v1019 = vmul.u32.u64.compose %v1015, %v1010
        %v1020 = vextract.low.u32 %v1019
        %v1021 = vextract.high.u32 %v1019
        %v1022 = vmul.u32 %v1015, %v1006
        %v1023 = vadd.s32 %v1018, %v1020
        %vm1024 = vc.u32 %v1018, %v1020
        %v1025 = vadd.s32 %v1021, 1
        %v1026 = vsel %vm1024, %v1025, %v1021
        %v1027 = vadd.s32 %v1022, %v1026
        %v1028 = vadd.s32 %v1027, 536870912
        %v1029 = vshrl.u32 %v1028, 30
        %v1030 = vshll.u32 %v1029, 30
        %v1031 = vsub.s32 %v1027, %v1030
        %vm1032 = vcmp.lt.s32.totalorder %v1031, 0
        %v1033 = vsub.s32 0, %v1031
        %v1034 = vsel %vm1032, %v1033, %v1031
        %v1035 = vclz %v1034
        %v1036 = vsub.s32 %v1035, 2
        %vm1037 = vcmp.gt.s32.totalorder 0, %v1036
        %v1038 = vsel %vm1037, 0, %v1036
        %v1039 = vsub.s32 32, %v1038
        %v1040 = vshll.u32 %v1031, %v1038
        %v1041 = vshrl.u32 %v1023, %v1039
        %v1042 = vor.u32 %v1040, %v1041
        %v1043 = vsub.s32 4294967266, %v1038
        %v1044 = vadd.s32 %v1043, 127
        %v1045 = vshll.u32 %v1044, 23
        %v1046 = vor.u32 4788187, %v1045
        %v1047 = vand.u32 2147483647, %v1046
        %v1049 = vcvt.s32.f32 %v1042
        %v1050 = vmul.f32 %v1049, %v1047
        %v1051 = vxor.u32 %v1050, 2147483648
        %v1052 = vsel %vm969, %v1051, %v1050
        %v1053 = vsub.s32 4, %v1029
        %v1054 = vsel %vm969, %v1053, %v1029
        %v1055 = vsel %vm968, %v230, %v1052
        %v1056 = vsel %vm968, 0, %v1054
        %v1057 = vcosq.f32.pop %v1055
        %v1058 = vsinq.f32.pop %v1055
        %vm1059 = vweird.f32 %v230
        %v1060 = vadd.s32 %v1056, 3
        %v1061 = vand.u32 %v1060, 3
        %vm1062 = vcmp.lt.s32.totalorder %v1061, 2
        %vm1063 = vcmp.eq.s32.totalorder %v1061, 0
        %v1064 = vxor.u32 %v1058, 2147483648
        %v1065 = vsel %vm1063, %v1057, %v1064
        %vm1066 = vcmp.eq.s32.totalorder %v1061, 2
        %v1067 = vxor.u32 %v1057, 2147483648
        %v1068 = vsel %vm1066, %v1067, %v1058
        %v1069 = vsel %vm1062, %v1065, %v1068
        %v1070 = vsel %vm1059, nan, %v1069
        %v1071 = vand.u32 2147483647, %v231
        %vm1072 = vcmp.le.f32.partialorder %v1071, 0.7853982
        %vm1073 = vcmp.lt.s32.totalorder %v231, 0
        %v1074 = vand.u32 %v231, 2139095040
        %v1075 = vshrl.u32 %v1074, 23
        %v1076 = vsub.s32 %v1075, 127
        %v1077 = vand.u32 2147483647, %v231
        %v1078 = vand.u32 %v1077, 8388607
        %v1079 = vor.u32 %v1078, 8388608
        %v1080 = vsub.s32 0, %v1079
        %v1081 = vadd.s32 %v1076, 1
        %vm1082 = vcmp.gt.s32.totalorder %v1081, 0
        %v1083 = vsel %vm1082, %v1081, 0
        %v1084 = vshrl.u32 %v1083, 5
        %v1085 = vand.u32 %v1083, 31
        %v1086 = vsub.s32 32, %v1085
        %v1087 = vshrl.u32 683565275, %v1086
        %v1088 = vshll.u32 683565275, %v1085
        %v1089 = vshrl.u32 2475754826, %v1086
        %v1090 = vor.u32 %v1088, %v1089
        %v1091 = vshll.u32 2475754826, %v1085
        %v1092 = vshrl.u32 2131351028, %v1086
        %v1093 = vor.u32 %v1091, %v1092
        %v1094 = vshll.u32 2131351028, %v1085
        %v1095 = vshrl.u32 2102212464, %v1086
        %v1096 = vor.u32 %v1094, %v1095
        %v1097 = vshll.u32 2102212464, %v1085
        %v1098 = vshrl.u32 920167782, %v1086
        %v1099 = vor.u32 %v1097, %v1098
        %v1100 = vshll.u32 920167782, %v1085
        %v1101 = vshrl.u32 1326507024, %v1086
        %v1102 = vor.u32 %v1100, %v1101
        %vm1103 = vcmp.lt.s32.totalorder %v1084, 1
        %vm1104 = vcmp.lt.s32.totalorder %v1084, 2
        %vm1105 = vcmp.lt.s32.totalorder %v1084, 3
        %vm1106 = vcmp.lt.s32.totalorder %v1084, 4
        %v1107 = vsel %vm1103, %v1087, %v1090
        %v1108 = vsel %vm1106, %v1096, 2102212464
        %v1109 = vsel %vm1105, %v1093, %v1108
        %v1110 = vsel %vm1104, %v1107, %v1109
        %v1111 = vsel %vm1103, %v1090, %v1093
        %v1112 = vsel %vm1106, %v1099, 920167782
        %v1113 = vsel %vm1105, %v1096, %v1112
        %v1114 = vsel %vm1104, %v1111, %v1113
        %v1115 = vsel %vm1103, %v1093, %v1096
        %v1116 = vsel %vm1106, %v1102, 1326507024
        %v1117 = vsel %vm1105, %v1099, %v1116
        %v1118 = vsel %vm1104, %v1115, %v1117
        %v1119 = vshll.u32 %v1079, 8
        %v1120 = vmul.u32.u64.compose %v1119, %v1118
        %v1121 = vextract.low.u32 %v1120
        %v1122 = vextract.high.u32 %v1120
        %v1123 = vmul.u32.u64.compose %v1119, %v1114
        %v1124 = vextract.low.u32 %v1123
        %v1125 = vextract.high.u32 %v1123
        %v1126 = vmul.u32 %v1119, %v1110
        %v1127 = vadd.s32 %v1122, %v1124
        %vm1128 = vc.u32 %v1122, %v1124
        %v1129 = vadd.s32 %v1125, 1
        %v1130 = vsel %vm1128, %v1129, %v1125
        %v1131 = vadd.s32 %v1126, %v1130
        %v1132 = vadd.s32 %v1131, 536870912
        %v1133 = vshrl.u32 %v1132, 30
        %v1134 = vshll.u32 %v1133, 30
        %v1135 = vsub.s32 %v1131, %v1134
        %vm1136 = vcmp.lt.s32.totalorder %v1135, 0
        %v1137 = vsub.s32 0, %v1135
        %v1138 = vsel %vm1136, %v1137, %v1135
        %v1139 = vclz %v1138
        %v1140 = vsub.s32 %v1139, 2
        %vm1141 = vcmp.gt.s32.totalorder 0, %v1140
        %v1142 = vsel %vm1141, 0, %v1140
        %v1143 = vsub.s32 32, %v1142
        %v1144 = vshll.u32 %v1135, %v1142
        %v1145 = vshrl.u32 %v1127, %v1143
        %v1146 = vor.u32 %v1144, %v1145
        %v1147 = vsub.s32 4294967266, %v1142
        %v1148 = vadd.s32 %v1147, 127
        %v1149 = vshll.u32 %v1148, 23
        %v1150 = vor.u32 4788187, %v1149
        %v1151 = vand.u32 2147483647, %v1150
        %v1153 = vcvt.s32.f32 %v1146
        %v1154 = vmul.f32 %v1153, %v1151
        %v1155 = vxor.u32 %v1154, 2147483648
        %v1156 = vsel %vm1073, %v1155, %v1154
        %v1157 = vsub.s32 4, %v1133
        %v1158 = vsel %vm1073, %v1157, %v1133
        %v1159 = vsel %vm1072, %v231, %v1156
        %v1160 = vsel %vm1072, 0, %v1158
        %v1161 = vcosq.f32.pop %v1159
        %v1162 = vsinq.f32.pop %v1159
        %vm1163 = vweird.f32 %v231
        %v1164 = vadd.s32 %v1160, 3
        %v1165 = vand.u32 %v1164, 3
        %vm1166 = vcmp.lt.s32.totalorder %v1165, 2
        %vm1167 = vcmp.eq.s32.totalorder %v1165, 0
        %v1168 = vxor.u32 %v1162, 2147483648
        %v1169 = vsel %vm1167, %v1161, %v1168
        %vm1170 = vcmp.eq.s32.totalorder %v1165, 2
        %v1171 = vxor.u32 %v1161, 2147483648
        %v1172 = vsel %vm1170, %v1171, %v1162
        %v1173 = vsel %vm1166, %v1169, %v1172
        %v1174 = vsel %vm1163, nan, %v1173
        %v1175 = vand.u32 2147483647, %v232
        %vm1176 = vcmp.le.f32.partialorder %v1175, 0.7853982
        %vm1177 = vcmp.lt.s32.totalorder %v232, 0
        %v1178 = vand.u32 %v232, 2139095040
        %v1179 = vshrl.u32 %v1178, 23
        %v1180 = vsub.s32 %v1179, 127
        %v1181 = vand.u32 2147483647, %v232
        %v1182 = vand.u32 %v1181, 8388607
        %v1183 = vor.u32 %v1182, 8388608
        %v1184 = vsub.s32 0, %v1183
        %v1185 = vadd.s32 %v1180, 1
        %vm1186 = vcmp.gt.s32.totalorder %v1185, 0
        %v1187 = vsel %vm1186, %v1185, 0
        %v1188 = vshrl.u32 %v1187, 5
        %v1189 = vand.u32 %v1187, 31
        %v1190 = vsub.s32 32, %v1189
        %v1191 = vshrl.u32 683565275, %v1190
        %v1192 = vshll.u32 683565275, %v1189
        %v1193 = vshrl.u32 2475754826, %v1190
        %v1194 = vor.u32 %v1192, %v1193
        %v1195 = vshll.u32 2475754826, %v1189
        %v1196 = vshrl.u32 2131351028, %v1190
        %v1197 = vor.u32 %v1195, %v1196
        %v1198 = vshll.u32 2131351028, %v1189
        %v1199 = vshrl.u32 2102212464, %v1190
        %v1200 = vor.u32 %v1198, %v1199
        %v1201 = vshll.u32 2102212464, %v1189
        %v1202 = vshrl.u32 920167782, %v1190
        %v1203 = vor.u32 %v1201, %v1202
        %v1204 = vshll.u32 920167782, %v1189
        %v1205 = vshrl.u32 1326507024, %v1190
        %v1206 = vor.u32 %v1204, %v1205
        %vm1207 = vcmp.lt.s32.totalorder %v1188, 1
        %vm1208 = vcmp.lt.s32.totalorder %v1188, 2
        %vm1209 = vcmp.lt.s32.totalorder %v1188, 3
        %vm1210 = vcmp.lt.s32.totalorder %v1188, 4
        %v1211 = vsel %vm1207, %v1191, %v1194
        %v1212 = vsel %vm1210, %v1200, 2102212464
        %v1213 = vsel %vm1209, %v1197, %v1212
        %v1214 = vsel %vm1208, %v1211, %v1213
        %v1215 = vsel %vm1207, %v1194, %v1197
        %v1216 = vsel %vm1210, %v1203, 920167782
        %v1217 = vsel %vm1209, %v1200, %v1216
        %v1218 = vsel %vm1208, %v1215, %v1217
        %v1219 = vsel %vm1207, %v1197, %v1200
        %v1220 = vsel %vm1210, %v1206, 1326507024
        %v1221 = vsel %vm1209, %v1203, %v1220
        %v1222 = vsel %vm1208, %v1219, %v1221
        %v1223 = vshll.u32 %v1183, 8
        %v1224 = vmul.u32.u64.compose %v1223, %v1222
        %v1225 = vextract.low.u32 %v1224
        %v1226 = vextract.high.u32 %v1224
        %v1227 = vmul.u32.u64.compose %v1223, %v1218
        %v1228 = vextract.low.u32 %v1227
        %v1229 = vextract.high.u32 %v1227
        %v1230 = vmul.u32 %v1223, %v1214
        %v1231 = vadd.s32 %v1226, %v1228
        %vm1232 = vc.u32 %v1226, %v1228
        %v1233 = vadd.s32 %v1229, 1
        %v1234 = vsel %vm1232, %v1233, %v1229
        %v1235 = vadd.s32 %v1230, %v1234
        %v1236 = vadd.s32 %v1235, 536870912
        %v1237 = vshrl.u32 %v1236, 30
        %v1238 = vshll.u32 %v1237, 30
        %v1239 = vsub.s32 %v1235, %v1238
        %vm1240 = vcmp.lt.s32.totalorder %v1239, 0
        %v1241 = vsub.s32 0, %v1239
        %v1242 = vsel %vm1240, %v1241, %v1239
        %v1243 = vclz %v1242
        %v1244 = vsub.s32 %v1243, 2
        %vm1245 = vcmp.gt.s32.totalorder 0, %v1244
        %v1246 = vsel %vm1245, 0, %v1244
        %v1247 = vsub.s32 32, %v1246
        %v1248 = vshll.u32 %v1239, %v1246
        %v1249 = vshrl.u32 %v1231, %v1247
        %v1250 = vor.u32 %v1248, %v1249
        %v1251 = vsub.s32 4294967266, %v1246
        %v1252 = vadd.s32 %v1251, 127
        %v1253 = vshll.u32 %v1252, 23
        %v1254 = vor.u32 4788187, %v1253
        %v1255 = vand.u32 2147483647, %v1254
        %v1257 = vcvt.s32.f32 %v1250
        %v1258 = vmul.f32 %v1257, %v1255
        %v1259 = vxor.u32 %v1258, 2147483648
        %v1260 = vsel %vm1177, %v1259, %v1258
        %v1261 = vsub.s32 4, %v1237
        %v1262 = vsel %vm1177, %v1261, %v1237
        %v1263 = vsel %vm1176, %v232, %v1260
        %v1264 = vsel %vm1176, 0, %v1262
        %v1265 = vcosq.f32.pop %v1263
        %v1266 = vsinq.f32.pop %v1263
        %vm1267 = vweird.f32 %v232
        %v1268 = vadd.s32 %v1264, 3
        %v1269 = vand.u32 %v1268, 3
        %vm1270 = vcmp.lt.s32.totalorder %v1269, 2
        %vm1271 = vcmp.eq.s32.totalorder %v1269, 0
        %v1272 = vxor.u32 %v1266, 2147483648
        %v1273 = vsel %vm1271, %v1265, %v1272
        %vm1274 = vcmp.eq.s32.totalorder %v1269, 2
        %v1275 = vxor.u32 %v1265, 2147483648
        %v1276 = vsel %vm1274, %v1275, %v1266
        %v1277 = vsel %vm1270, %v1273, %v1276
        %v1278 = vsel %vm1267, nan, %v1277
        %v1279 = vand.u32 2147483647, %v233
        %vm1280 = vcmp.le.f32.partialorder %v1279, 0.7853982
        %vm1281 = vcmp.lt.s32.totalorder %v233, 0
        %v1282 = vand.u32 %v233, 2139095040
        %v1283 = vshrl.u32 %v1282, 23
        %v1284 = vsub.s32 %v1283, 127
        %v1285 = vand.u32 2147483647, %v233
        %v1286 = vand.u32 %v1285, 8388607
        %v1287 = vor.u32 %v1286, 8388608
        %v1288 = vsub.s32 0, %v1287
        %v1289 = vadd.s32 %v1284, 1
        %vm1290 = vcmp.gt.s32.totalorder %v1289, 0
        %v1291 = vsel %vm1290, %v1289, 0
        %v1292 = vshrl.u32 %v1291, 5
        %v1293 = vand.u32 %v1291, 31
        %v1294 = vsub.s32 32, %v1293
        %v1295 = vshrl.u32 683565275, %v1294
        %v1296 = vshll.u32 683565275, %v1293
        %v1297 = vshrl.u32 2475754826, %v1294
        %v1298 = vor.u32 %v1296, %v1297
        %v1299 = vshll.u32 2475754826, %v1293
        %v1300 = vshrl.u32 2131351028, %v1294
        %v1301 = vor.u32 %v1299, %v1300
        %v1302 = vshll.u32 2131351028, %v1293
        %v1303 = vshrl.u32 2102212464, %v1294
        %v1304 = vor.u32 %v1302, %v1303
        %v1305 = vshll.u32 2102212464, %v1293
        %v1306 = vshrl.u32 920167782, %v1294
        %v1307 = vor.u32 %v1305, %v1306
        %v1308 = vshll.u32 920167782, %v1293
        %v1309 = vshrl.u32 1326507024, %v1294
        %v1310 = vor.u32 %v1308, %v1309
        %vm1311 = vcmp.lt.s32.totalorder %v1292, 1
        %vm1312 = vcmp.lt.s32.totalorder %v1292, 2
        %vm1313 = vcmp.lt.s32.totalorder %v1292, 3
        %vm1314 = vcmp.lt.s32.totalorder %v1292, 4
        %v1315 = vsel %vm1311, %v1295, %v1298
        %v1316 = vsel %vm1314, %v1304, 2102212464
        %v1317 = vsel %vm1313, %v1301, %v1316
        %v1318 = vsel %vm1312, %v1315, %v1317
        %v1319 = vsel %vm1311, %v1298, %v1301
        %v1320 = vsel %vm1314, %v1307, 920167782
        %v1321 = vsel %vm1313, %v1304, %v1320
        %v1322 = vsel %vm1312, %v1319, %v1321
        %v1323 = vsel %vm1311, %v1301, %v1304
        %v1324 = vsel %vm1314, %v1310, 1326507024
        %v1325 = vsel %vm1313, %v1307, %v1324
        %v1326 = vsel %vm1312, %v1323, %v1325
        %v1327 = vshll.u32 %v1287, 8
        %v1328 = vmul.u32.u64.compose %v1327, %v1326
        %v1329 = vextract.low.u32 %v1328
        %v1330 = vextract.high.u32 %v1328
        %v1331 = vmul.u32.u64.compose %v1327, %v1322
        %v1332 = vextract.low.u32 %v1331
        %v1333 = vextract.high.u32 %v1331
        %v1334 = vmul.u32 %v1327, %v1318
        %v1335 = vadd.s32 %v1330, %v1332
        %vm1336 = vc.u32 %v1330, %v1332
        %v1337 = vadd.s32 %v1333, 1
        %v1338 = vsel %vm1336, %v1337, %v1333
        %v1339 = vadd.s32 %v1334, %v1338
        %v1340 = vadd.s32 %v1339, 536870912
        %v1341 = vshrl.u32 %v1340, 30
        %v1342 = vshll.u32 %v1341, 30
        %v1343 = vsub.s32 %v1339, %v1342
        %vm1344 = vcmp.lt.s32.totalorder %v1343, 0
        %v1345 = vsub.s32 0, %v1343
        %v1346 = vsel %vm1344, %v1345, %v1343
        %v1347 = vclz %v1346
        %v1348 = vsub.s32 %v1347, 2
        %vm1349 = vcmp.gt.s32.totalorder 0, %v1348
        %v1350 = vsel %vm1349, 0, %v1348
        %v1351 = vsub.s32 32, %v1350
        %v1352 = vshll.u32 %v1343, %v1350
        %v1353 = vshrl.u32 %v1335, %v1351
        %v1354 = vor.u32 %v1352, %v1353
        %v1355 = vsub.s32 4294967266, %v1350
        %v1356 = vadd.s32 %v1355, 127
        %v1357 = vshll.u32 %v1356, 23
        %v1358 = vor.u32 4788187, %v1357
        %v1359 = vand.u32 2147483647, %v1358
        %v1361 = vcvt.s32.f32 %v1354
        %v1362 = vmul.f32 %v1361, %v1359
        %v1363 = vxor.u32 %v1362, 2147483648
        %v1364 = vsel %vm1281, %v1363, %v1362
        %v1365 = vsub.s32 4, %v1341
        %v1366 = vsel %vm1281, %v1365, %v1341
        %v1367 = vsel %vm1280, %v233, %v1364
        %v1368 = vsel %vm1280, 0, %v1366
        %v1369 = vcosq.f32.pop %v1367
        %v1370 = vsinq.f32.pop %v1367
        %vm1371 = vweird.f32 %v233
        %v1372 = vadd.s32 %v1368, 3
        %v1373 = vand.u32 %v1372, 3
        %vm1374 = vcmp.lt.s32.totalorder %v1373, 2
        %vm1375 = vcmp.eq.s32.totalorder %v1373, 0
        %v1376 = vxor.u32 %v1370, 2147483648
        %v1377 = vsel %vm1375, %v1369, %v1376
        %vm1378 = vcmp.eq.s32.totalorder %v1373, 2
        %v1379 = vxor.u32 %v1369, 2147483648
        %v1380 = vsel %vm1378, %v1379, %v1370
        %v1381 = vsel %vm1374, %v1377, %v1380
        %v1382 = vsel %vm1371, nan, %v1381
        %v1383 = vand.u32 2147483647, %v234
        %vm1384 = vcmp.le.f32.partialorder %v1383, 0.7853982
        %vm1385 = vcmp.lt.s32.totalorder %v234, 0
        %v1386 = vand.u32 %v234, 2139095040
        %v1387 = vshrl.u32 %v1386, 23
        %v1388 = vsub.s32 %v1387, 127
        %v1389 = vand.u32 2147483647, %v234
        %v1390 = vand.u32 %v1389, 8388607
        %v1391 = vor.u32 %v1390, 8388608
        %v1392 = vsub.s32 0, %v1391
        %v1393 = vadd.s32 %v1388, 1
        %vm1394 = vcmp.gt.s32.totalorder %v1393, 0
        %v1395 = vsel %vm1394, %v1393, 0
        %v1396 = vshrl.u32 %v1395, 5
        %v1397 = vand.u32 %v1395, 31
        %v1398 = vsub.s32 32, %v1397
        %v1399 = vshrl.u32 683565275, %v1398
        %v1400 = vshll.u32 683565275, %v1397
        %v1401 = vshrl.u32 2475754826, %v1398
        %v1402 = vor.u32 %v1400, %v1401
        %v1403 = vshll.u32 2475754826, %v1397
        %v1404 = vshrl.u32 2131351028, %v1398
        %v1405 = vor.u32 %v1403, %v1404
        %v1406 = vshll.u32 2131351028, %v1397
        %v1407 = vshrl.u32 2102212464, %v1398
        %v1408 = vor.u32 %v1406, %v1407
        %v1409 = vshll.u32 2102212464, %v1397
        %v1410 = vshrl.u32 920167782, %v1398
        %v1411 = vor.u32 %v1409, %v1410
        %v1412 = vshll.u32 920167782, %v1397
        %v1413 = vshrl.u32 1326507024, %v1398
        %v1414 = vor.u32 %v1412, %v1413
        %vm1415 = vcmp.lt.s32.totalorder %v1396, 1
        %vm1416 = vcmp.lt.s32.totalorder %v1396, 2
        %vm1417 = vcmp.lt.s32.totalorder %v1396, 3
        %vm1418 = vcmp.lt.s32.totalorder %v1396, 4
        %v1419 = vsel %vm1415, %v1399, %v1402
        %v1420 = vsel %vm1418, %v1408, 2102212464
        %v1421 = vsel %vm1417, %v1405, %v1420
        %v1422 = vsel %vm1416, %v1419, %v1421
        %v1423 = vsel %vm1415, %v1402, %v1405
        %v1424 = vsel %vm1418, %v1411, 920167782
        %v1425 = vsel %vm1417, %v1408, %v1424
        %v1426 = vsel %vm1416, %v1423, %v1425
        %v1427 = vsel %vm1415, %v1405, %v1408
        %v1428 = vsel %vm1418, %v1414, 1326507024
        %v1429 = vsel %vm1417, %v1411, %v1428
        %v1430 = vsel %vm1416, %v1427, %v1429
        %v1431 = vshll.u32 %v1391, 8
        %v1432 = vmul.u32.u64.compose %v1431, %v1430
        %v1433 = vextract.low.u32 %v1432
        %v1434 = vextract.high.u32 %v1432
        %v1435 = vmul.u32.u64.compose %v1431, %v1426
        %v1436 = vextract.low.u32 %v1435
        %v1437 = vextract.high.u32 %v1435
        %v1438 = vmul.u32 %v1431, %v1422
        %v1439 = vadd.s32 %v1434, %v1436
        %vm1440 = vc.u32 %v1434, %v1436
        %v1441 = vadd.s32 %v1437, 1
        %v1442 = vsel %vm1440, %v1441, %v1437
        %v1443 = vadd.s32 %v1438, %v1442
        %v1444 = vadd.s32 %v1443, 536870912
        %v1445 = vshrl.u32 %v1444, 30
        %v1446 = vshll.u32 %v1445, 30
        %v1447 = vsub.s32 %v1443, %v1446
        %vm1448 = vcmp.lt.s32.totalorder %v1447, 0
        %v1449 = vsub.s32 0, %v1447
        %v1450 = vsel %vm1448, %v1449, %v1447
        %v1451 = vclz %v1450
        %v1452 = vsub.s32 %v1451, 2
        %vm1453 = vcmp.gt.s32.totalorder 0, %v1452
        %v1454 = vsel %vm1453, 0, %v1452
        %v1455 = vsub.s32 32, %v1454
        %v1456 = vshll.u32 %v1447, %v1454
        %v1457 = vshrl.u32 %v1439, %v1455
        %v1458 = vor.u32 %v1456, %v1457
        %v1459 = vsub.s32 4294967266, %v1454
        %v1460 = vadd.s32 %v1459, 127
        %v1461 = vshll.u32 %v1460, 23
        %v1462 = vor.u32 4788187, %v1461
        %v1463 = vand.u32 2147483647, %v1462
        %v1465 = vcvt.s32.f32 %v1458
        %v1466 = vmul.f32 %v1465, %v1463
        %v1467 = vxor.u32 %v1466, 2147483648
        %v1468 = vsel %vm1385, %v1467, %v1466
        %v1469 = vsub.s32 4, %v1445
        %v1470 = vsel %vm1385, %v1469, %v1445
        %v1471 = vsel %vm1384, %v234, %v1468
        %v1472 = vsel %vm1384, 0, %v1470
        %v1473 = vcosq.f32.pop %v1471
        %v1474 = vsinq.f32.pop %v1471
        %vm1475 = vweird.f32 %v234
        %v1476 = vadd.s32 %v1472, 3
        %v1477 = vand.u32 %v1476, 3
        %vm1478 = vcmp.lt.s32.totalorder %v1477, 2
        %vm1479 = vcmp.eq.s32.totalorder %v1477, 0
        %v1480 = vxor.u32 %v1474, 2147483648
        %v1481 = vsel %vm1479, %v1473, %v1480
        %vm1482 = vcmp.eq.s32.totalorder %v1477, 2
        %v1483 = vxor.u32 %v1473, 2147483648
        %v1484 = vsel %vm1482, %v1483, %v1474
        %v1485 = vsel %vm1478, %v1481, %v1484
        %v1486 = vsel %vm1475, nan, %v1485
        %v1487 = vand.u32 2147483647, %v235
        %vm1488 = vcmp.le.f32.partialorder %v1487, 0.7853982
        %vm1489 = vcmp.lt.s32.totalorder %v235, 0
        %v1490 = vand.u32 %v235, 2139095040
        %v1491 = vshrl.u32 %v1490, 23
        %v1492 = vsub.s32 %v1491, 127
        %v1493 = vand.u32 2147483647, %v235
        %v1494 = vand.u32 %v1493, 8388607
        %v1495 = vor.u32 %v1494, 8388608
        %v1496 = vsub.s32 0, %v1495
        %v1497 = vadd.s32 %v1492, 1
        %vm1498 = vcmp.gt.s32.totalorder %v1497, 0
        %v1499 = vsel %vm1498, %v1497, 0
        %v1500 = vshrl.u32 %v1499, 5
        %v1501 = vand.u32 %v1499, 31
        %v1502 = vsub.s32 32, %v1501
        %v1503 = vshrl.u32 683565275, %v1502
        %v1504 = vshll.u32 683565275, %v1501
        %v1505 = vshrl.u32 2475754826, %v1502
        %v1506 = vor.u32 %v1504, %v1505
        %v1507 = vshll.u32 2475754826, %v1501
        %v1508 = vshrl.u32 2131351028, %v1502
        %v1509 = vor.u32 %v1507, %v1508
        %v1510 = vshll.u32 2131351028, %v1501
        %v1511 = vshrl.u32 2102212464, %v1502
        %v1512 = vor.u32 %v1510, %v1511
        %v1513 = vshll.u32 2102212464, %v1501
        %v1514 = vshrl.u32 920167782, %v1502
        %v1515 = vor.u32 %v1513, %v1514
        %v1516 = vshll.u32 920167782, %v1501
        %v1517 = vshrl.u32 1326507024, %v1502
        %v1518 = vor.u32 %v1516, %v1517
        %vm1519 = vcmp.lt.s32.totalorder %v1500, 1
        %vm1520 = vcmp.lt.s32.totalorder %v1500, 2
        %vm1521 = vcmp.lt.s32.totalorder %v1500, 3
        %vm1522 = vcmp.lt.s32.totalorder %v1500, 4
        %v1523 = vsel %vm1519, %v1503, %v1506
        %v1524 = vsel %vm1522, %v1512, 2102212464
        %v1525 = vsel %vm1521, %v1509, %v1524
        %v1526 = vsel %vm1520, %v1523, %v1525
        %v1527 = vsel %vm1519, %v1506, %v1509
        %v1528 = vsel %vm1522, %v1515, 920167782
        %v1529 = vsel %vm1521, %v1512, %v1528
        %v1530 = vsel %vm1520, %v1527, %v1529
        %v1531 = vsel %vm1519, %v1509, %v1512
        %v1532 = vsel %vm1522, %v1518, 1326507024
        %v1533 = vsel %vm1521, %v1515, %v1532
        %v1534 = vsel %vm1520, %v1531, %v1533
        %v1535 = vshll.u32 %v1495, 8
        %v1536 = vmul.u32.u64.compose %v1535, %v1534
        %v1537 = vextract.low.u32 %v1536
        %v1538 = vextract.high.u32 %v1536
        %v1539 = vmul.u32.u64.compose %v1535, %v1530
        %v1540 = vextract.low.u32 %v1539
        %v1541 = vextract.high.u32 %v1539
        %v1542 = vmul.u32 %v1535, %v1526
        %v1543 = vadd.s32 %v1538, %v1540
        %vm1544 = vc.u32 %v1538, %v1540
        %v1545 = vadd.s32 %v1541, 1
        %v1546 = vsel %vm1544, %v1545, %v1541
        %v1547 = vadd.s32 %v1542, %v1546
        %v1548 = vadd.s32 %v1547, 536870912
        %v1549 = vshrl.u32 %v1548, 30
        %v1550 = vshll.u32 %v1549, 30
        %v1551 = vsub.s32 %v1547, %v1550
        %vm1552 = vcmp.lt.s32.totalorder %v1551, 0
        %v1553 = vsub.s32 0, %v1551
        %v1554 = vsel %vm1552, %v1553, %v1551
        %v1555 = vclz %v1554
        %v1556 = vsub.s32 %v1555, 2
        %vm1557 = vcmp.gt.s32.totalorder 0, %v1556
        %v1558 = vsel %vm1557, 0, %v1556
        %v1559 = vsub.s32 32, %v1558
        %v1560 = vshll.u32 %v1551, %v1558
        %v1561 = vshrl.u32 %v1543, %v1559
        %v1562 = vor.u32 %v1560, %v1561
        %v1563 = vsub.s32 4294967266, %v1558
        %v1564 = vadd.s32 %v1563, 127
        %v1565 = vshll.u32 %v1564, 23
        %v1566 = vor.u32 4788187, %v1565
        %v1567 = vand.u32 2147483647, %v1566
        %v1569 = vcvt.s32.f32 %v1562
        %v1570 = vmul.f32 %v1569, %v1567
        %v1571 = vxor.u32 %v1570, 2147483648
        %v1572 = vsel %vm1489, %v1571, %v1570
        %v1573 = vsub.s32 4, %v1549
        %v1574 = vsel %vm1489, %v1573, %v1549
        %v1575 = vsel %vm1488, %v235, %v1572
        %v1576 = vsel %vm1488, 0, %v1574
        %v1577 = vcosq.f32.pop %v1575
        %v1578 = vsinq.f32.pop %v1575
        %vm1579 = vweird.f32 %v235
        %v1580 = vadd.s32 %v1576, 3
        %v1581 = vand.u32 %v1580, 3
        %vm1582 = vcmp.lt.s32.totalorder %v1581, 2
        %vm1583 = vcmp.eq.s32.totalorder %v1581, 0
        %v1584 = vxor.u32 %v1578, 2147483648
        %v1585 = vsel %vm1583, %v1577, %v1584
        %vm1586 = vcmp.eq.s32.totalorder %v1581, 2
        %v1587 = vxor.u32 %v1577, 2147483648
        %v1588 = vsel %vm1586, %v1587, %v1578
        %v1589 = vsel %vm1582, %v1585, %v1588
        %v1590 = vsel %vm1579, nan, %v1589
        %v1591 = vand.u32 2147483647, %v236
        %vm1592 = vcmp.le.f32.partialorder %v1591, 0.7853982
        %vm1593 = vcmp.lt.s32.totalorder %v236, 0
        %v1594 = vand.u32 %v236, 2139095040
        %v1595 = vshrl.u32 %v1594, 23
        %v1596 = vsub.s32 %v1595, 127
        %v1597 = vand.u32 2147483647, %v236
        %v1598 = vand.u32 %v1597, 8388607
        %v1599 = vor.u32 %v1598, 8388608
        %v1600 = vsub.s32 0, %v1599
        %v1601 = vadd.s32 %v1596, 1
        %vm1602 = vcmp.gt.s32.totalorder %v1601, 0
        %v1603 = vsel %vm1602, %v1601, 0
        %v1604 = vshrl.u32 %v1603, 5
        %v1605 = vand.u32 %v1603, 31
        %v1606 = vsub.s32 32, %v1605
        %v1607 = vshrl.u32 683565275, %v1606
        %v1608 = vshll.u32 683565275, %v1605
        %v1609 = vshrl.u32 2475754826, %v1606
        %v1610 = vor.u32 %v1608, %v1609
        %v1611 = vshll.u32 2475754826, %v1605
        %v1612 = vshrl.u32 2131351028, %v1606
        %v1613 = vor.u32 %v1611, %v1612
        %v1614 = vshll.u32 2131351028, %v1605
        %v1615 = vshrl.u32 2102212464, %v1606
        %v1616 = vor.u32 %v1614, %v1615
        %v1617 = vshll.u32 2102212464, %v1605
        %v1618 = vshrl.u32 920167782, %v1606
        %v1619 = vor.u32 %v1617, %v1618
        %v1620 = vshll.u32 920167782, %v1605
        %v1621 = vshrl.u32 1326507024, %v1606
        %v1622 = vor.u32 %v1620, %v1621
        %vm1623 = vcmp.lt.s32.totalorder %v1604, 1
        %vm1624 = vcmp.lt.s32.totalorder %v1604, 2
        %vm1625 = vcmp.lt.s32.totalorder %v1604, 3
        %vm1626 = vcmp.lt.s32.totalorder %v1604, 4
        %v1627 = vsel %vm1623, %v1607, %v1610
        %v1628 = vsel %vm1626, %v1616, 2102212464
        %v1629 = vsel %vm1625, %v1613, %v1628
        %v1630 = vsel %vm1624, %v1627, %v1629
        %v1631 = vsel %vm1623, %v1610, %v1613
        %v1632 = vsel %vm1626, %v1619, 920167782
        %v1633 = vsel %vm1625, %v1616, %v1632
        %v1634 = vsel %vm1624, %v1631, %v1633
        %v1635 = vsel %vm1623, %v1613, %v1616
        %v1636 = vsel %vm1626, %v1622, 1326507024
        %v1637 = vsel %vm1625, %v1619, %v1636
        %v1638 = vsel %vm1624, %v1635, %v1637
        %v1639 = vshll.u32 %v1599, 8
        %v1640 = vmul.u32.u64.compose %v1639, %v1638
        %v1641 = vextract.low.u32 %v1640
        %v1642 = vextract.high.u32 %v1640
        %v1643 = vmul.u32.u64.compose %v1639, %v1634
        %v1644 = vextract.low.u32 %v1643
        %v1645 = vextract.high.u32 %v1643
        %v1646 = vmul.u32 %v1639, %v1630
        %v1647 = vadd.s32 %v1642, %v1644
        %vm1648 = vc.u32 %v1642, %v1644
        %v1649 = vadd.s32 %v1645, 1
        %v1650 = vsel %vm1648, %v1649, %v1645
        %v1651 = vadd.s32 %v1646, %v1650
        %v1652 = vadd.s32 %v1651, 536870912
        %v1653 = vshrl.u32 %v1652, 30
        %v1654 = vshll.u32 %v1653, 30
        %v1655 = vsub.s32 %v1651, %v1654
        %vm1656 = vcmp.lt.s32.totalorder %v1655, 0
        %v1657 = vsub.s32 0, %v1655
        %v1658 = vsel %vm1656, %v1657, %v1655
        %v1659 = vclz %v1658
        %v1660 = vsub.s32 %v1659, 2
        %vm1661 = vcmp.gt.s32.totalorder 0, %v1660
        %v1662 = vsel %vm1661, 0, %v1660
        %v1663 = vsub.s32 32, %v1662
        %v1664 = vshll.u32 %v1655, %v1662
        %v1665 = vshrl.u32 %v1647, %v1663
        %v1666 = vor.u32 %v1664, %v1665
        %v1667 = vsub.s32 4294967266, %v1662
        %v1668 = vadd.s32 %v1667, 127
        %v1669 = vshll.u32 %v1668, 23
        %v1670 = vor.u32 4788187, %v1669
        %v1671 = vand.u32 2147483647, %v1670
        %v1673 = vcvt.s32.f32 %v1666
        %v1674 = vmul.f32 %v1673, %v1671
        %v1675 = vxor.u32 %v1674, 2147483648
        %v1676 = vsel %vm1593, %v1675, %v1674
        %v1677 = vsub.s32 4, %v1653
        %v1678 = vsel %vm1593, %v1677, %v1653
        %v1679 = vsel %vm1592, %v236, %v1676
        %v1680 = vsel %vm1592, 0, %v1678
        %v1681 = vcosq.f32.pop %v1679
        %v1682 = vsinq.f32.pop %v1679
        %vm1683 = vweird.f32 %v236
        %v1684 = vadd.s32 %v1680, 3
        %v1685 = vand.u32 %v1684, 3
        %vm1686 = vcmp.lt.s32.totalorder %v1685, 2
        %vm1687 = vcmp.eq.s32.totalorder %v1685, 0
        %v1688 = vxor.u32 %v1682, 2147483648
        %v1689 = vsel %vm1687, %v1681, %v1688
        %vm1690 = vcmp.eq.s32.totalorder %v1685, 2
        %v1691 = vxor.u32 %v1681, 2147483648
        %v1692 = vsel %vm1690, %v1691, %v1682
        %v1693 = vsel %vm1686, %v1689, %v1692
        %v1694 = vsel %vm1683, nan, %v1693
        %v1695 = vand.u32 2147483647, %v237
        %vm1696 = vcmp.le.f32.partialorder %v1695, 0.7853982
        %vm1697 = vcmp.lt.s32.totalorder %v237, 0
        %v1698 = vand.u32 %v237, 2139095040
        %v1699 = vshrl.u32 %v1698, 23
        %v1700 = vsub.s32 %v1699, 127
        %v1701 = vand.u32 2147483647, %v237
        %v1702 = vand.u32 %v1701, 8388607
        %v1703 = vor.u32 %v1702, 8388608
        %v1704 = vsub.s32 0, %v1703
        %v1705 = vadd.s32 %v1700, 1
        %vm1706 = vcmp.gt.s32.totalorder %v1705, 0
        %v1707 = vsel %vm1706, %v1705, 0
        %v1708 = vshrl.u32 %v1707, 5
        %v1709 = vand.u32 %v1707, 31
        %v1710 = vsub.s32 32, %v1709
        %v1711 = vshrl.u32 683565275, %v1710
        %v1712 = vshll.u32 683565275, %v1709
        %v1713 = vshrl.u32 2475754826, %v1710
        %v1714 = vor.u32 %v1712, %v1713
        %v1715 = vshll.u32 2475754826, %v1709
        %v1716 = vshrl.u32 2131351028, %v1710
        %v1717 = vor.u32 %v1715, %v1716
        %v1718 = vshll.u32 2131351028, %v1709
        %v1719 = vshrl.u32 2102212464, %v1710
        %v1720 = vor.u32 %v1718, %v1719
        %v1721 = vshll.u32 2102212464, %v1709
        %v1722 = vshrl.u32 920167782, %v1710
        %v1723 = vor.u32 %v1721, %v1722
        %v1724 = vshll.u32 920167782, %v1709
        %v1725 = vshrl.u32 1326507024, %v1710
        %v1726 = vor.u32 %v1724, %v1725
        %vm1727 = vcmp.lt.s32.totalorder %v1708, 1
        %vm1728 = vcmp.lt.s32.totalorder %v1708, 2
        %vm1729 = vcmp.lt.s32.totalorder %v1708, 3
        %vm1730 = vcmp.lt.s32.totalorder %v1708, 4
        %v1731 = vsel %vm1727, %v1711, %v1714
        %v1732 = vsel %vm1730, %v1720, 2102212464
        %v1733 = vsel %vm1729, %v1717, %v1732
        %v1734 = vsel %vm1728, %v1731, %v1733
        %v1735 = vsel %vm1727, %v1714, %v1717
        %v1736 = vsel %vm1730, %v1723, 920167782
        %v1737 = vsel %vm1729, %v1720, %v1736
        %v1738 = vsel %vm1728, %v1735, %v1737
        %v1739 = vsel %vm1727, %v1717, %v1720
        %v1740 = vsel %vm1730, %v1726, 1326507024
        %v1741 = vsel %vm1729, %v1723, %v1740
        %v1742 = vsel %vm1728, %v1739, %v1741
        %v1743 = vshll.u32 %v1703, 8
        %v1744 = vmul.u32.u64.compose %v1743, %v1742
        %v1745 = vextract.low.u32 %v1744
        %v1746 = vextract.high.u32 %v1744
        %v1747 = vmul.u32.u64.compose %v1743, %v1738
        %v1748 = vextract.low.u32 %v1747
        %v1749 = vextract.high.u32 %v1747
        %v1750 = vmul.u32 %v1743, %v1734
        %v1751 = vadd.s32 %v1746, %v1748
        %vm1752 = vc.u32 %v1746, %v1748
        %v1753 = vadd.s32 %v1749, 1
        %v1754 = vsel %vm1752, %v1753, %v1749
        %v1755 = vadd.s32 %v1750, %v1754
        %v1756 = vadd.s32 %v1755, 536870912
        %v1757 = vshrl.u32 %v1756, 30
        %v1758 = vshll.u32 %v1757, 30
        %v1759 = vsub.s32 %v1755, %v1758
        %vm1760 = vcmp.lt.s32.totalorder %v1759, 0
        %v1761 = vsub.s32 0, %v1759
        %v1762 = vsel %vm1760, %v1761, %v1759
        %v1763 = vclz %v1762
        %v1764 = vsub.s32 %v1763, 2
        %vm1765 = vcmp.gt.s32.totalorder 0, %v1764
        %v1766 = vsel %vm1765, 0, %v1764
        %v1767 = vsub.s32 32, %v1766
        %v1768 = vshll.u32 %v1759, %v1766
        %v1769 = vshrl.u32 %v1751, %v1767
        %v1770 = vor.u32 %v1768, %v1769
        %v1771 = vsub.s32 4294967266, %v1766
        %v1772 = vadd.s32 %v1771, 127
        %v1773 = vshll.u32 %v1772, 23
        %v1774 = vor.u32 4788187, %v1773
        %v1775 = vand.u32 2147483647, %v1774
        %v1777 = vcvt.s32.f32 %v1770
        %v1778 = vmul.f32 %v1777, %v1775
        %v1779 = vxor.u32 %v1778, 2147483648
        %v1780 = vsel %vm1697, %v1779, %v1778
        %v1781 = vsub.s32 4, %v1757
        %v1782 = vsel %vm1697, %v1781, %v1757
        %v1783 = vsel %vm1696, %v237, %v1780
        %v1784 = vsel %vm1696, 0, %v1782
        %v1785 = vcosq.f32.pop %v1783
        %v1786 = vsinq.f32.pop %v1783
        %vm1787 = vweird.f32 %v237
        %v1788 = vadd.s32 %v1784, 3
        %v1789 = vand.u32 %v1788, 3
        %vm1790 = vcmp.lt.s32.totalorder %v1789, 2
        %vm1791 = vcmp.eq.s32.totalorder %v1789, 0
        %v1792 = vxor.u32 %v1786, 2147483648
        %v1793 = vsel %vm1791, %v1785, %v1792
        %vm1794 = vcmp.eq.s32.totalorder %v1789, 2
        %v1795 = vxor.u32 %v1785, 2147483648
        %v1796 = vsel %vm1794, %v1795, %v1786
        %v1797 = vsel %vm1790, %v1793, %v1796
        %v1798 = vsel %vm1787, nan, %v1797
        %v1799 = vand.u32 2147483647, %v238
        %vm1800 = vcmp.le.f32.partialorder %v1799, 0.7853982
        %vm1801 = vcmp.lt.s32.totalorder %v238, 0
        %v1802 = vand.u32 %v238, 2139095040
        %v1803 = vshrl.u32 %v1802, 23
        %v1804 = vsub.s32 %v1803, 127
        %v1805 = vand.u32 2147483647, %v238
        %v1806 = vand.u32 %v1805, 8388607
        %v1807 = vor.u32 %v1806, 8388608
        %v1808 = vsub.s32 0, %v1807
        %v1809 = vadd.s32 %v1804, 1
        %vm1810 = vcmp.gt.s32.totalorder %v1809, 0
        %v1811 = vsel %vm1810, %v1809, 0
        %v1812 = vshrl.u32 %v1811, 5
        %v1813 = vand.u32 %v1811, 31
        %v1814 = vsub.s32 32, %v1813
        %v1815 = vshrl.u32 683565275, %v1814
        %v1816 = vshll.u32 683565275, %v1813
        %v1817 = vshrl.u32 2475754826, %v1814
        %v1818 = vor.u32 %v1816, %v1817
        %v1819 = vshll.u32 2475754826, %v1813
        %v1820 = vshrl.u32 2131351028, %v1814
        %v1821 = vor.u32 %v1819, %v1820
        %v1822 = vshll.u32 2131351028, %v1813
        %v1823 = vshrl.u32 2102212464, %v1814
        %v1824 = vor.u32 %v1822, %v1823
        %v1825 = vshll.u32 2102212464, %v1813
        %v1826 = vshrl.u32 920167782, %v1814
        %v1827 = vor.u32 %v1825, %v1826
        %v1828 = vshll.u32 920167782, %v1813
        %v1829 = vshrl.u32 1326507024, %v1814
        %v1830 = vor.u32 %v1828, %v1829
        %vm1831 = vcmp.lt.s32.totalorder %v1812, 1
        %vm1832 = vcmp.lt.s32.totalorder %v1812, 2
        %vm1833 = vcmp.lt.s32.totalorder %v1812, 3
        %vm1834 = vcmp.lt.s32.totalorder %v1812, 4
        %v1835 = vsel %vm1831, %v1815, %v1818
        %v1836 = vsel %vm1834, %v1824, 2102212464
        %v1837 = vsel %vm1833, %v1821, %v1836
        %v1838 = vsel %vm1832, %v1835, %v1837
        %v1839 = vsel %vm1831, %v1818, %v1821
        %v1840 = vsel %vm1834, %v1827, 920167782
        %v1841 = vsel %vm1833, %v1824, %v1840
        %v1842 = vsel %vm1832, %v1839, %v1841
        %v1843 = vsel %vm1831, %v1821, %v1824
        %v1844 = vsel %vm1834, %v1830, 1326507024
        %v1845 = vsel %vm1833, %v1827, %v1844
        %v1846 = vsel %vm1832, %v1843, %v1845
        %v1847 = vshll.u32 %v1807, 8
        %v1848 = vmul.u32.u64.compose %v1847, %v1846
        %v1849 = vextract.low.u32 %v1848
        %v1850 = vextract.high.u32 %v1848
        %v1851 = vmul.u32.u64.compose %v1847, %v1842
        %v1852 = vextract.low.u32 %v1851
        %v1853 = vextract.high.u32 %v1851
        %v1854 = vmul.u32 %v1847, %v1838
        %v1855 = vadd.s32 %v1850, %v1852
        %vm1856 = vc.u32 %v1850, %v1852
        %v1857 = vadd.s32 %v1853, 1
        %v1858 = vsel %vm1856, %v1857, %v1853
        %v1859 = vadd.s32 %v1854, %v1858
        %v1860 = vadd.s32 %v1859, 536870912
        %v1861 = vshrl.u32 %v1860, 30
        %v1862 = vshll.u32 %v1861, 30
        %v1863 = vsub.s32 %v1859, %v1862
        %vm1864 = vcmp.lt.s32.totalorder %v1863, 0
        %v1865 = vsub.s32 0, %v1863
        %v1866 = vsel %vm1864, %v1865, %v1863
        %v1867 = vclz %v1866
        %v1868 = vsub.s32 %v1867, 2
        %vm1869 = vcmp.gt.s32.totalorder 0, %v1868
        %v1870 = vsel %vm1869, 0, %v1868
        %v1871 = vsub.s32 32, %v1870
        %v1872 = vshll.u32 %v1863, %v1870
        %v1873 = vshrl.u32 %v1855, %v1871
        %v1874 = vor.u32 %v1872, %v1873
        %v1875 = vsub.s32 4294967266, %v1870
        %v1876 = vadd.s32 %v1875, 127
        %v1877 = vshll.u32 %v1876, 23
        %v1878 = vor.u32 4788187, %v1877
        %v1879 = vand.u32 2147483647, %v1878
        %v1881 = vcvt.s32.f32 %v1874
        %v1882 = vmul.f32 %v1881, %v1879
        %v1883 = vxor.u32 %v1882, 2147483648
        %v1884 = vsel %vm1801, %v1883, %v1882
        %v1885 = vsub.s32 4, %v1861
        %v1886 = vsel %vm1801, %v1885, %v1861
        %v1887 = vsel %vm1800, %v238, %v1884
        %v1888 = vsel %vm1800, 0, %v1886
        %v1889 = vcosq.f32.pop %v1887
        %v1890 = vsinq.f32.pop %v1887
        %vm1891 = vweird.f32 %v238
        %v1892 = vadd.s32 %v1888, 3
        %v1893 = vand.u32 %v1892, 3
        %vm1894 = vcmp.lt.s32.totalorder %v1893, 2
        %vm1895 = vcmp.eq.s32.totalorder %v1893, 0
        %v1896 = vxor.u32 %v1890, 2147483648
        %v1897 = vsel %vm1895, %v1889, %v1896
        %vm1898 = vcmp.eq.s32.totalorder %v1893, 2
        %v1899 = vxor.u32 %v1889, 2147483648
        %v1900 = vsel %vm1898, %v1899, %v1890
        %v1901 = vsel %vm1894, %v1897, %v1900
        %v1902 = vsel %vm1891, nan, %v1901
        %v1903 = vand.u32 2147483647, %v223
        %vm1904 = vcmp.le.f32.partialorder %v1903, 0.7853982
        %vm1905 = vcmp.lt.s32.totalorder %v223, 0
        %v1906 = vand.u32 %v223, 2139095040
        %v1907 = vshrl.u32 %v1906, 23
        %v1908 = vsub.s32 %v1907, 127
        %v1909 = vand.u32 2147483647, %v223
        %v1910 = vand.u32 %v1909, 8388607
        %v1911 = vor.u32 %v1910, 8388608
        %v1912 = vsub.s32 0, %v1911
        %v1913 = vadd.s32 %v1908, 1
        %vm1914 = vcmp.gt.s32.totalorder %v1913, 0
        %v1915 = vsel %vm1914, %v1913, 0
        %v1916 = vshrl.u32 %v1915, 5
        %v1917 = vand.u32 %v1915, 31
        %v1918 = vsub.s32 32, %v1917
        %v1919 = vshrl.u32 683565275, %v1918
        %v1920 = vshll.u32 683565275, %v1917
        %v1921 = vshrl.u32 2475754826, %v1918
        %v1922 = vor.u32 %v1920, %v1921
        %v1923 = vshll.u32 2475754826, %v1917
        %v1924 = vshrl.u32 2131351028, %v1918
        %v1925 = vor.u32 %v1923, %v1924
        %v1926 = vshll.u32 2131351028, %v1917
        %v1927 = vshrl.u32 2102212464, %v1918
        %v1928 = vor.u32 %v1926, %v1927
        %v1929 = vshll.u32 2102212464, %v1917
        %v1930 = vshrl.u32 920167782, %v1918
        %v1931 = vor.u32 %v1929, %v1930
        %v1932 = vshll.u32 920167782, %v1917
        %v1933 = vshrl.u32 1326507024, %v1918
        %v1934 = vor.u32 %v1932, %v1933
        %vm1935 = vcmp.lt.s32.totalorder %v1916, 1
        %vm1936 = vcmp.lt.s32.totalorder %v1916, 2
        %vm1937 = vcmp.lt.s32.totalorder %v1916, 3
        %vm1938 = vcmp.lt.s32.totalorder %v1916, 4
        %v1939 = vsel %vm1935, %v1919, %v1922
        %v1940 = vsel %vm1938, %v1928, 2102212464
        %v1941 = vsel %vm1937, %v1925, %v1940
        %v1942 = vsel %vm1936, %v1939, %v1941
        %v1943 = vsel %vm1935, %v1922, %v1925
        %v1944 = vsel %vm1938, %v1931, 920167782
        %v1945 = vsel %vm1937, %v1928, %v1944
        %v1946 = vsel %vm1936, %v1943, %v1945
        %v1947 = vsel %vm1935, %v1925, %v1928
        %v1948 = vsel %vm1938, %v1934, 1326507024
        %v1949 = vsel %vm1937, %v1931, %v1948
        %v1950 = vsel %vm1936, %v1947, %v1949
        %v1951 = vshll.u32 %v1911, 8
        %v1952 = vmul.u32.u64.compose %v1951, %v1950
        %v1953 = vextract.low.u32 %v1952
        %v1954 = vextract.high.u32 %v1952
        %v1955 = vmul.u32.u64.compose %v1951, %v1946
        %v1956 = vextract.low.u32 %v1955
        %v1957 = vextract.high.u32 %v1955
        %v1958 = vmul.u32 %v1951, %v1942
        %v1959 = vadd.s32 %v1954, %v1956
        %vm1960 = vc.u32 %v1954, %v1956
        %v1961 = vadd.s32 %v1957, 1
        %v1962 = vsel %vm1960, %v1961, %v1957
        %v1963 = vadd.s32 %v1958, %v1962
        %v1964 = vadd.s32 %v1963, 536870912
        %v1965 = vshrl.u32 %v1964, 30
        %v1966 = vshll.u32 %v1965, 30
        %v1967 = vsub.s32 %v1963, %v1966
        %vm1968 = vcmp.lt.s32.totalorder %v1967, 0
        %v1969 = vsub.s32 0, %v1967
        %v1970 = vsel %vm1968, %v1969, %v1967
        %v1971 = vclz %v1970
        %v1972 = vsub.s32 %v1971, 2
        %vm1973 = vcmp.gt.s32.totalorder 0, %v1972
        %v1974 = vsel %vm1973, 0, %v1972
        %v1975 = vsub.s32 32, %v1974
        %v1976 = vshll.u32 %v1967, %v1974
        %v1977 = vshrl.u32 %v1959, %v1975
        %v1978 = vor.u32 %v1976, %v1977
        %v1979 = vsub.s32 4294967266, %v1974
        %v1980 = vadd.s32 %v1979, 127
        %v1981 = vshll.u32 %v1980, 23
        %v1982 = vor.u32 4788187, %v1981
        %v1983 = vand.u32 2147483647, %v1982
        %v1985 = vcvt.s32.f32 %v1978
        %v1986 = vmul.f32 %v1985, %v1983
        %v1987 = vxor.u32 %v1986, 2147483648
        %v1988 = vsel %vm1905, %v1987, %v1986
        %v1989 = vsub.s32 4, %v1965
        %v1990 = vsel %vm1905, %v1989, %v1965
        %v1991 = vsel %vm1904, %v223, %v1988
        %v1992 = vsel %vm1904, 0, %v1990
        %v1993 = vcosq.f32.pop %v1991
        %v1994 = vsinq.f32.pop %v1991
        %vm1995 = vweird.f32 %v223
        %v1996 = vand.u32 %v1992, 3
        %vm1997 = vcmp.lt.s32.totalorder %v1996, 2
        %vm1998 = vcmp.eq.s32.totalorder %v1996, 0
        %v1999 = vxor.u32 %v1994, 2147483648
        %v2000 = vsel %vm1998, %v1993, %v1999
        %vm2001 = vcmp.eq.s32.totalorder %v1996, 2
        %v2002 = vxor.u32 %v1993, 2147483648
        %v2003 = vsel %vm2001, %v2002, %v1994
        %v2004 = vsel %vm1997, %v2000, %v2003
        %v2005 = vsel %vm1995, nan, %v2004
        %v2006 = vand.u32 2147483647, %v224
        %vm2007 = vcmp.le.f32.partialorder %v2006, 0.7853982
        %vm2008 = vcmp.lt.s32.totalorder %v224, 0
        %v2009 = vand.u32 %v224, 2139095040
        %v2010 = vshrl.u32 %v2009, 23
        %v2011 = vsub.s32 %v2010, 127
        %v2012 = vand.u32 2147483647, %v224
        %v2013 = vand.u32 %v2012, 8388607
        %v2014 = vor.u32 %v2013, 8388608
        %v2015 = vsub.s32 0, %v2014
        %v2016 = vadd.s32 %v2011, 1
        %vm2017 = vcmp.gt.s32.totalorder %v2016, 0
        %v2018 = vsel %vm2017, %v2016, 0
        %v2019 = vshrl.u32 %v2018, 5
        %v2020 = vand.u32 %v2018, 31
        %v2021 = vsub.s32 32, %v2020
        %v2022 = vshrl.u32 683565275, %v2021
        %v2023 = vshll.u32 683565275, %v2020
        %v2024 = vshrl.u32 2475754826, %v2021
        %v2025 = vor.u32 %v2023, %v2024
        %v2026 = vshll.u32 2475754826, %v2020
        %v2027 = vshrl.u32 2131351028, %v2021
        %v2028 = vor.u32 %v2026, %v2027
        %v2029 = vshll.u32 2131351028, %v2020
        %v2030 = vshrl.u32 2102212464, %v2021
        %v2031 = vor.u32 %v2029, %v2030
        %v2032 = vshll.u32 2102212464, %v2020
        %v2033 = vshrl.u32 920167782, %v2021
        %v2034 = vor.u32 %v2032, %v2033
        %v2035 = vshll.u32 920167782, %v2020
        %v2036 = vshrl.u32 1326507024, %v2021
        %v2037 = vor.u32 %v2035, %v2036
        %vm2038 = vcmp.lt.s32.totalorder %v2019, 1
        %vm2039 = vcmp.lt.s32.totalorder %v2019, 2
        %vm2040 = vcmp.lt.s32.totalorder %v2019, 3
        %vm2041 = vcmp.lt.s32.totalorder %v2019, 4
        %v2042 = vsel %vm2038, %v2022, %v2025
        %v2043 = vsel %vm2041, %v2031, 2102212464
        %v2044 = vsel %vm2040, %v2028, %v2043
        %v2045 = vsel %vm2039, %v2042, %v2044
        %v2046 = vsel %vm2038, %v2025, %v2028
        %v2047 = vsel %vm2041, %v2034, 920167782
        %v2048 = vsel %vm2040, %v2031, %v2047
        %v2049 = vsel %vm2039, %v2046, %v2048
        %v2050 = vsel %vm2038, %v2028, %v2031
        %v2051 = vsel %vm2041, %v2037, 1326507024
        %v2052 = vsel %vm2040, %v2034, %v2051
        %v2053 = vsel %vm2039, %v2050, %v2052
        %v2054 = vshll.u32 %v2014, 8
        %v2055 = vmul.u32.u64.compose %v2054, %v2053
        %v2056 = vextract.low.u32 %v2055
        %v2057 = vextract.high.u32 %v2055
        %v2058 = vmul.u32.u64.compose %v2054, %v2049
        %v2059 = vextract.low.u32 %v2058
        %v2060 = vextract.high.u32 %v2058
        %v2061 = vmul.u32 %v2054, %v2045
        %v2062 = vadd.s32 %v2057, %v2059
        %vm2063 = vc.u32 %v2057, %v2059
        %v2064 = vadd.s32 %v2060, 1
        %v2065 = vsel %vm2063, %v2064, %v2060
        %v2066 = vadd.s32 %v2061, %v2065
        %v2067 = vadd.s32 %v2066, 536870912
        %v2068 = vshrl.u32 %v2067, 30
        %v2069 = vshll.u32 %v2068, 30
        %v2070 = vsub.s32 %v2066, %v2069
        %vm2071 = vcmp.lt.s32.totalorder %v2070, 0
        %v2072 = vsub.s32 0, %v2070
        %v2073 = vsel %vm2071, %v2072, %v2070
        %v2074 = vclz %v2073
        %v2075 = vsub.s32 %v2074, 2
        %vm2076 = vcmp.gt.s32.totalorder 0, %v2075
        %v2077 = vsel %vm2076, 0, %v2075
        %v2078 = vsub.s32 32, %v2077
        %v2079 = vshll.u32 %v2070, %v2077
        %v2080 = vshrl.u32 %v2062, %v2078
        %v2081 = vor.u32 %v2079, %v2080
        %v2082 = vsub.s32 4294967266, %v2077
        %v2083 = vadd.s32 %v2082, 127
        %v2084 = vshll.u32 %v2083, 23
        %v2085 = vor.u32 4788187, %v2084
        %v2086 = vand.u32 2147483647, %v2085
        %v2088 = vcvt.s32.f32 %v2081
        %v2089 = vmul.f32 %v2088, %v2086
        %v2090 = vxor.u32 %v2089, 2147483648
        %v2091 = vsel %vm2008, %v2090, %v2089
        %v2092 = vsub.s32 4, %v2068
        %v2093 = vsel %vm2008, %v2092, %v2068
        %v2094 = vsel %vm2007, %v224, %v2091
        %v2095 = vsel %vm2007, 0, %v2093
        %v2096 = vcosq.f32.pop %v2094
        %v2097 = vsinq.f32.pop %v2094
        %vm2098 = vweird.f32 %v224
        %v2099 = vand.u32 %v2095, 3
        %vm2100 = vcmp.lt.s32.totalorder %v2099, 2
        %vm2101 = vcmp.eq.s32.totalorder %v2099, 0
        %v2102 = vxor.u32 %v2097, 2147483648
        %v2103 = vsel %vm2101, %v2096, %v2102
        %vm2104 = vcmp.eq.s32.totalorder %v2099, 2
        %v2105 = vxor.u32 %v2096, 2147483648
        %v2106 = vsel %vm2104, %v2105, %v2097
        %v2107 = vsel %vm2100, %v2103, %v2106
        %v2108 = vsel %vm2098, nan, %v2107
        %v2109 = vand.u32 2147483647, %v225
        %vm2110 = vcmp.le.f32.partialorder %v2109, 0.7853982
        %vm2111 = vcmp.lt.s32.totalorder %v225, 0
        %v2112 = vand.u32 %v225, 2139095040
        %v2113 = vshrl.u32 %v2112, 23
        %v2114 = vsub.s32 %v2113, 127
        %v2115 = vand.u32 2147483647, %v225
        %v2116 = vand.u32 %v2115, 8388607
        %v2117 = vor.u32 %v2116, 8388608
        %v2118 = vsub.s32 0, %v2117
        %v2119 = vadd.s32 %v2114, 1
        %vm2120 = vcmp.gt.s32.totalorder %v2119, 0
        %v2121 = vsel %vm2120, %v2119, 0
        %v2122 = vshrl.u32 %v2121, 5
        %v2123 = vand.u32 %v2121, 31
        %v2124 = vsub.s32 32, %v2123
        %v2125 = vshrl.u32 683565275, %v2124
        %v2126 = vshll.u32 683565275, %v2123
        %v2127 = vshrl.u32 2475754826, %v2124
        %v2128 = vor.u32 %v2126, %v2127
        %v2129 = vshll.u32 2475754826, %v2123
        %v2130 = vshrl.u32 2131351028, %v2124
        %v2131 = vor.u32 %v2129, %v2130
        %v2132 = vshll.u32 2131351028, %v2123
        %v2133 = vshrl.u32 2102212464, %v2124
        %v2134 = vor.u32 %v2132, %v2133
        %v2135 = vshll.u32 2102212464, %v2123
        %v2136 = vshrl.u32 920167782, %v2124
        %v2137 = vor.u32 %v2135, %v2136
        %v2138 = vshll.u32 920167782, %v2123
        %v2139 = vshrl.u32 1326507024, %v2124
        %v2140 = vor.u32 %v2138, %v2139
        %vm2141 = vcmp.lt.s32.totalorder %v2122, 1
        %vm2142 = vcmp.lt.s32.totalorder %v2122, 2
        %vm2143 = vcmp.lt.s32.totalorder %v2122, 3
        %vm2144 = vcmp.lt.s32.totalorder %v2122, 4
        %v2145 = vsel %vm2141, %v2125, %v2128
        %v2146 = vsel %vm2144, %v2134, 2102212464
        %v2147 = vsel %vm2143, %v2131, %v2146
        %v2148 = vsel %vm2142, %v2145, %v2147
        %v2149 = vsel %vm2141, %v2128, %v2131
        %v2150 = vsel %vm2144, %v2137, 920167782
        %v2151 = vsel %vm2143, %v2134, %v2150
        %v2152 = vsel %vm2142, %v2149, %v2151
        %v2153 = vsel %vm2141, %v2131, %v2134
        %v2154 = vsel %vm2144, %v2140, 1326507024
        %v2155 = vsel %vm2143, %v2137, %v2154
        %v2156 = vsel %vm2142, %v2153, %v2155
        %v2157 = vshll.u32 %v2117, 8
        %v2158 = vmul.u32.u64.compose %v2157, %v2156
        %v2159 = vextract.low.u32 %v2158
        %v2160 = vextract.high.u32 %v2158
        %v2161 = vmul.u32.u64.compose %v2157, %v2152
        %v2162 = vextract.low.u32 %v2161
        %v2163 = vextract.high.u32 %v2161
        %v2164 = vmul.u32 %v2157, %v2148
        %v2165 = vadd.s32 %v2160, %v2162
        %vm2166 = vc.u32 %v2160, %v2162
        %v2167 = vadd.s32 %v2163, 1
        %v2168 = vsel %vm2166, %v2167, %v2163
        %v2169 = vadd.s32 %v2164, %v2168
        %v2170 = vadd.s32 %v2169, 536870912
        %v2171 = vshrl.u32 %v2170, 30
        %v2172 = vshll.u32 %v2171, 30
        %v2173 = vsub.s32 %v2169, %v2172
        %vm2174 = vcmp.lt.s32.totalorder %v2173, 0
        %v2175 = vsub.s32 0, %v2173
        %v2176 = vsel %vm2174, %v2175, %v2173
        %v2177 = vclz %v2176
        %v2178 = vsub.s32 %v2177, 2
        %vm2179 = vcmp.gt.s32.totalorder 0, %v2178
        %v2180 = vsel %vm2179, 0, %v2178
        %v2181 = vsub.s32 32, %v2180
        %v2182 = vshll.u32 %v2173, %v2180
        %v2183 = vshrl.u32 %v2165, %v2181
        %v2184 = vor.u32 %v2182, %v2183
        %v2185 = vsub.s32 4294967266, %v2180
        %v2186 = vadd.s32 %v2185, 127
        %v2187 = vshll.u32 %v2186, 23
        %v2188 = vor.u32 4788187, %v2187
        %v2189 = vand.u32 2147483647, %v2188
        %v2191 = vcvt.s32.f32 %v2184
        %v2192 = vmul.f32 %v2191, %v2189
        %v2193 = vxor.u32 %v2192, 2147483648
        %v2194 = vsel %vm2111, %v2193, %v2192
        %v2195 = vsub.s32 4, %v2171
        %v2196 = vsel %vm2111, %v2195, %v2171
        %v2197 = vsel %vm2110, %v225, %v2194
        %v2198 = vsel %vm2110, 0, %v2196
        %v2199 = vcosq.f32.pop %v2197
        %v2200 = vsinq.f32.pop %v2197
        %vm2201 = vweird.f32 %v225
        %v2202 = vand.u32 %v2198, 3
        %vm2203 = vcmp.lt.s32.totalorder %v2202, 2
        %vm2204 = vcmp.eq.s32.totalorder %v2202, 0
        %v2205 = vxor.u32 %v2200, 2147483648
        %v2206 = vsel %vm2204, %v2199, %v2205
        %vm2207 = vcmp.eq.s32.totalorder %v2202, 2
        %v2208 = vxor.u32 %v2199, 2147483648
        %v2209 = vsel %vm2207, %v2208, %v2200
        %v2210 = vsel %vm2203, %v2206, %v2209
        %v2211 = vsel %vm2201, nan, %v2210
        %v2212 = vand.u32 2147483647, %v226
        %vm2213 = vcmp.le.f32.partialorder %v2212, 0.7853982
        %vm2214 = vcmp.lt.s32.totalorder %v226, 0
        %v2215 = vand.u32 %v226, 2139095040
        %v2216 = vshrl.u32 %v2215, 23
        %v2217 = vsub.s32 %v2216, 127
        %v2218 = vand.u32 2147483647, %v226
        %v2219 = vand.u32 %v2218, 8388607
        %v2220 = vor.u32 %v2219, 8388608
        %v2221 = vsub.s32 0, %v2220
        %v2222 = vadd.s32 %v2217, 1
        %vm2223 = vcmp.gt.s32.totalorder %v2222, 0
        %v2224 = vsel %vm2223, %v2222, 0
        %v2225 = vshrl.u32 %v2224, 5
        %v2226 = vand.u32 %v2224, 31
        %v2227 = vsub.s32 32, %v2226
        %v2228 = vshrl.u32 683565275, %v2227
        %v2229 = vshll.u32 683565275, %v2226
        %v2230 = vshrl.u32 2475754826, %v2227
        %v2231 = vor.u32 %v2229, %v2230
        %v2232 = vshll.u32 2475754826, %v2226
        %v2233 = vshrl.u32 2131351028, %v2227
        %v2234 = vor.u32 %v2232, %v2233
        %v2235 = vshll.u32 2131351028, %v2226
        %v2236 = vshrl.u32 2102212464, %v2227
        %v2237 = vor.u32 %v2235, %v2236
        %v2238 = vshll.u32 2102212464, %v2226
        %v2239 = vshrl.u32 920167782, %v2227
        %v2240 = vor.u32 %v2238, %v2239
        %v2241 = vshll.u32 920167782, %v2226
        %v2242 = vshrl.u32 1326507024, %v2227
        %v2243 = vor.u32 %v2241, %v2242
        %vm2244 = vcmp.lt.s32.totalorder %v2225, 1
        %vm2245 = vcmp.lt.s32.totalorder %v2225, 2
        %vm2246 = vcmp.lt.s32.totalorder %v2225, 3
        %vm2247 = vcmp.lt.s32.totalorder %v2225, 4
        %v2248 = vsel %vm2244, %v2228, %v2231
        %v2249 = vsel %vm2247, %v2237, 2102212464
        %v2250 = vsel %vm2246, %v2234, %v2249
        %v2251 = vsel %vm2245, %v2248, %v2250
        %v2252 = vsel %vm2244, %v2231, %v2234
        %v2253 = vsel %vm2247, %v2240, 920167782
        %v2254 = vsel %vm2246, %v2237, %v2253
        %v2255 = vsel %vm2245, %v2252, %v2254
        %v2256 = vsel %vm2244, %v2234, %v2237
        %v2257 = vsel %vm2247, %v2243, 1326507024
        %v2258 = vsel %vm2246, %v2240, %v2257
        %v2259 = vsel %vm2245, %v2256, %v2258
        %v2260 = vshll.u32 %v2220, 8
        %v2261 = vmul.u32.u64.compose %v2260, %v2259
        %v2262 = vextract.low.u32 %v2261
        %v2263 = vextract.high.u32 %v2261
        %v2264 = vmul.u32.u64.compose %v2260, %v2255
        %v2265 = vextract.low.u32 %v2264
        %v2266 = vextract.high.u32 %v2264
        %v2267 = vmul.u32 %v2260, %v2251
        %v2268 = vadd.s32 %v2263, %v2265
        %vm2269 = vc.u32 %v2263, %v2265
        %v2270 = vadd.s32 %v2266, 1
        %v2271 = vsel %vm2269, %v2270, %v2266
        %v2272 = vadd.s32 %v2267, %v2271
        %v2273 = vadd.s32 %v2272, 536870912
        %v2274 = vshrl.u32 %v2273, 30
        %v2275 = vshll.u32 %v2274, 30
        %v2276 = vsub.s32 %v2272, %v2275
        %vm2277 = vcmp.lt.s32.totalorder %v2276, 0
        %v2278 = vsub.s32 0, %v2276
        %v2279 = vsel %vm2277, %v2278, %v2276
        %v2280 = vclz %v2279
        %v2281 = vsub.s32 %v2280, 2
        %vm2282 = vcmp.gt.s32.totalorder 0, %v2281
        %v2283 = vsel %vm2282, 0, %v2281
        %v2284 = vsub.s32 32, %v2283
        %v2285 = vshll.u32 %v2276, %v2283
        %v2286 = vshrl.u32 %v2268, %v2284
        %v2287 = vor.u32 %v2285, %v2286
        %v2288 = vsub.s32 4294967266, %v2283
        %v2289 = vadd.s32 %v2288, 127
        %v2290 = vshll.u32 %v2289, 23
        %v2291 = vor.u32 4788187, %v2290
        %v2292 = vand.u32 2147483647, %v2291
        %v2294 = vcvt.s32.f32 %v2287
        %v2295 = vmul.f32 %v2294, %v2292
        %v2296 = vxor.u32 %v2295, 2147483648
        %v2297 = vsel %vm2214, %v2296, %v2295
        %v2298 = vsub.s32 4, %v2274
        %v2299 = vsel %vm2214, %v2298, %v2274
        %v2300 = vsel %vm2213, %v226, %v2297
        %v2301 = vsel %vm2213, 0, %v2299
        %v2302 = vcosq.f32.pop %v2300
        %v2303 = vsinq.f32.pop %v2300
        %vm2304 = vweird.f32 %v226
        %v2305 = vand.u32 %v2301, 3
        %vm2306 = vcmp.lt.s32.totalorder %v2305, 2
        %vm2307 = vcmp.eq.s32.totalorder %v2305, 0
        %v2308 = vxor.u32 %v2303, 2147483648
        %v2309 = vsel %vm2307, %v2302, %v2308
        %vm2310 = vcmp.eq.s32.totalorder %v2305, 2
        %v2311 = vxor.u32 %v2302, 2147483648
        %v2312 = vsel %vm2310, %v2311, %v2303
        %v2313 = vsel %vm2306, %v2309, %v2312
        %v2314 = vsel %vm2304, nan, %v2313
        %v2315 = vand.u32 2147483647, %v227
        %vm2316 = vcmp.le.f32.partialorder %v2315, 0.7853982
        %vm2317 = vcmp.lt.s32.totalorder %v227, 0
        %v2318 = vand.u32 %v227, 2139095040
        %v2319 = vshrl.u32 %v2318, 23
        %v2320 = vsub.s32 %v2319, 127
        %v2321 = vand.u32 2147483647, %v227
        %v2322 = vand.u32 %v2321, 8388607
        %v2323 = vor.u32 %v2322, 8388608
        %v2324 = vsub.s32 0, %v2323
        %v2325 = vadd.s32 %v2320, 1
        %vm2326 = vcmp.gt.s32.totalorder %v2325, 0
        %v2327 = vsel %vm2326, %v2325, 0
        %v2328 = vshrl.u32 %v2327, 5
        %v2329 = vand.u32 %v2327, 31
        %v2330 = vsub.s32 32, %v2329
        %v2331 = vshrl.u32 683565275, %v2330
        %v2332 = vshll.u32 683565275, %v2329
        %v2333 = vshrl.u32 2475754826, %v2330
        %v2334 = vor.u32 %v2332, %v2333
        %v2335 = vshll.u32 2475754826, %v2329
        %v2336 = vshrl.u32 2131351028, %v2330
        %v2337 = vor.u32 %v2335, %v2336
        %v2338 = vshll.u32 2131351028, %v2329
        %v2339 = vshrl.u32 2102212464, %v2330
        %v2340 = vor.u32 %v2338, %v2339
        %v2341 = vshll.u32 2102212464, %v2329
        %v2342 = vshrl.u32 920167782, %v2330
        %v2343 = vor.u32 %v2341, %v2342
        %v2344 = vshll.u32 920167782, %v2329
        %v2345 = vshrl.u32 1326507024, %v2330
        %v2346 = vor.u32 %v2344, %v2345
        %vm2347 = vcmp.lt.s32.totalorder %v2328, 1
        %vm2348 = vcmp.lt.s32.totalorder %v2328, 2
        %vm2349 = vcmp.lt.s32.totalorder %v2328, 3
        %vm2350 = vcmp.lt.s32.totalorder %v2328, 4
        %v2351 = vsel %vm2347, %v2331, %v2334
        %v2352 = vsel %vm2350, %v2340, 2102212464
        %v2353 = vsel %vm2349, %v2337, %v2352
        %v2354 = vsel %vm2348, %v2351, %v2353
        %v2355 = vsel %vm2347, %v2334, %v2337
        %v2356 = vsel %vm2350, %v2343, 920167782
        %v2357 = vsel %vm2349, %v2340, %v2356
        %v2358 = vsel %vm2348, %v2355, %v2357
        %v2359 = vsel %vm2347, %v2337, %v2340
        %v2360 = vsel %vm2350, %v2346, 1326507024
        %v2361 = vsel %vm2349, %v2343, %v2360
        %v2362 = vsel %vm2348, %v2359, %v2361
        %v2363 = vshll.u32 %v2323, 8
        %v2364 = vmul.u32.u64.compose %v2363, %v2362
        %v2365 = vextract.low.u32 %v2364
        %v2366 = vextract.high.u32 %v2364
        %v2367 = vmul.u32.u64.compose %v2363, %v2358
        %v2368 = vextract.low.u32 %v2367
        %v2369 = vextract.high.u32 %v2367
        %v2370 = vmul.u32 %v2363, %v2354
        %v2371 = vadd.s32 %v2366, %v2368
        %vm2372 = vc.u32 %v2366, %v2368
        %v2373 = vadd.s32 %v2369, 1
        %v2374 = vsel %vm2372, %v2373, %v2369
        %v2375 = vadd.s32 %v2370, %v2374
        %v2376 = vadd.s32 %v2375, 536870912
        %v2377 = vshrl.u32 %v2376, 30
        %v2378 = vshll.u32 %v2377, 30
        %v2379 = vsub.s32 %v2375, %v2378
        %vm2380 = vcmp.lt.s32.totalorder %v2379, 0
        %v2381 = vsub.s32 0, %v2379
        %v2382 = vsel %vm2380, %v2381, %v2379
        %v2383 = vclz %v2382
        %v2384 = vsub.s32 %v2383, 2
        %vm2385 = vcmp.gt.s32.totalorder 0, %v2384
        %v2386 = vsel %vm2385, 0, %v2384
        %v2387 = vsub.s32 32, %v2386
        %v2388 = vshll.u32 %v2379, %v2386
        %v2389 = vshrl.u32 %v2371, %v2387
        %v2390 = vor.u32 %v2388, %v2389
        %v2391 = vsub.s32 4294967266, %v2386
        %v2392 = vadd.s32 %v2391, 127
        %v2393 = vshll.u32 %v2392, 23
        %v2394 = vor.u32 4788187, %v2393
        %v2395 = vand.u32 2147483647, %v2394
        %v2397 = vcvt.s32.f32 %v2390
        %v2398 = vmul.f32 %v2397, %v2395
        %v2399 = vxor.u32 %v2398, 2147483648
        %v2400 = vsel %vm2317, %v2399, %v2398
        %v2401 = vsub.s32 4, %v2377
        %v2402 = vsel %vm2317, %v2401, %v2377
        %v2403 = vsel %vm2316, %v227, %v2400
        %v2404 = vsel %vm2316, 0, %v2402
        %v2405 = vcosq.f32.pop %v2403
        %v2406 = vsinq.f32.pop %v2403
        %vm2407 = vweird.f32 %v227
        %v2408 = vand.u32 %v2404, 3
        %vm2409 = vcmp.lt.s32.totalorder %v2408, 2
        %vm2410 = vcmp.eq.s32.totalorder %v2408, 0
        %v2411 = vxor.u32 %v2406, 2147483648
        %v2412 = vsel %vm2410, %v2405, %v2411
        %vm2413 = vcmp.eq.s32.totalorder %v2408, 2
        %v2414 = vxor.u32 %v2405, 2147483648
        %v2415 = vsel %vm2413, %v2414, %v2406
        %v2416 = vsel %vm2409, %v2412, %v2415
        %v2417 = vsel %vm2407, nan, %v2416
        %v2418 = vand.u32 2147483647, %v228
        %vm2419 = vcmp.le.f32.partialorder %v2418, 0.7853982
        %vm2420 = vcmp.lt.s32.totalorder %v228, 0
        %v2421 = vand.u32 %v228, 2139095040
        %v2422 = vshrl.u32 %v2421, 23
        %v2423 = vsub.s32 %v2422, 127
        %v2424 = vand.u32 2147483647, %v228
        %v2425 = vand.u32 %v2424, 8388607
        %v2426 = vor.u32 %v2425, 8388608
        %v2427 = vsub.s32 0, %v2426
        %v2428 = vadd.s32 %v2423, 1
        %vm2429 = vcmp.gt.s32.totalorder %v2428, 0
        %v2430 = vsel %vm2429, %v2428, 0
        %v2431 = vshrl.u32 %v2430, 5
        %v2432 = vand.u32 %v2430, 31
        %v2433 = vsub.s32 32, %v2432
        %v2434 = vshrl.u32 683565275, %v2433
        %v2435 = vshll.u32 683565275, %v2432
        %v2436 = vshrl.u32 2475754826, %v2433
        %v2437 = vor.u32 %v2435, %v2436
        %v2438 = vshll.u32 2475754826, %v2432
        %v2439 = vshrl.u32 2131351028, %v2433
        %v2440 = vor.u32 %v2438, %v2439
        %v2441 = vshll.u32 2131351028, %v2432
        %v2442 = vshrl.u32 2102212464, %v2433
        %v2443 = vor.u32 %v2441, %v2442
        %v2444 = vshll.u32 2102212464, %v2432
        %v2445 = vshrl.u32 920167782, %v2433
        %v2446 = vor.u32 %v2444, %v2445
        %v2447 = vshll.u32 920167782, %v2432
        %v2448 = vshrl.u32 1326507024, %v2433
        %v2449 = vor.u32 %v2447, %v2448
        %vm2450 = vcmp.lt.s32.totalorder %v2431, 1
        %vm2451 = vcmp.lt.s32.totalorder %v2431, 2
        %vm2452 = vcmp.lt.s32.totalorder %v2431, 3
        %vm2453 = vcmp.lt.s32.totalorder %v2431, 4
        %v2454 = vsel %vm2450, %v2434, %v2437
        %v2455 = vsel %vm2453, %v2443, 2102212464
        %v2456 = vsel %vm2452, %v2440, %v2455
        %v2457 = vsel %vm2451, %v2454, %v2456
        %v2458 = vsel %vm2450, %v2437, %v2440
        %v2459 = vsel %vm2453, %v2446, 920167782
        %v2460 = vsel %vm2452, %v2443, %v2459
        %v2461 = vsel %vm2451, %v2458, %v2460
        %v2462 = vsel %vm2450, %v2440, %v2443
        %v2463 = vsel %vm2453, %v2449, 1326507024
        %v2464 = vsel %vm2452, %v2446, %v2463
        %v2465 = vsel %vm2451, %v2462, %v2464
        %v2466 = vshll.u32 %v2426, 8
        %v2467 = vmul.u32.u64.compose %v2466, %v2465
        %v2468 = vextract.low.u32 %v2467
        %v2469 = vextract.high.u32 %v2467
        %v2470 = vmul.u32.u64.compose %v2466, %v2461
        %v2471 = vextract.low.u32 %v2470
        %v2472 = vextract.high.u32 %v2470
        %v2473 = vmul.u32 %v2466, %v2457
        %v2474 = vadd.s32 %v2469, %v2471
        %vm2475 = vc.u32 %v2469, %v2471
        %v2476 = vadd.s32 %v2472, 1
        %v2477 = vsel %vm2475, %v2476, %v2472
        %v2478 = vadd.s32 %v2473, %v2477
        %v2479 = vadd.s32 %v2478, 536870912
        %v2480 = vshrl.u32 %v2479, 30
        %v2481 = vshll.u32 %v2480, 30
        %v2482 = vsub.s32 %v2478, %v2481
        %vm2483 = vcmp.lt.s32.totalorder %v2482, 0
        %v2484 = vsub.s32 0, %v2482
        %v2485 = vsel %vm2483, %v2484, %v2482
        %v2486 = vclz %v2485
        %v2487 = vsub.s32 %v2486, 2
        %vm2488 = vcmp.gt.s32.totalorder 0, %v2487
        %v2489 = vsel %vm2488, 0, %v2487
        %v2490 = vsub.s32 32, %v2489
        %v2491 = vshll.u32 %v2482, %v2489
        %v2492 = vshrl.u32 %v2474, %v2490
        %v2493 = vor.u32 %v2491, %v2492
        %v2494 = vsub.s32 4294967266, %v2489
        %v2495 = vadd.s32 %v2494, 127
        %v2496 = vshll.u32 %v2495, 23
        %v2497 = vor.u32 4788187, %v2496
        %v2498 = vand.u32 2147483647, %v2497
        %v2500 = vcvt.s32.f32 %v2493
        %v2501 = vmul.f32 %v2500, %v2498
        %v2502 = vxor.u32 %v2501, 2147483648
        %v2503 = vsel %vm2420, %v2502, %v2501
        %v2504 = vsub.s32 4, %v2480
        %v2505 = vsel %vm2420, %v2504, %v2480
        %v2506 = vsel %vm2419, %v228, %v2503
        %v2507 = vsel %vm2419, 0, %v2505
        %v2508 = vcosq.f32.pop %v2506
        %v2509 = vsinq.f32.pop %v2506
        %vm2510 = vweird.f32 %v228
        %v2511 = vand.u32 %v2507, 3
        %vm2512 = vcmp.lt.s32.totalorder %v2511, 2
        %vm2513 = vcmp.eq.s32.totalorder %v2511, 0
        %v2514 = vxor.u32 %v2509, 2147483648
        %v2515 = vsel %vm2513, %v2508, %v2514
        %vm2516 = vcmp.eq.s32.totalorder %v2511, 2
        %v2517 = vxor.u32 %v2508, 2147483648
        %v2518 = vsel %vm2516, %v2517, %v2509
        %v2519 = vsel %vm2512, %v2515, %v2518
        %v2520 = vsel %vm2510, nan, %v2519
        %v2521 = vand.u32 2147483647, %v229
        %vm2522 = vcmp.le.f32.partialorder %v2521, 0.7853982
        %vm2523 = vcmp.lt.s32.totalorder %v229, 0
        %v2524 = vand.u32 %v229, 2139095040
        %v2525 = vshrl.u32 %v2524, 23
        %v2526 = vsub.s32 %v2525, 127
        %v2527 = vand.u32 2147483647, %v229
        %v2528 = vand.u32 %v2527, 8388607
        %v2529 = vor.u32 %v2528, 8388608
        %v2530 = vsub.s32 0, %v2529
        %v2531 = vadd.s32 %v2526, 1
        %vm2532 = vcmp.gt.s32.totalorder %v2531, 0
        %v2533 = vsel %vm2532, %v2531, 0
        %v2534 = vshrl.u32 %v2533, 5
        %v2535 = vand.u32 %v2533, 31
        %v2536 = vsub.s32 32, %v2535
        %v2537 = vshrl.u32 683565275, %v2536
        %v2538 = vshll.u32 683565275, %v2535
        %v2539 = vshrl.u32 2475754826, %v2536
        %v2540 = vor.u32 %v2538, %v2539
        %v2541 = vshll.u32 2475754826, %v2535
        %v2542 = vshrl.u32 2131351028, %v2536
        %v2543 = vor.u32 %v2541, %v2542
        %v2544 = vshll.u32 2131351028, %v2535
        %v2545 = vshrl.u32 2102212464, %v2536
        %v2546 = vor.u32 %v2544, %v2545
        %v2547 = vshll.u32 2102212464, %v2535
        %v2548 = vshrl.u32 920167782, %v2536
        %v2549 = vor.u32 %v2547, %v2548
        %v2550 = vshll.u32 920167782, %v2535
        %v2551 = vshrl.u32 1326507024, %v2536
        %v2552 = vor.u32 %v2550, %v2551
        %vm2553 = vcmp.lt.s32.totalorder %v2534, 1
        %vm2554 = vcmp.lt.s32.totalorder %v2534, 2
        %vm2555 = vcmp.lt.s32.totalorder %v2534, 3
        %vm2556 = vcmp.lt.s32.totalorder %v2534, 4
        %v2557 = vsel %vm2553, %v2537, %v2540
        %v2558 = vsel %vm2556, %v2546, 2102212464
        %v2559 = vsel %vm2555, %v2543, %v2558
        %v2560 = vsel %vm2554, %v2557, %v2559
        %v2561 = vsel %vm2553, %v2540, %v2543
        %v2562 = vsel %vm2556, %v2549, 920167782
        %v2563 = vsel %vm2555, %v2546, %v2562
        %v2564 = vsel %vm2554, %v2561, %v2563
        %v2565 = vsel %vm2553, %v2543, %v2546
        %v2566 = vsel %vm2556, %v2552, 1326507024
        %v2567 = vsel %vm2555, %v2549, %v2566
        %v2568 = vsel %vm2554, %v2565, %v2567
        %v2569 = vshll.u32 %v2529, 8
        %v2570 = vmul.u32.u64.compose %v2569, %v2568
        %v2571 = vextract.low.u32 %v2570
        %v2572 = vextract.high.u32 %v2570
        %v2573 = vmul.u32.u64.compose %v2569, %v2564
        %v2574 = vextract.low.u32 %v2573
        %v2575 = vextract.high.u32 %v2573
        %v2576 = vmul.u32 %v2569, %v2560
        %v2577 = vadd.s32 %v2572, %v2574
        %vm2578 = vc.u32 %v2572, %v2574
        %v2579 = vadd.s32 %v2575, 1
        %v2580 = vsel %vm2578, %v2579, %v2575
        %v2581 = vadd.s32 %v2576, %v2580
        %v2582 = vadd.s32 %v2581, 536870912
        %v2583 = vshrl.u32 %v2582, 30
        %v2584 = vshll.u32 %v2583, 30
        %v2585 = vsub.s32 %v2581, %v2584
        %vm2586 = vcmp.lt.s32.totalorder %v2585, 0
        %v2587 = vsub.s32 0, %v2585
        %v2588 = vsel %vm2586, %v2587, %v2585
        %v2589 = vclz %v2588
        %v2590 = vsub.s32 %v2589, 2
        %vm2591 = vcmp.gt.s32.totalorder 0, %v2590
        %v2592 = vsel %vm2591, 0, %v2590
        %v2593 = vsub.s32 32, %v2592
        %v2594 = vshll.u32 %v2585, %v2592
        %v2595 = vshrl.u32 %v2577, %v2593
        %v2596 = vor.u32 %v2594, %v2595
        %v2597 = vsub.s32 4294967266, %v2592
        %v2598 = vadd.s32 %v2597, 127
        %v2599 = vshll.u32 %v2598, 23
        %v2600 = vor.u32 4788187, %v2599
        %v2601 = vand.u32 2147483647, %v2600
        %v2603 = vcvt.s32.f32 %v2596
        %v2604 = vmul.f32 %v2603, %v2601
        %v2605 = vxor.u32 %v2604, 2147483648
        %v2606 = vsel %vm2523, %v2605, %v2604
        %v2607 = vsub.s32 4, %v2583
        %v2608 = vsel %vm2523, %v2607, %v2583
        %v2609 = vsel %vm2522, %v229, %v2606
        %v2610 = vsel %vm2522, 0, %v2608
        %v2611 = vcosq.f32.pop %v2609
        %v2612 = vsinq.f32.pop %v2609
        %vm2613 = vweird.f32 %v229
        %v2614 = vand.u32 %v2610, 3
        %vm2615 = vcmp.lt.s32.totalorder %v2614, 2
        %vm2616 = vcmp.eq.s32.totalorder %v2614, 0
        %v2617 = vxor.u32 %v2612, 2147483648
        %v2618 = vsel %vm2616, %v2611, %v2617
        %vm2619 = vcmp.eq.s32.totalorder %v2614, 2
        %v2620 = vxor.u32 %v2611, 2147483648
        %v2621 = vsel %vm2619, %v2620, %v2612
        %v2622 = vsel %vm2615, %v2618, %v2621
        %v2623 = vsel %vm2613, nan, %v2622
        %v2624 = vand.u32 2147483647, %v230
        %vm2625 = vcmp.le.f32.partialorder %v2624, 0.7853982
        %vm2626 = vcmp.lt.s32.totalorder %v230, 0
        %v2627 = vand.u32 %v230, 2139095040
        %v2628 = vshrl.u32 %v2627, 23
        %v2629 = vsub.s32 %v2628, 127
        %v2630 = vand.u32 2147483647, %v230
        %v2631 = vand.u32 %v2630, 8388607
        %v2632 = vor.u32 %v2631, 8388608
        %v2633 = vsub.s32 0, %v2632
        %v2634 = vadd.s32 %v2629, 1
        %vm2635 = vcmp.gt.s32.totalorder %v2634, 0
        %v2636 = vsel %vm2635, %v2634, 0
        %v2637 = vshrl.u32 %v2636, 5
        %v2638 = vand.u32 %v2636, 31
        %v2639 = vsub.s32 32, %v2638
        %v2640 = vshrl.u32 683565275, %v2639
        %v2641 = vshll.u32 683565275, %v2638
        %v2642 = vshrl.u32 2475754826, %v2639
        %v2643 = vor.u32 %v2641, %v2642
        %v2644 = vshll.u32 2475754826, %v2638
        %v2645 = vshrl.u32 2131351028, %v2639
        %v2646 = vor.u32 %v2644, %v2645
        %v2647 = vshll.u32 2131351028, %v2638
        %v2648 = vshrl.u32 2102212464, %v2639
        %v2649 = vor.u32 %v2647, %v2648
        %v2650 = vshll.u32 2102212464, %v2638
        %v2651 = vshrl.u32 920167782, %v2639
        %v2652 = vor.u32 %v2650, %v2651
        %v2653 = vshll.u32 920167782, %v2638
        %v2654 = vshrl.u32 1326507024, %v2639
        %v2655 = vor.u32 %v2653, %v2654
        %vm2656 = vcmp.lt.s32.totalorder %v2637, 1
        %vm2657 = vcmp.lt.s32.totalorder %v2637, 2
        %vm2658 = vcmp.lt.s32.totalorder %v2637, 3
        %vm2659 = vcmp.lt.s32.totalorder %v2637, 4
        %v2660 = vsel %vm2656, %v2640, %v2643
        %v2661 = vsel %vm2659, %v2649, 2102212464
        %v2662 = vsel %vm2658, %v2646, %v2661
        %v2663 = vsel %vm2657, %v2660, %v2662
        %v2664 = vsel %vm2656, %v2643, %v2646
        %v2665 = vsel %vm2659, %v2652, 920167782
        %v2666 = vsel %vm2658, %v2649, %v2665
        %v2667 = vsel %vm2657, %v2664, %v2666
        %v2668 = vsel %vm2656, %v2646, %v2649
        %v2669 = vsel %vm2659, %v2655, 1326507024
        %v2670 = vsel %vm2658, %v2652, %v2669
        %v2671 = vsel %vm2657, %v2668, %v2670
        %v2672 = vshll.u32 %v2632, 8
        %v2673 = vmul.u32.u64.compose %v2672, %v2671
        %v2674 = vextract.low.u32 %v2673
        %v2675 = vextract.high.u32 %v2673
        %v2676 = vmul.u32.u64.compose %v2672, %v2667
        %v2677 = vextract.low.u32 %v2676
        %v2678 = vextract.high.u32 %v2676
        %v2679 = vmul.u32 %v2672, %v2663
        %v2680 = vadd.s32 %v2675, %v2677
        %vm2681 = vc.u32 %v2675, %v2677
        %v2682 = vadd.s32 %v2678, 1
        %v2683 = vsel %vm2681, %v2682, %v2678
        %v2684 = vadd.s32 %v2679, %v2683
        %v2685 = vadd.s32 %v2684, 536870912
        %v2686 = vshrl.u32 %v2685, 30
        %v2687 = vshll.u32 %v2686, 30
        %v2688 = vsub.s32 %v2684, %v2687
        %vm2689 = vcmp.lt.s32.totalorder %v2688, 0
        %v2690 = vsub.s32 0, %v2688
        %v2691 = vsel %vm2689, %v2690, %v2688
        %v2692 = vclz %v2691
        %v2693 = vsub.s32 %v2692, 2
        %vm2694 = vcmp.gt.s32.totalorder 0, %v2693
        %v2695 = vsel %vm2694, 0, %v2693
        %v2696 = vsub.s32 32, %v2695
        %v2697 = vshll.u32 %v2688, %v2695
        %v2698 = vshrl.u32 %v2680, %v2696
        %v2699 = vor.u32 %v2697, %v2698
        %v2700 = vsub.s32 4294967266, %v2695
        %v2701 = vadd.s32 %v2700, 127
        %v2702 = vshll.u32 %v2701, 23
        %v2703 = vor.u32 4788187, %v2702
        %v2704 = vand.u32 2147483647, %v2703
        %v2706 = vcvt.s32.f32 %v2699
        %v2707 = vmul.f32 %v2706, %v2704
        %v2708 = vxor.u32 %v2707, 2147483648
        %v2709 = vsel %vm2626, %v2708, %v2707
        %v2710 = vsub.s32 4, %v2686
        %v2711 = vsel %vm2626, %v2710, %v2686
        %v2712 = vsel %vm2625, %v230, %v2709
        %v2713 = vsel %vm2625, 0, %v2711
        %v2714 = vcosq.f32.pop %v2712
        %v2715 = vsinq.f32.pop %v2712
        %vm2716 = vweird.f32 %v230
        %v2717 = vand.u32 %v2713, 3
        %vm2718 = vcmp.lt.s32.totalorder %v2717, 2
        %vm2719 = vcmp.eq.s32.totalorder %v2717, 0
        %v2720 = vxor.u32 %v2715, 2147483648
        %v2721 = vsel %vm2719, %v2714, %v2720
        %vm2722 = vcmp.eq.s32.totalorder %v2717, 2
        %v2723 = vxor.u32 %v2714, 2147483648
        %v2724 = vsel %vm2722, %v2723, %v2715
        %v2725 = vsel %vm2718, %v2721, %v2724
        %v2726 = vsel %vm2716, nan, %v2725
        %v2727 = vand.u32 2147483647, %v231
        %vm2728 = vcmp.le.f32.partialorder %v2727, 0.7853982
        %vm2729 = vcmp.lt.s32.totalorder %v231, 0
        %v2730 = vand.u32 %v231, 2139095040
        %v2731 = vshrl.u32 %v2730, 23
        %v2732 = vsub.s32 %v2731, 127
        %v2733 = vand.u32 2147483647, %v231
        %v2734 = vand.u32 %v2733, 8388607
        %v2735 = vor.u32 %v2734, 8388608
        %v2736 = vsub.s32 0, %v2735
        %v2737 = vadd.s32 %v2732, 1
        %vm2738 = vcmp.gt.s32.totalorder %v2737, 0
        %v2739 = vsel %vm2738, %v2737, 0
        %v2740 = vshrl.u32 %v2739, 5
        %v2741 = vand.u32 %v2739, 31
        %v2742 = vsub.s32 32, %v2741
        %v2743 = vshrl.u32 683565275, %v2742
        %v2744 = vshll.u32 683565275, %v2741
        %v2745 = vshrl.u32 2475754826, %v2742
        %v2746 = vor.u32 %v2744, %v2745
        %v2747 = vshll.u32 2475754826, %v2741
        %v2748 = vshrl.u32 2131351028, %v2742
        %v2749 = vor.u32 %v2747, %v2748
        %v2750 = vshll.u32 2131351028, %v2741
        %v2751 = vshrl.u32 2102212464, %v2742
        %v2752 = vor.u32 %v2750, %v2751
        %v2753 = vshll.u32 2102212464, %v2741
        %v2754 = vshrl.u32 920167782, %v2742
        %v2755 = vor.u32 %v2753, %v2754
        %v2756 = vshll.u32 920167782, %v2741
        %v2757 = vshrl.u32 1326507024, %v2742
        %v2758 = vor.u32 %v2756, %v2757
        %vm2759 = vcmp.lt.s32.totalorder %v2740, 1
        %vm2760 = vcmp.lt.s32.totalorder %v2740, 2
        %vm2761 = vcmp.lt.s32.totalorder %v2740, 3
        %vm2762 = vcmp.lt.s32.totalorder %v2740, 4
        %v2763 = vsel %vm2759, %v2743, %v2746
        %v2764 = vsel %vm2762, %v2752, 2102212464
        %v2765 = vsel %vm2761, %v2749, %v2764
        %v2766 = vsel %vm2760, %v2763, %v2765
        %v2767 = vsel %vm2759, %v2746, %v2749
        %v2768 = vsel %vm2762, %v2755, 920167782
        %v2769 = vsel %vm2761, %v2752, %v2768
        %v2770 = vsel %vm2760, %v2767, %v2769
        %v2771 = vsel %vm2759, %v2749, %v2752
        %v2772 = vsel %vm2762, %v2758, 1326507024
        %v2773 = vsel %vm2761, %v2755, %v2772
        %v2774 = vsel %vm2760, %v2771, %v2773
        %v2775 = vshll.u32 %v2735, 8
        %v2776 = vmul.u32.u64.compose %v2775, %v2774
        %v2777 = vextract.low.u32 %v2776
        %v2778 = vextract.high.u32 %v2776
        %v2779 = vmul.u32.u64.compose %v2775, %v2770
        %v2780 = vextract.low.u32 %v2779
        %v2781 = vextract.high.u32 %v2779
        %v2782 = vmul.u32 %v2775, %v2766
        %v2783 = vadd.s32 %v2778, %v2780
        %vm2784 = vc.u32 %v2778, %v2780
        %v2785 = vadd.s32 %v2781, 1
        %v2786 = vsel %vm2784, %v2785, %v2781
        %v2787 = vadd.s32 %v2782, %v2786
        %v2788 = vadd.s32 %v2787, 536870912
        %v2789 = vshrl.u32 %v2788, 30
        %v2790 = vshll.u32 %v2789, 30
        %v2791 = vsub.s32 %v2787, %v2790
        %vm2792 = vcmp.lt.s32.totalorder %v2791, 0
        %v2793 = vsub.s32 0, %v2791
        %v2794 = vsel %vm2792, %v2793, %v2791
        %v2795 = vclz %v2794
        %v2796 = vsub.s32 %v2795, 2
        %vm2797 = vcmp.gt.s32.totalorder 0, %v2796
        %v2798 = vsel %vm2797, 0, %v2796
        %v2799 = vsub.s32 32, %v2798
        %v2800 = vshll.u32 %v2791, %v2798
        %v2801 = vshrl.u32 %v2783, %v2799
        %v2802 = vor.u32 %v2800, %v2801
        %v2803 = vsub.s32 4294967266, %v2798
        %v2804 = vadd.s32 %v2803, 127
        %v2805 = vshll.u32 %v2804, 23
        %v2806 = vor.u32 4788187, %v2805
        %v2807 = vand.u32 2147483647, %v2806
        %v2809 = vcvt.s32.f32 %v2802
        %v2810 = vmul.f32 %v2809, %v2807
        %v2811 = vxor.u32 %v2810, 2147483648
        %v2812 = vsel %vm2729, %v2811, %v2810
        %v2813 = vsub.s32 4, %v2789
        %v2814 = vsel %vm2729, %v2813, %v2789
        %v2815 = vsel %vm2728, %v231, %v2812
        %v2816 = vsel %vm2728, 0, %v2814
        %v2817 = vcosq.f32.pop %v2815
        %v2818 = vsinq.f32.pop %v2815
        %vm2819 = vweird.f32 %v231
        %v2820 = vand.u32 %v2816, 3
        %vm2821 = vcmp.lt.s32.totalorder %v2820, 2
        %vm2822 = vcmp.eq.s32.totalorder %v2820, 0
        %v2823 = vxor.u32 %v2818, 2147483648
        %v2824 = vsel %vm2822, %v2817, %v2823
        %vm2825 = vcmp.eq.s32.totalorder %v2820, 2
        %v2826 = vxor.u32 %v2817, 2147483648
        %v2827 = vsel %vm2825, %v2826, %v2818
        %v2828 = vsel %vm2821, %v2824, %v2827
        %v2829 = vsel %vm2819, nan, %v2828
        %v2830 = vand.u32 2147483647, %v232
        %vm2831 = vcmp.le.f32.partialorder %v2830, 0.7853982
        %vm2832 = vcmp.lt.s32.totalorder %v232, 0
        %v2833 = vand.u32 %v232, 2139095040
        %v2834 = vshrl.u32 %v2833, 23
        %v2835 = vsub.s32 %v2834, 127
        %v2836 = vand.u32 2147483647, %v232
        %v2837 = vand.u32 %v2836, 8388607
        %v2838 = vor.u32 %v2837, 8388608
        %v2839 = vsub.s32 0, %v2838
        %v2840 = vadd.s32 %v2835, 1
        %vm2841 = vcmp.gt.s32.totalorder %v2840, 0
        %v2842 = vsel %vm2841, %v2840, 0
        %v2843 = vshrl.u32 %v2842, 5
        %v2844 = vand.u32 %v2842, 31
        %v2845 = vsub.s32 32, %v2844
        %v2846 = vshrl.u32 683565275, %v2845
        %v2847 = vshll.u32 683565275, %v2844
        %v2848 = vshrl.u32 2475754826, %v2845
        %v2849 = vor.u32 %v2847, %v2848
        %v2850 = vshll.u32 2475754826, %v2844
        %v2851 = vshrl.u32 2131351028, %v2845
        %v2852 = vor.u32 %v2850, %v2851
        %v2853 = vshll.u32 2131351028, %v2844
        %v2854 = vshrl.u32 2102212464, %v2845
        %v2855 = vor.u32 %v2853, %v2854
        %v2856 = vshll.u32 2102212464, %v2844
        %v2857 = vshrl.u32 920167782, %v2845
        %v2858 = vor.u32 %v2856, %v2857
        %v2859 = vshll.u32 920167782, %v2844
        %v2860 = vshrl.u32 1326507024, %v2845
        %v2861 = vor.u32 %v2859, %v2860
        %vm2862 = vcmp.lt.s32.totalorder %v2843, 1
        %vm2863 = vcmp.lt.s32.totalorder %v2843, 2
        %vm2864 = vcmp.lt.s32.totalorder %v2843, 3
        %vm2865 = vcmp.lt.s32.totalorder %v2843, 4
        %v2866 = vsel %vm2862, %v2846, %v2849
        %v2867 = vsel %vm2865, %v2855, 2102212464
        %v2868 = vsel %vm2864, %v2852, %v2867
        %v2869 = vsel %vm2863, %v2866, %v2868
        %v2870 = vsel %vm2862, %v2849, %v2852
        %v2871 = vsel %vm2865, %v2858, 920167782
        %v2872 = vsel %vm2864, %v2855, %v2871
        %v2873 = vsel %vm2863, %v2870, %v2872
        %v2874 = vsel %vm2862, %v2852, %v2855
        %v2875 = vsel %vm2865, %v2861, 1326507024
        %v2876 = vsel %vm2864, %v2858, %v2875
        %v2877 = vsel %vm2863, %v2874, %v2876
        %v2878 = vshll.u32 %v2838, 8
        %v2879 = vmul.u32.u64.compose %v2878, %v2877
        %v2880 = vextract.low.u32 %v2879
        %v2881 = vextract.high.u32 %v2879
        %v2882 = vmul.u32.u64.compose %v2878, %v2873
        %v2883 = vextract.low.u32 %v2882
        %v2884 = vextract.high.u32 %v2882
        %v2885 = vmul.u32 %v2878, %v2869
        %v2886 = vadd.s32 %v2881, %v2883
        %vm2887 = vc.u32 %v2881, %v2883
        %v2888 = vadd.s32 %v2884, 1
        %v2889 = vsel %vm2887, %v2888, %v2884
        %v2890 = vadd.s32 %v2885, %v2889
        %v2891 = vadd.s32 %v2890, 536870912
        %v2892 = vshrl.u32 %v2891, 30
        %v2893 = vshll.u32 %v2892, 30
        %v2894 = vsub.s32 %v2890, %v2893
        %vm2895 = vcmp.lt.s32.totalorder %v2894, 0
        %v2896 = vsub.s32 0, %v2894
        %v2897 = vsel %vm2895, %v2896, %v2894
        %v2898 = vclz %v2897
        %v2899 = vsub.s32 %v2898, 2
        %vm2900 = vcmp.gt.s32.totalorder 0, %v2899
        %v2901 = vsel %vm2900, 0, %v2899
        %v2902 = vsub.s32 32, %v2901
        %v2903 = vshll.u32 %v2894, %v2901
        %v2904 = vshrl.u32 %v2886, %v2902
        %v2905 = vor.u32 %v2903, %v2904
        %v2906 = vsub.s32 4294967266, %v2901
        %v2907 = vadd.s32 %v2906, 127
        %v2908 = vshll.u32 %v2907, 23
        %v2909 = vor.u32 4788187, %v2908
        %v2910 = vand.u32 2147483647, %v2909
        %v2912 = vcvt.s32.f32 %v2905
        %v2913 = vmul.f32 %v2912, %v2910
        %v2914 = vxor.u32 %v2913, 2147483648
        %v2915 = vsel %vm2832, %v2914, %v2913
        %v2916 = vsub.s32 4, %v2892
        %v2917 = vsel %vm2832, %v2916, %v2892
        %v2918 = vsel %vm2831, %v232, %v2915
        %v2919 = vsel %vm2831, 0, %v2917
        %v2920 = vcosq.f32.pop %v2918
        %v2921 = vsinq.f32.pop %v2918
        %vm2922 = vweird.f32 %v232
        %v2923 = vand.u32 %v2919, 3
        %vm2924 = vcmp.lt.s32.totalorder %v2923, 2
        %vm2925 = vcmp.eq.s32.totalorder %v2923, 0
        %v2926 = vxor.u32 %v2921, 2147483648
        %v2927 = vsel %vm2925, %v2920, %v2926
        %vm2928 = vcmp.eq.s32.totalorder %v2923, 2
        %v2929 = vxor.u32 %v2920, 2147483648
        %v2930 = vsel %vm2928, %v2929, %v2921
        %v2931 = vsel %vm2924, %v2927, %v2930
        %v2932 = vsel %vm2922, nan, %v2931
        %v2933 = vand.u32 2147483647, %v233
        %vm2934 = vcmp.le.f32.partialorder %v2933, 0.7853982
        %vm2935 = vcmp.lt.s32.totalorder %v233, 0
        %v2936 = vand.u32 %v233, 2139095040
        %v2937 = vshrl.u32 %v2936, 23
        %v2938 = vsub.s32 %v2937, 127
        %v2939 = vand.u32 2147483647, %v233
        %v2940 = vand.u32 %v2939, 8388607
        %v2941 = vor.u32 %v2940, 8388608
        %v2942 = vsub.s32 0, %v2941
        %v2943 = vadd.s32 %v2938, 1
        %vm2944 = vcmp.gt.s32.totalorder %v2943, 0
        %v2945 = vsel %vm2944, %v2943, 0
        %v2946 = vshrl.u32 %v2945, 5
        %v2947 = vand.u32 %v2945, 31
        %v2948 = vsub.s32 32, %v2947
        %v2949 = vshrl.u32 683565275, %v2948
        %v2950 = vshll.u32 683565275, %v2947
        %v2951 = vshrl.u32 2475754826, %v2948
        %v2952 = vor.u32 %v2950, %v2951
        %v2953 = vshll.u32 2475754826, %v2947
        %v2954 = vshrl.u32 2131351028, %v2948
        %v2955 = vor.u32 %v2953, %v2954
        %v2956 = vshll.u32 2131351028, %v2947
        %v2957 = vshrl.u32 2102212464, %v2948
        %v2958 = vor.u32 %v2956, %v2957
        %v2959 = vshll.u32 2102212464, %v2947
        %v2960 = vshrl.u32 920167782, %v2948
        %v2961 = vor.u32 %v2959, %v2960
        %v2962 = vshll.u32 920167782, %v2947
        %v2963 = vshrl.u32 1326507024, %v2948
        %v2964 = vor.u32 %v2962, %v2963
        %vm2965 = vcmp.lt.s32.totalorder %v2946, 1
        %vm2966 = vcmp.lt.s32.totalorder %v2946, 2
        %vm2967 = vcmp.lt.s32.totalorder %v2946, 3
        %vm2968 = vcmp.lt.s32.totalorder %v2946, 4
        %v2969 = vsel %vm2965, %v2949, %v2952
        %v2970 = vsel %vm2968, %v2958, 2102212464
        %v2971 = vsel %vm2967, %v2955, %v2970
        %v2972 = vsel %vm2966, %v2969, %v2971
        %v2973 = vsel %vm2965, %v2952, %v2955
        %v2974 = vsel %vm2968, %v2961, 920167782
        %v2975 = vsel %vm2967, %v2958, %v2974
        %v2976 = vsel %vm2966, %v2973, %v2975
        %v2977 = vsel %vm2965, %v2955, %v2958
        %v2978 = vsel %vm2968, %v2964, 1326507024
        %v2979 = vsel %vm2967, %v2961, %v2978
        %v2980 = vsel %vm2966, %v2977, %v2979
        %v2981 = vshll.u32 %v2941, 8
        %v2982 = vmul.u32.u64.compose %v2981, %v2980
        %v2983 = vextract.low.u32 %v2982
        %v2984 = vextract.high.u32 %v2982
        %v2985 = vmul.u32.u64.compose %v2981, %v2976
        %v2986 = vextract.low.u32 %v2985
        %v2987 = vextract.high.u32 %v2985
        %v2988 = vmul.u32 %v2981, %v2972
        %v2989 = vadd.s32 %v2984, %v2986
        %vm2990 = vc.u32 %v2984, %v2986
        %v2991 = vadd.s32 %v2987, 1
        %v2992 = vsel %vm2990, %v2991, %v2987
        %v2993 = vadd.s32 %v2988, %v2992
        %v2994 = vadd.s32 %v2993, 536870912
        %v2995 = vshrl.u32 %v2994, 30
        %v2996 = vshll.u32 %v2995, 30
        %v2997 = vsub.s32 %v2993, %v2996
        %vm2998 = vcmp.lt.s32.totalorder %v2997, 0
        %v2999 = vsub.s32 0, %v2997
        %v3000 = vsel %vm2998, %v2999, %v2997
        %v3001 = vclz %v3000
        %v3002 = vsub.s32 %v3001, 2
        %vm3003 = vcmp.gt.s32.totalorder 0, %v3002
        %v3004 = vsel %vm3003, 0, %v3002
        %v3005 = vsub.s32 32, %v3004
        %v3006 = vshll.u32 %v2997, %v3004
        %v3007 = vshrl.u32 %v2989, %v3005
        %v3008 = vor.u32 %v3006, %v3007
        %v3009 = vsub.s32 4294967266, %v3004
        %v3010 = vadd.s32 %v3009, 127
        %v3011 = vshll.u32 %v3010, 23
        %v3012 = vor.u32 4788187, %v3011
        %v3013 = vand.u32 2147483647, %v3012
        %v3015 = vcvt.s32.f32 %v3008
        %v3016 = vmul.f32 %v3015, %v3013
        %v3017 = vxor.u32 %v3016, 2147483648
        %v3018 = vsel %vm2935, %v3017, %v3016
        %v3019 = vsub.s32 4, %v2995
        %v3020 = vsel %vm2935, %v3019, %v2995
        %v3021 = vsel %vm2934, %v233, %v3018
        %v3022 = vsel %vm2934, 0, %v3020
        %v3023 = vcosq.f32.pop %v3021
        %v3024 = vsinq.f32.pop %v3021
        %vm3025 = vweird.f32 %v233
        %v3026 = vand.u32 %v3022, 3
        %vm3027 = vcmp.lt.s32.totalorder %v3026, 2
        %vm3028 = vcmp.eq.s32.totalorder %v3026, 0
        %v3029 = vxor.u32 %v3024, 2147483648
        %v3030 = vsel %vm3028, %v3023, %v3029
        %vm3031 = vcmp.eq.s32.totalorder %v3026, 2
        %v3032 = vxor.u32 %v3023, 2147483648
        %v3033 = vsel %vm3031, %v3032, %v3024
        %v3034 = vsel %vm3027, %v3030, %v3033
        %v3035 = vsel %vm3025, nan, %v3034
        %v3036 = vand.u32 2147483647, %v234
        %vm3037 = vcmp.le.f32.partialorder %v3036, 0.7853982
        %vm3038 = vcmp.lt.s32.totalorder %v234, 0
        %v3039 = vand.u32 %v234, 2139095040
        %v3040 = vshrl.u32 %v3039, 23
        %v3041 = vsub.s32 %v3040, 127
        %v3042 = vand.u32 2147483647, %v234
        %v3043 = vand.u32 %v3042, 8388607
        %v3044 = vor.u32 %v3043, 8388608
        %v3045 = vsub.s32 0, %v3044
        %v3046 = vadd.s32 %v3041, 1
        %vm3047 = vcmp.gt.s32.totalorder %v3046, 0
        %v3048 = vsel %vm3047, %v3046, 0
        %v3049 = vshrl.u32 %v3048, 5
        %v3050 = vand.u32 %v3048, 31
        %v3051 = vsub.s32 32, %v3050
        %v3052 = vshrl.u32 683565275, %v3051
        %v3053 = vshll.u32 683565275, %v3050
        %v3054 = vshrl.u32 2475754826, %v3051
        %v3055 = vor.u32 %v3053, %v3054
        %v3056 = vshll.u32 2475754826, %v3050
        %v3057 = vshrl.u32 2131351028, %v3051
        %v3058 = vor.u32 %v3056, %v3057
        %v3059 = vshll.u32 2131351028, %v3050
        %v3060 = vshrl.u32 2102212464, %v3051
        %v3061 = vor.u32 %v3059, %v3060
        %v3062 = vshll.u32 2102212464, %v3050
        %v3063 = vshrl.u32 920167782, %v3051
        %v3064 = vor.u32 %v3062, %v3063
        %v3065 = vshll.u32 920167782, %v3050
        %v3066 = vshrl.u32 1326507024, %v3051
        %v3067 = vor.u32 %v3065, %v3066
        %vm3068 = vcmp.lt.s32.totalorder %v3049, 1
        %vm3069 = vcmp.lt.s32.totalorder %v3049, 2
        %vm3070 = vcmp.lt.s32.totalorder %v3049, 3
        %vm3071 = vcmp.lt.s32.totalorder %v3049, 4
        %v3072 = vsel %vm3068, %v3052, %v3055
        %v3073 = vsel %vm3071, %v3061, 2102212464
        %v3074 = vsel %vm3070, %v3058, %v3073
        %v3075 = vsel %vm3069, %v3072, %v3074
        %v3076 = vsel %vm3068, %v3055, %v3058
        %v3077 = vsel %vm3071, %v3064, 920167782
        %v3078 = vsel %vm3070, %v3061, %v3077
        %v3079 = vsel %vm3069, %v3076, %v3078
        %v3080 = vsel %vm3068, %v3058, %v3061
        %v3081 = vsel %vm3071, %v3067, 1326507024
        %v3082 = vsel %vm3070, %v3064, %v3081
        %v3083 = vsel %vm3069, %v3080, %v3082
        %v3084 = vshll.u32 %v3044, 8
        %v3085 = vmul.u32.u64.compose %v3084, %v3083
        %v3086 = vextract.low.u32 %v3085
        %v3087 = vextract.high.u32 %v3085
        %v3088 = vmul.u32.u64.compose %v3084, %v3079
        %v3089 = vextract.low.u32 %v3088
        %v3090 = vextract.high.u32 %v3088
        %v3091 = vmul.u32 %v3084, %v3075
        %v3092 = vadd.s32 %v3087, %v3089
        %vm3093 = vc.u32 %v3087, %v3089
        %v3094 = vadd.s32 %v3090, 1
        %v3095 = vsel %vm3093, %v3094, %v3090
        %v3096 = vadd.s32 %v3091, %v3095
        %v3097 = vadd.s32 %v3096, 536870912
        %v3098 = vshrl.u32 %v3097, 30
        %v3099 = vshll.u32 %v3098, 30
        %v3100 = vsub.s32 %v3096, %v3099
        %vm3101 = vcmp.lt.s32.totalorder %v3100, 0
        %v3102 = vsub.s32 0, %v3100
        %v3103 = vsel %vm3101, %v3102, %v3100
        %v3104 = vclz %v3103
        %v3105 = vsub.s32 %v3104, 2
        %vm3106 = vcmp.gt.s32.totalorder 0, %v3105
        %v3107 = vsel %vm3106, 0, %v3105
        %v3108 = vsub.s32 32, %v3107
        %v3109 = vshll.u32 %v3100, %v3107
        %v3110 = vshrl.u32 %v3092, %v3108
        %v3111 = vor.u32 %v3109, %v3110
        %v3112 = vsub.s32 4294967266, %v3107
        %v3113 = vadd.s32 %v3112, 127
        %v3114 = vshll.u32 %v3113, 23
        %v3115 = vor.u32 4788187, %v3114
        %v3116 = vand.u32 2147483647, %v3115
        %v3118 = vcvt.s32.f32 %v3111
        %v3119 = vmul.f32 %v3118, %v3116
        %v3120 = vxor.u32 %v3119, 2147483648
        %v3121 = vsel %vm3038, %v3120, %v3119
        %v3122 = vsub.s32 4, %v3098
        %v3123 = vsel %vm3038, %v3122, %v3098
        %v3124 = vsel %vm3037, %v234, %v3121
        %v3125 = vsel %vm3037, 0, %v3123
        %v3126 = vcosq.f32.pop %v3124
        %v3127 = vsinq.f32.pop %v3124
        %vm3128 = vweird.f32 %v234
        %v3129 = vand.u32 %v3125, 3
        %vm3130 = vcmp.lt.s32.totalorder %v3129, 2
        %vm3131 = vcmp.eq.s32.totalorder %v3129, 0
        %v3132 = vxor.u32 %v3127, 2147483648
        %v3133 = vsel %vm3131, %v3126, %v3132
        %vm3134 = vcmp.eq.s32.totalorder %v3129, 2
        %v3135 = vxor.u32 %v3126, 2147483648
        %v3136 = vsel %vm3134, %v3135, %v3127
        %v3137 = vsel %vm3130, %v3133, %v3136
        %v3138 = vsel %vm3128, nan, %v3137
        %v3139 = vand.u32 2147483647, %v235
        %vm3140 = vcmp.le.f32.partialorder %v3139, 0.7853982
        %vm3141 = vcmp.lt.s32.totalorder %v235, 0
        %v3142 = vand.u32 %v235, 2139095040
        %v3143 = vshrl.u32 %v3142, 23
        %v3144 = vsub.s32 %v3143, 127
        %v3145 = vand.u32 2147483647, %v235
        %v3146 = vand.u32 %v3145, 8388607
        %v3147 = vor.u32 %v3146, 8388608
        %v3148 = vsub.s32 0, %v3147
        %v3149 = vadd.s32 %v3144, 1
        %vm3150 = vcmp.gt.s32.totalorder %v3149, 0
        %v3151 = vsel %vm3150, %v3149, 0
        %v3152 = vshrl.u32 %v3151, 5
        %v3153 = vand.u32 %v3151, 31
        %v3154 = vsub.s32 32, %v3153
        %v3155 = vshrl.u32 683565275, %v3154
        %v3156 = vshll.u32 683565275, %v3153
        %v3157 = vshrl.u32 2475754826, %v3154
        %v3158 = vor.u32 %v3156, %v3157
        %v3159 = vshll.u32 2475754826, %v3153
        %v3160 = vshrl.u32 2131351028, %v3154
        %v3161 = vor.u32 %v3159, %v3160
        %v3162 = vshll.u32 2131351028, %v3153
        %v3163 = vshrl.u32 2102212464, %v3154
        %v3164 = vor.u32 %v3162, %v3163
        %v3165 = vshll.u32 2102212464, %v3153
        %v3166 = vshrl.u32 920167782, %v3154
        %v3167 = vor.u32 %v3165, %v3166
        %v3168 = vshll.u32 920167782, %v3153
        %v3169 = vshrl.u32 1326507024, %v3154
        %v3170 = vor.u32 %v3168, %v3169
        %vm3171 = vcmp.lt.s32.totalorder %v3152, 1
        %vm3172 = vcmp.lt.s32.totalorder %v3152, 2
        %vm3173 = vcmp.lt.s32.totalorder %v3152, 3
        %vm3174 = vcmp.lt.s32.totalorder %v3152, 4
        %v3175 = vsel %vm3171, %v3155, %v3158
        %v3176 = vsel %vm3174, %v3164, 2102212464
        %v3177 = vsel %vm3173, %v3161, %v3176
        %v3178 = vsel %vm3172, %v3175, %v3177
        %v3179 = vsel %vm3171, %v3158, %v3161
        %v3180 = vsel %vm3174, %v3167, 920167782
        %v3181 = vsel %vm3173, %v3164, %v3180
        %v3182 = vsel %vm3172, %v3179, %v3181
        %v3183 = vsel %vm3171, %v3161, %v3164
        %v3184 = vsel %vm3174, %v3170, 1326507024
        %v3185 = vsel %vm3173, %v3167, %v3184
        %v3186 = vsel %vm3172, %v3183, %v3185
        %v3187 = vshll.u32 %v3147, 8
        %v3188 = vmul.u32.u64.compose %v3187, %v3186
        %v3189 = vextract.low.u32 %v3188
        %v3190 = vextract.high.u32 %v3188
        %v3191 = vmul.u32.u64.compose %v3187, %v3182
        %v3192 = vextract.low.u32 %v3191
        %v3193 = vextract.high.u32 %v3191
        %v3194 = vmul.u32 %v3187, %v3178
        %v3195 = vadd.s32 %v3190, %v3192
        %vm3196 = vc.u32 %v3190, %v3192
        %v3197 = vadd.s32 %v3193, 1
        %v3198 = vsel %vm3196, %v3197, %v3193
        %v3199 = vadd.s32 %v3194, %v3198
        %v3200 = vadd.s32 %v3199, 536870912
        %v3201 = vshrl.u32 %v3200, 30
        %v3202 = vshll.u32 %v3201, 30
        %v3203 = vsub.s32 %v3199, %v3202
        %vm3204 = vcmp.lt.s32.totalorder %v3203, 0
        %v3205 = vsub.s32 0, %v3203
        %v3206 = vsel %vm3204, %v3205, %v3203
        %v3207 = vclz %v3206
        %v3208 = vsub.s32 %v3207, 2
        %vm3209 = vcmp.gt.s32.totalorder 0, %v3208
        %v3210 = vsel %vm3209, 0, %v3208
        %v3211 = vsub.s32 32, %v3210
        %v3212 = vshll.u32 %v3203, %v3210
        %v3213 = vshrl.u32 %v3195, %v3211
        %v3214 = vor.u32 %v3212, %v3213
        %v3215 = vsub.s32 4294967266, %v3210
        %v3216 = vadd.s32 %v3215, 127
        %v3217 = vshll.u32 %v3216, 23
        %v3218 = vor.u32 4788187, %v3217
        %v3219 = vand.u32 2147483647, %v3218
        %v3221 = vcvt.s32.f32 %v3214
        %v3222 = vmul.f32 %v3221, %v3219
        %v3223 = vxor.u32 %v3222, 2147483648
        %v3224 = vsel %vm3141, %v3223, %v3222
        %v3225 = vsub.s32 4, %v3201
        %v3226 = vsel %vm3141, %v3225, %v3201
        %v3227 = vsel %vm3140, %v235, %v3224
        %v3228 = vsel %vm3140, 0, %v3226
        %v3229 = vcosq.f32.pop %v3227
        %v3230 = vsinq.f32.pop %v3227
        %vm3231 = vweird.f32 %v235
        %v3232 = vand.u32 %v3228, 3
        %vm3233 = vcmp.lt.s32.totalorder %v3232, 2
        %vm3234 = vcmp.eq.s32.totalorder %v3232, 0
        %v3235 = vxor.u32 %v3230, 2147483648
        %v3236 = vsel %vm3234, %v3229, %v3235
        %vm3237 = vcmp.eq.s32.totalorder %v3232, 2
        %v3238 = vxor.u32 %v3229, 2147483648
        %v3239 = vsel %vm3237, %v3238, %v3230
        %v3240 = vsel %vm3233, %v3236, %v3239
        %v3241 = vsel %vm3231, nan, %v3240
        %v3242 = vand.u32 2147483647, %v236
        %vm3243 = vcmp.le.f32.partialorder %v3242, 0.7853982
        %vm3244 = vcmp.lt.s32.totalorder %v236, 0
        %v3245 = vand.u32 %v236, 2139095040
        %v3246 = vshrl.u32 %v3245, 23
        %v3247 = vsub.s32 %v3246, 127
        %v3248 = vand.u32 2147483647, %v236
        %v3249 = vand.u32 %v3248, 8388607
        %v3250 = vor.u32 %v3249, 8388608
        %v3251 = vsub.s32 0, %v3250
        %v3252 = vadd.s32 %v3247, 1
        %vm3253 = vcmp.gt.s32.totalorder %v3252, 0
        %v3254 = vsel %vm3253, %v3252, 0
        %v3255 = vshrl.u32 %v3254, 5
        %v3256 = vand.u32 %v3254, 31
        %v3257 = vsub.s32 32, %v3256
        %v3258 = vshrl.u32 683565275, %v3257
        %v3259 = vshll.u32 683565275, %v3256
        %v3260 = vshrl.u32 2475754826, %v3257
        %v3261 = vor.u32 %v3259, %v3260
        %v3262 = vshll.u32 2475754826, %v3256
        %v3263 = vshrl.u32 2131351028, %v3257
        %v3264 = vor.u32 %v3262, %v3263
        %v3265 = vshll.u32 2131351028, %v3256
        %v3266 = vshrl.u32 2102212464, %v3257
        %v3267 = vor.u32 %v3265, %v3266
        %v3268 = vshll.u32 2102212464, %v3256
        %v3269 = vshrl.u32 920167782, %v3257
        %v3270 = vor.u32 %v3268, %v3269
        %v3271 = vshll.u32 920167782, %v3256
        %v3272 = vshrl.u32 1326507024, %v3257
        %v3273 = vor.u32 %v3271, %v3272
        %vm3274 = vcmp.lt.s32.totalorder %v3255, 1
        %vm3275 = vcmp.lt.s32.totalorder %v3255, 2
        %vm3276 = vcmp.lt.s32.totalorder %v3255, 3
        %vm3277 = vcmp.lt.s32.totalorder %v3255, 4
        %v3278 = vsel %vm3274, %v3258, %v3261
        %v3279 = vsel %vm3277, %v3267, 2102212464
        %v3280 = vsel %vm3276, %v3264, %v3279
        %v3281 = vsel %vm3275, %v3278, %v3280
        %v3282 = vsel %vm3274, %v3261, %v3264
        %v3283 = vsel %vm3277, %v3270, 920167782
        %v3284 = vsel %vm3276, %v3267, %v3283
        %v3285 = vsel %vm3275, %v3282, %v3284
        %v3286 = vsel %vm3274, %v3264, %v3267
        %v3287 = vsel %vm3277, %v3273, 1326507024
        %v3288 = vsel %vm3276, %v3270, %v3287
        %v3289 = vsel %vm3275, %v3286, %v3288
        %v3290 = vshll.u32 %v3250, 8
        %v3291 = vmul.u32.u64.compose %v3290, %v3289
        %v3292 = vextract.low.u32 %v3291
        %v3293 = vextract.high.u32 %v3291
        %v3294 = vmul.u32.u64.compose %v3290, %v3285
        %v3295 = vextract.low.u32 %v3294
        %v3296 = vextract.high.u32 %v3294
        %v3297 = vmul.u32 %v3290, %v3281
        %v3298 = vadd.s32 %v3293, %v3295
        %vm3299 = vc.u32 %v3293, %v3295
        %v3300 = vadd.s32 %v3296, 1
        %v3301 = vsel %vm3299, %v3300, %v3296
        %v3302 = vadd.s32 %v3297, %v3301
        %v3303 = vadd.s32 %v3302, 536870912
        %v3304 = vshrl.u32 %v3303, 30
        %v3305 = vshll.u32 %v3304, 30
        %v3306 = vsub.s32 %v3302, %v3305
        %vm3307 = vcmp.lt.s32.totalorder %v3306, 0
        %v3308 = vsub.s32 0, %v3306
        %v3309 = vsel %vm3307, %v3308, %v3306
        %v3310 = vclz %v3309
        %v3311 = vsub.s32 %v3310, 2
        %vm3312 = vcmp.gt.s32.totalorder 0, %v3311
        %v3313 = vsel %vm3312, 0, %v3311
        %v3314 = vsub.s32 32, %v3313
        %v3315 = vshll.u32 %v3306, %v3313
        %v3316 = vshrl.u32 %v3298, %v3314
        %v3317 = vor.u32 %v3315, %v3316
        %v3318 = vsub.s32 4294967266, %v3313
        %v3319 = vadd.s32 %v3318, 127
        %v3320 = vshll.u32 %v3319, 23
        %v3321 = vor.u32 4788187, %v3320
        %v3322 = vand.u32 2147483647, %v3321
        %v3324 = vcvt.s32.f32 %v3317
        %v3325 = vmul.f32 %v3324, %v3322
        %v3326 = vxor.u32 %v3325, 2147483648
        %v3327 = vsel %vm3244, %v3326, %v3325
        %v3328 = vsub.s32 4, %v3304
        %v3329 = vsel %vm3244, %v3328, %v3304
        %v3330 = vsel %vm3243, %v236, %v3327
        %v3331 = vsel %vm3243, 0, %v3329
        %v3332 = vcosq.f32.pop %v3330
        %v3333 = vsinq.f32.pop %v3330
        %vm3334 = vweird.f32 %v236
        %v3335 = vand.u32 %v3331, 3
        %vm3336 = vcmp.lt.s32.totalorder %v3335, 2
        %vm3337 = vcmp.eq.s32.totalorder %v3335, 0
        %v3338 = vxor.u32 %v3333, 2147483648
        %v3339 = vsel %vm3337, %v3332, %v3338
        %vm3340 = vcmp.eq.s32.totalorder %v3335, 2
        %v3341 = vxor.u32 %v3332, 2147483648
        %v3342 = vsel %vm3340, %v3341, %v3333
        %v3343 = vsel %vm3336, %v3339, %v3342
        %v3344 = vsel %vm3334, nan, %v3343
        %v3345 = vand.u32 2147483647, %v237
        %vm3346 = vcmp.le.f32.partialorder %v3345, 0.7853982
        %vm3347 = vcmp.lt.s32.totalorder %v237, 0
        %v3348 = vand.u32 %v237, 2139095040
        %v3349 = vshrl.u32 %v3348, 23
        %v3350 = vsub.s32 %v3349, 127
        %v3351 = vand.u32 2147483647, %v237
        %v3352 = vand.u32 %v3351, 8388607
        %v3353 = vor.u32 %v3352, 8388608
        %v3354 = vsub.s32 0, %v3353
        %v3355 = vadd.s32 %v3350, 1
        %vm3356 = vcmp.gt.s32.totalorder %v3355, 0
        %v3357 = vsel %vm3356, %v3355, 0
        %v3358 = vshrl.u32 %v3357, 5
        %v3359 = vand.u32 %v3357, 31
        %v3360 = vsub.s32 32, %v3359
        %v3361 = vshrl.u32 683565275, %v3360
        %v3362 = vshll.u32 683565275, %v3359
        %v3363 = vshrl.u32 2475754826, %v3360
        %v3364 = vor.u32 %v3362, %v3363
        %v3365 = vshll.u32 2475754826, %v3359
        %v3366 = vshrl.u32 2131351028, %v3360
        %v3367 = vor.u32 %v3365, %v3366
        %v3368 = vshll.u32 2131351028, %v3359
        %v3369 = vshrl.u32 2102212464, %v3360
        %v3370 = vor.u32 %v3368, %v3369
        %v3371 = vshll.u32 2102212464, %v3359
        %v3372 = vshrl.u32 920167782, %v3360
        %v3373 = vor.u32 %v3371, %v3372
        %v3374 = vshll.u32 920167782, %v3359
        %v3375 = vshrl.u32 1326507024, %v3360
        %v3376 = vor.u32 %v3374, %v3375
        %vm3377 = vcmp.lt.s32.totalorder %v3358, 1
        %vm3378 = vcmp.lt.s32.totalorder %v3358, 2
        %vm3379 = vcmp.lt.s32.totalorder %v3358, 3
        %vm3380 = vcmp.lt.s32.totalorder %v3358, 4
        %v3381 = vsel %vm3377, %v3361, %v3364
        %v3382 = vsel %vm3380, %v3370, 2102212464
        %v3383 = vsel %vm3379, %v3367, %v3382
        %v3384 = vsel %vm3378, %v3381, %v3383
        %v3385 = vsel %vm3377, %v3364, %v3367
        %v3386 = vsel %vm3380, %v3373, 920167782
        %v3387 = vsel %vm3379, %v3370, %v3386
        %v3388 = vsel %vm3378, %v3385, %v3387
        %v3389 = vsel %vm3377, %v3367, %v3370
        %v3390 = vsel %vm3380, %v3376, 1326507024
        %v3391 = vsel %vm3379, %v3373, %v3390
        %v3392 = vsel %vm3378, %v3389, %v3391
        %v3393 = vshll.u32 %v3353, 8
        %v3394 = vmul.u32.u64.compose %v3393, %v3392
        %v3395 = vextract.low.u32 %v3394
        %v3396 = vextract.high.u32 %v3394
        %v3397 = vmul.u32.u64.compose %v3393, %v3388
        %v3398 = vextract.low.u32 %v3397
        %v3399 = vextract.high.u32 %v3397
        %v3400 = vmul.u32 %v3393, %v3384
        %v3401 = vadd.s32 %v3396, %v3398
        %vm3402 = vc.u32 %v3396, %v3398
        %v3403 = vadd.s32 %v3399, 1
        %v3404 = vsel %vm3402, %v3403, %v3399
        %v3405 = vadd.s32 %v3400, %v3404
        %v3406 = vadd.s32 %v3405, 536870912
        %v3407 = vshrl.u32 %v3406, 30
        %v3408 = vshll.u32 %v3407, 30
        %v3409 = vsub.s32 %v3405, %v3408
        %vm3410 = vcmp.lt.s32.totalorder %v3409, 0
        %v3411 = vsub.s32 0, %v3409
        %v3412 = vsel %vm3410, %v3411, %v3409
        %v3413 = vclz %v3412
        %v3414 = vsub.s32 %v3413, 2
        %vm3415 = vcmp.gt.s32.totalorder 0, %v3414
        %v3416 = vsel %vm3415, 0, %v3414
        %v3417 = vsub.s32 32, %v3416
        %v3418 = vshll.u32 %v3409, %v3416
        %v3419 = vshrl.u32 %v3401, %v3417
        %v3420 = vor.u32 %v3418, %v3419
        %v3421 = vsub.s32 4294967266, %v3416
        %v3422 = vadd.s32 %v3421, 127
        %v3423 = vshll.u32 %v3422, 23
        %v3424 = vor.u32 4788187, %v3423
        %v3425 = vand.u32 2147483647, %v3424
        %v3427 = vcvt.s32.f32 %v3420
        %v3428 = vmul.f32 %v3427, %v3425
        %v3429 = vxor.u32 %v3428, 2147483648
        %v3430 = vsel %vm3347, %v3429, %v3428
        %v3431 = vsub.s32 4, %v3407
        %v3432 = vsel %vm3347, %v3431, %v3407
        %v3433 = vsel %vm3346, %v237, %v3430
        %v3434 = vsel %vm3346, 0, %v3432
        %v3435 = vcosq.f32.pop %v3433
        %v3436 = vsinq.f32.pop %v3433
        %vm3437 = vweird.f32 %v237
        %v3438 = vand.u32 %v3434, 3
        %vm3439 = vcmp.lt.s32.totalorder %v3438, 2
        %vm3440 = vcmp.eq.s32.totalorder %v3438, 0
        %v3441 = vxor.u32 %v3436, 2147483648
        %v3442 = vsel %vm3440, %v3435, %v3441
        %vm3443 = vcmp.eq.s32.totalorder %v3438, 2
        %v3444 = vxor.u32 %v3435, 2147483648
        %v3445 = vsel %vm3443, %v3444, %v3436
        %v3446 = vsel %vm3439, %v3442, %v3445
        %v3447 = vsel %vm3437, nan, %v3446
        %v3448 = vand.u32 2147483647, %v238
        %vm3449 = vcmp.le.f32.partialorder %v3448, 0.7853982
        %vm3450 = vcmp.lt.s32.totalorder %v238, 0
        %v3451 = vand.u32 %v238, 2139095040
        %v3452 = vshrl.u32 %v3451, 23
        %v3453 = vsub.s32 %v3452, 127
        %v3454 = vand.u32 2147483647, %v238
        %v3455 = vand.u32 %v3454, 8388607
        %v3456 = vor.u32 %v3455, 8388608
        %v3457 = vsub.s32 0, %v3456
        %v3458 = vadd.s32 %v3453, 1
        %vm3459 = vcmp.gt.s32.totalorder %v3458, 0
        %v3460 = vsel %vm3459, %v3458, 0
        %v3461 = vshrl.u32 %v3460, 5
        %v3462 = vand.u32 %v3460, 31
        %v3463 = vsub.s32 32, %v3462
        %v3464 = vshrl.u32 683565275, %v3463
        %v3465 = vshll.u32 683565275, %v3462
        %v3466 = vshrl.u32 2475754826, %v3463
        %v3467 = vor.u32 %v3465, %v3466
        %v3468 = vshll.u32 2475754826, %v3462
        %v3469 = vshrl.u32 2131351028, %v3463
        %v3470 = vor.u32 %v3468, %v3469
        %v3471 = vshll.u32 2131351028, %v3462
        %v3472 = vshrl.u32 2102212464, %v3463
        %v3473 = vor.u32 %v3471, %v3472
        %v3474 = vshll.u32 2102212464, %v3462
        %v3475 = vshrl.u32 920167782, %v3463
        %v3476 = vor.u32 %v3474, %v3475
        %v3477 = vshll.u32 920167782, %v3462
        %v3478 = vshrl.u32 1326507024, %v3463
        %v3479 = vor.u32 %v3477, %v3478
        %vm3480 = vcmp.lt.s32.totalorder %v3461, 1
        %vm3481 = vcmp.lt.s32.totalorder %v3461, 2
        %vm3482 = vcmp.lt.s32.totalorder %v3461, 3
        %vm3483 = vcmp.lt.s32.totalorder %v3461, 4
        %v3484 = vsel %vm3480, %v3464, %v3467
        %v3485 = vsel %vm3483, %v3473, 2102212464
        %v3486 = vsel %vm3482, %v3470, %v3485
        %v3487 = vsel %vm3481, %v3484, %v3486
        %v3488 = vsel %vm3480, %v3467, %v3470
        %v3489 = vsel %vm3483, %v3476, 920167782
        %v3490 = vsel %vm3482, %v3473, %v3489
        %v3491 = vsel %vm3481, %v3488, %v3490
        %v3492 = vsel %vm3480, %v3470, %v3473
        %v3493 = vsel %vm3483, %v3479, 1326507024
        %v3494 = vsel %vm3482, %v3476, %v3493
        %v3495 = vsel %vm3481, %v3492, %v3494
        %v3496 = vshll.u32 %v3456, 8
        %v3497 = vmul.u32.u64.compose %v3496, %v3495
        %v3498 = vextract.low.u32 %v3497
        %v3499 = vextract.high.u32 %v3497
        %v3500 = vmul.u32.u64.compose %v3496, %v3491
        %v3501 = vextract.low.u32 %v3500
        %v3502 = vextract.high.u32 %v3500
        %v3503 = vmul.u32 %v3496, %v3487
        %v3504 = vadd.s32 %v3499, %v3501
        %vm3505 = vc.u32 %v3499, %v3501
        %v3506 = vadd.s32 %v3502, 1
        %v3507 = vsel %vm3505, %v3506, %v3502
        %v3508 = vadd.s32 %v3503, %v3507
        %v3509 = vadd.s32 %v3508, 536870912
        %v3510 = vshrl.u32 %v3509, 30
        %v3511 = vshll.u32 %v3510, 30
        %v3512 = vsub.s32 %v3508, %v3511
        %vm3513 = vcmp.lt.s32.totalorder %v3512, 0
        %v3514 = vsub.s32 0, %v3512
        %v3515 = vsel %vm3513, %v3514, %v3512
        %v3516 = vclz %v3515
        %v3517 = vsub.s32 %v3516, 2
        %vm3518 = vcmp.gt.s32.totalorder 0, %v3517
        %v3519 = vsel %vm3518, 0, %v3517
        %v3520 = vsub.s32 32, %v3519
        %v3521 = vshll.u32 %v3512, %v3519
        %v3522 = vshrl.u32 %v3504, %v3520
        %v3523 = vor.u32 %v3521, %v3522
        %v3524 = vsub.s32 4294967266, %v3519
        %v3525 = vadd.s32 %v3524, 127
        %v3526 = vshll.u32 %v3525, 23
        %v3527 = vor.u32 4788187, %v3526
        %v3528 = vand.u32 2147483647, %v3527
        %v3530 = vcvt.s32.f32 %v3523
        %v3531 = vmul.f32 %v3530, %v3528
        %v3532 = vxor.u32 %v3531, 2147483648
        %v3533 = vsel %vm3450, %v3532, %v3531
        %v3534 = vsub.s32 4, %v3510
        %v3535 = vsel %vm3450, %v3534, %v3510
        %v3536 = vsel %vm3449, %v238, %v3533
        %v3537 = vsel %vm3449, 0, %v3535
        %v3538 = vcosq.f32.pop %v3536
        %v3539 = vsinq.f32.pop %v3536
        %vm3540 = vweird.f32 %v238
        %v3541 = vand.u32 %v3537, 3
        %vm3542 = vcmp.lt.s32.totalorder %v3541, 2
        %vm3543 = vcmp.eq.s32.totalorder %v3541, 0
        %v3544 = vxor.u32 %v3539, 2147483648
        %v3545 = vsel %vm3543, %v3538, %v3544
        %vm3546 = vcmp.eq.s32.totalorder %v3541, 2
        %v3547 = vxor.u32 %v3538, 2147483648
        %v3548 = vsel %vm3546, %v3547, %v3539
        %v3549 = vsel %vm3542, %v3545, %v3548
        %v3550 = vsel %vm3540, nan, %v3549
        %v3551 = vsel %vm136, 1, 0
        %vm3552 = vcmp.eq.s32.totalorder %v3551, 1
        %v3553 = vsel %vm3552, %v342, %v2005
        %v3554 = vsel %vm3552, %v446, %v2108
        %v3555 = vsel %vm3552, %v550, %v2211
        %v3556 = vsel %vm3552, %v654, %v2314
        %v3557 = vsel %vm3552, %v758, %v2417
        %v3558 = vsel %vm3552, %v862, %v2520
        %v3559 = vsel %vm3552, %v966, %v2623
        %v3560 = vsel %vm3552, %v1070, %v2726
        %v3561 = vsel %vm3552, %v1174, %v2829
        %v3562 = vsel %vm3552, %v1278, %v2932
        %v3563 = vsel %vm3552, %v1382, %v3035
        %v3564 = vsel %vm3552, %v1486, %v3138
        %v3565 = vsel %vm3552, %v1590, %v3241
        %v3566 = vsel %vm3552, %v1694, %v3344
        %v3567 = vsel %vm3552, %v1798, %v3447
        %v3568 = vsel %vm3552, %v1902, %v3550
        %3569 = vst [vmem:[%s110] sm:$0xff] %v3553
        %3570 = vst [vmem:[%s110 + $0x8] sm:$0xff] %v3554
        %3571 = vst [vmem:[%s110 + $0x10] sm:$0xff] %v3555
        %3572 = vst [vmem:[%s110 + $0x18] sm:$0xff] %v3556
        %3573 = vst [vmem:[%s110 + $0x20] sm:$0xff] %v3557
        %3574 = vst [vmem:[%s110 + $0x28] sm:$0xff] %v3558
        %3575 = vst [vmem:[%s110 + $0x30] sm:$0xff] %v3559
        %3576 = vst [vmem:[%s110 + $0x38] sm:$0xff] %v3560
        %3577 = vst [vmem:[%s110 + $0x40] sm:$0xff] %v3561
        %3578 = vst [vmem:[%s110 + $0x48] sm:$0xff] %v3562
        %3579 = vst [vmem:[%s110 + $0x50] sm:$0xff] %v3563
        %3580 = vst [vmem:[%s110 + $0x58] sm:$0xff] %v3564
        %3581 = vst [vmem:[%s110 + $0x60] sm:$0xff] %v3565
        %3582 = vst [vmem:[%s110 + $0x68] sm:$0xff] %v3566
        %3583 = vst [vmem:[%s110 + $0x70] sm:$0xff] %v3567
        %3584 = vst [vmem:[%s110 + $0x78] sm:$0xff] %v3568
        %s3585 = sand.u32 %s49, 1
        %s3586 = scalar_lea.sflag [#allocation3], %s3585
        %s3587 = sand.u32 %s49, 1
        %s3588 = smul.addr %s3587, 128
        %s3589 = scalar_lea.vmem [#allocation2], %s3588
        // Predicated region
        $region25: #{tpu_custom_call.1} parent=23 // pred_check
          %p3590 = pneg %p59
        $region26: #{tpu_custom_call.1} parent=23 // pred_check_branch
          %3592 = sbr.rel (%p3590) target = $region28
        $region27: #{tpu_custom_call.1} parent=23 // pred_region
          %s3593 = smul.u32 16, %s15
          %s3595 = ssub.s32 2048, 2048
          %3596 = vsyncadd %s3586, %s3595
          %s3597 = smul.addr %s3593, 128
          %s3598 = scalar_lea.hbm %s1, %s3597
          %s3599 = sshll.u32 %s3589, 4
          %s3600 = int_to_ptr.vmem [resolvable:$true] %s3599
          %3605 = dma.vmem_to_hbm [thread:$0]  %s3600, 2048, %s3598, %s3586, 128, 128, 8
        $region28: #{tpu_custom_call.1} parent=23 // pred_fallthru
          _
      $region24: #{tpu_custom_call.1} parent=5 // pred_fallthru
        _
      %p3606 = scmp.le.s32.totalorder 2, %s10
      // Predicated region
      $region29: #{tpu_custom_call.1} parent=5 // pred_check
        %p3607 = pneg %p3606
      $region30: #{tpu_custom_call.1} parent=5 // pred_check_branch
        %3609 = sbr.rel (%p3607) target = $region32
      $region31: #{tpu_custom_call.1} parent=5 // pred_region
        %s3610 = ssub.s32 %s10, 2
        // Predicated region
        $region33: #{tpu_custom_call.1} parent=31 // pred_check
          %p3611 = pneg %p65
        $region34: #{tpu_custom_call.1} parent=31 // pred_check_branch
          %3613 = sbr.rel (%p3611) target = $region36
        $region35: #{tpu_custom_call.1} parent=31 // pred_region
          %s3614 = sand.u32 %s50, 1
          %s3615 = scalar_lea.sflag [#allocation3], %s3614
          %s3616 = sand.u32 %s50, 1
          %s3617 = smul.addr %s3616, 128
          %s3618 = scalar_lea.vmem [#allocation2], %s3617
          %3619 = dma.done %s3615, 2048
        $region36: #{tpu_custom_call.1} parent=31 // pred_fallthru
          _
      $region32: #{tpu_custom_call.1} parent=5 // pred_fallthru
        _
    $region6: #{tpu_custom_call.1} parent=1 // loop_footer
      %s14 = sadd.s32 1, %s10
    $region7: #{tpu_custom_call.1} parent=1 // loop_footer_branch
      %9 = sbr.rel target = $region3
    $region8: #{tpu_custom_call.1} parent=1 // loop_exit
      _
    %3620 = vsyncpa [#allocation3], 1
    %s3621 = scalar_lea.sflag [#allocation3], 1
    %3622 = vsyncpa %s3621, 1

</llo_original>
